<compile_context>
chip_gen: v6e
topology: v6e:2x2x1
jax: 0.10.0
libtpu: 0.0.40
codegen_flags: <defaults>
</compile_context>

<pallas_src>
import functools

import jax
import jax.numpy as jnp
from jax.experimental import pallas as pl
from jax.experimental.pallas import tpu as pltpu

KH = KW = 3                      # spec: kernel_size = 3, stride = 1
_VMEM_LIMIT = 32 * 1024 * 1024


def _conv_geometry(h, w):
    """Static geometry for one conv(3x3, valid) + ReLU + maxpool(2,2) stage."""
    ho, wo = h - KH + 1, w - KW + 1          # conv output spatial dims
    hp, wp = ho // 2, wo // 2                # pooled output (floor mode)
    macc = ho * w                            # full-width accumulator rows (i*W + j)
    lm = macc - w - 1                        # length of the dense 4-shift max
    sp = h * w + (KW - 1)                    # padded flattened input length
    return ho, wo, hp, wp, macc, lm, sp


# ----------------------------------------------------------------------------
# Pallas kernels
# ----------------------------------------------------------------------------
def _conv_relu_pool_kernel(x_ref, w_ref, b_ref, p_ref, o_ref, *, ci, w, macc, lm):
    """Fused conv3x3(valid) + bias + ReLU + maxpool2x2 for one image.

    x_ref : (1, Ci, H*W + 2)  f32   flattened CHW image, 2 trailing zero columns
    w_ref : (Co, 9*Ci)        bf16  tap-major weights, tap t = w_ref[:, t*Ci:(t+1)*Ci]
    b_ref : (Co, 1)           f32
    p_ref : (Lm, OutCols)     f32   0/1 pooling row-selection matrix (padded cols = 0)
    o_ref : (1, Co, OutCols)  f32   pooled output, flattened p*Wp+q, zero-padded
    """
    x = x_ref[0]                                           # (Ci, H*W + 2)
    co = w_ref.shape[0]
    acc = jnp.zeros((co, macc), jnp.float32)

    # Accumulate the 9 taps as matmuls over contiguous shifted slices of the
    # flattened image.  Columns j >= Wo of each accumulator row are garbage
    # (row wrap / zero padding) and are never selected by the pooling matrix.
    for t in range(KH * KW):
        ki, kj = t // KW, t % KW
        lhs = x[:, ki * w + kj: ki * w + kj + macc]        # (Ci, Macc)
        wt = w_ref[:, t * ci:(t + 1) * ci]                 # (Co, Ci) bf16
        if ci == 1:
            # K=1: outer product on the VPU in f32 (cheaper/safer than a K=1 MXU dot)
            acc = acc + wt.astype(jnp.float32) * lhs
        else:
            acc = acc + jnp.dot(wt, lhs.astype(jnp.bfloat16),
                                preferred_element_type=jnp.float32)

    a = jnp.maximum(acc + b_ref[...], 0.0)                 # bias + ReLU, f32 (Co, Macc)

    # Dense 2x2 window max: m[:, r] = max(a[r], a[r+1], a[r+W], a[r+W+1]).
    m = jnp.maximum(jnp.maximum(a[:, 0:lm], a[:, 1:1 + lm]),
                    jnp.maximum(a[:, w:w + lm], a[:, w + 1:w + 1 + lm]))

    # Select rows r = 2p*W + 2q via an exact 0/1 matmul (one '1' per column, so
    # the result is bit-exact max-pooling); also writes the zero padding columns
    # needed by the next conv stage.  Single lane-dense store.
    o_ref[0] = jnp.dot(m, p_ref[...], preferred_element_type=jnp.float32)


def _mlp_head_kernel(x_ref, w1_ref, b1_ref, w2_ref, b2_ref, o_ref):
    # h = relu(x @ w1 + b1); y = relu(h @ w2 + b2); out = log_softmax(y)
    # NOTE: the PyTorch spec applies ReLU to fc2's output *before* log_softmax.
    x = x_ref[...].astype(jnp.bfloat16)
    h = jnp.dot(x, w1_ref[...], preferred_element_type=jnp.float32)
    h = jnp.maximum(h + b1_ref[...], 0.0)
    y = jnp.dot(h.astype(jnp.bfloat16), w2_ref[...], preferred_element_type=jnp.float32)
    y = jnp.maximum(y + b2_ref[...], 0.0)
    mx = jnp.max(y, axis=-1, keepdims=True)
    lse = mx + jnp.log(jnp.sum(jnp.exp(y - mx), axis=-1, keepdims=True))
    o_ref[...] = y - lse


# ----------------------------------------------------------------------------
# pallas_call wrappers
# ----------------------------------------------------------------------------
def conv_relu_pool(x_sp, w_flat, b_col, psel, *, h, w):
    """x_sp: (N, Ci, H*W + 2) -> (N, Co, OutCols).  Grid over batch (parallel)."""
    n, ci, sp = x_sp.shape
    co = w_flat.shape[0]
    _, _, _, _, macc, lm, sp_expect = _conv_geometry(h, w)
    assert sp == sp_expect, (sp, sp_expect)
    out_cols = psel.shape[1]
    kern = functools.partial(_conv_relu_pool_kernel, ci=ci, w=w, macc=macc, lm=lm)
    return pl.pallas_call(
        kern,
        out_shape=jax.ShapeDtypeStruct((n, co, out_cols), jnp.float32),
        grid=(n,),
        in_specs=[
            pl.BlockSpec((1, ci, sp), lambda i: (i, 0, 0)),           # streamed
            pl.BlockSpec((co, KH * KW * ci), lambda i: (0, 0)),       # resident
            pl.BlockSpec((co, 1), lambda i: (0, 0)),                  # resident
            pl.BlockSpec((lm, out_cols), lambda i: (0, 0)),           # resident
        ],
        out_specs=pl.BlockSpec((1, co, out_cols), lambda i: (i, 0, 0)),
        compiler_params=pltpu.CompilerParams(
            dimension_semantics=("parallel",),
            vmem_limit_bytes=_VMEM_LIMIT),
    )(x_sp, w_flat, b_col, psel)


def _round_up(a, b):
    return (a + b - 1) // b * b


def mlp_head(x, w1, b1, w2, b2, *, row_tile=512):
    """Row-tiled fc1+relu+fc2+relu+log_softmax; weights stay VMEM-resident."""
    n, d = x.shape
    dh, do = w1.shape[1], w2.shape[1]
    tm = row_tile if n >= row_tile else _round_up(n, 8)
    n_pad = _round_up(n, tm)
    if n_pad != n:
        x = jnp.pad(x, ((0, n_pad - n), (0, 0)))
    out = pl.pallas_call(
        _mlp_head_kernel,
        out_shape=jax.ShapeDtypeStruct((n_pad, do), jnp.float32),
        grid=(n_pad // tm,),
        in_specs=[
            pl.BlockSpec((tm, d), lambda i: (i, 0)),                  # streamed rows
            pl.BlockSpec((d, dh), lambda i: (0, 0)),                  # resident
            pl.BlockSpec((1, dh), lambda i: (0, 0)),                  # resident
            pl.BlockSpec((dh, do), lambda i: (0, 0)),                 # resident
            pl.BlockSpec((1, do), lambda i: (0, 0)),                  # resident
        ],
        out_specs=pl.BlockSpec((tm, do), lambda i: (i, 0)),
        compiler_params=pltpu.CompilerParams(
            dimension_semantics=("parallel",),
            vmem_limit_bytes=_VMEM_LIMIT),
    )(x, w1, b1.reshape(1, dh), w2, b2.reshape(1, do))
    return out[:n]


# ----------------------------------------------------------------------------
# Parameters (PyTorch-equivalent init, re-laid-out for the kernels)
# ----------------------------------------------------------------------------
def _make_pool_select(w, hp, wp, lm, out_cols):
    """0/1 matrix P with P[r, p*wp+q] = 1 iff r == 2p*w + 2q; extra columns are zero."""
    c = jnp.arange(out_cols)
    target = 2 * (c // wp) * w + 2 * (c % wp)
    valid = c < hp * wp
    r = jnp.arange(lm)[:, None]
    return jnp.where((r == target[None, :]) & valid[None, :], 1.0, 0.0).astype(jnp.float32)


def init_params(key):
    ks = jax.random.split(key, 8)

    def uni(k, shape, fan_in):
        bound = 1.0 / jnp.sqrt(fan_in)
        return jax.random.uniform(k, shape, jnp.float32, -bound, bound)

    # PyTorch layouts: conv OIHW, linear (out, in)
    c1w, c1b = uni(ks[0], (16, 1, 3, 3), 9), uni(ks[1], (16,), 9)
    c2w, c2b = uni(ks[2], (32, 16, 3, 3), 144), uni(ks[3], (32,), 144)
    f1w, f1b = uni(ks[4], (128, 800), 800), uni(ks[5], (128,), 800)
    f2w, f2b = uni(ks[6], (10, 128), 128), uni(ks[7], (10,), 128)

    g1 = _conv_geometry(28, 28)     # (ho, wo, hp, wp, macc, lm, sp) -> hp=wp=13
    g2 = _conv_geometry(13, 13)     # hp=wp=5; g2.sp = 171 = conv1's padded output width

    return {
        # conv weights -> (Co, tap*Ci), tap-major (ki,kj,ci); bf16 for the MXU
        "conv1_w": jnp.transpose(c1w, (0, 2, 3, 1)).reshape(16, 9 * 1).astype(jnp.bfloat16),
        "conv1_b": c1b.reshape(16, 1),
        "conv2_w": jnp.transpose(c2w, (0, 2, 3, 1)).reshape(32, 9 * 16).astype(jnp.bfloat16),
        "conv2_b": c2b.reshape(32, 1),
        # fc weights -> (in, out); kernel flatten order is (C,H,W) == torch.flatten(x, 1)
        "fc1_w": f1w.T.astype(jnp.bfloat16),
        "fc1_b": f1b,
        "fc2_w": f2w.T.astype(jnp.bfloat16),
        "fc2_b": f2b,
        # constant 0/1 pooling selection matrices (not learned); pool1's output is
        # zero-padded up to conv2's flattened+padded input width (171).
        "pool1_sel": _make_pool_select(w=28, hp=g1[2], wp=g1[3], lm=g1[5], out_cols=g2[6]),
        "pool2_sel": _make_pool_select(w=13, hp=g2[2], wp=g2[3], lm=g2[5], out_cols=g2[2] * g2[3]),
    }


# ----------------------------------------------------------------------------
# Forward pass
# ----------------------------------------------------------------------------
def mnist_cnn_forward(params, x_nchw):
    n = x_nchw.shape[0]
    # NCHW -> flattened CHW-planar; pad the flattened spatial axis by kw-1 so the
    # in-kernel tap slices stay in bounds (free reshape + tiny pad, no transpose).
    x = x_nchw.astype(jnp.float32).reshape(n, 1, 28 * 28)
    x = jnp.pad(x, ((0, 0), (0, 0), (0, KW - 1)))                      # (N, 1, 786)

    h1 = conv_relu_pool(x, params["conv1_w"], params["conv1_b"],
                        params["pool1_sel"], h=28, w=28)               # (N, 16, 171)
    h2 = conv_relu_pool(h1, params["conv2_w"], params["conv2_b"],
                        params["pool2_sel"], h=13, w=13)               # (N, 32, 25)

    feat = h2.reshape(n, 32 * 5 * 5)   # (C,H,W) order == torch.flatten(x, 1) on NCHW
    return mlp_head(feat, params["fc1_w"], params["fc1_b"],
                    params["fc2_w"], params["fc2_b"])                  # (N, 10)


if __name__ == "__main__":
    key = jax.random.PRNGKey(0)
    k_param, k_x = jax.random.split(key)
    params = init_params(k_param)
    # MNIST-shaped input: batch=2, 1 channel, 28x28 (required by fc1 = 32*5*5)
    x = jax.random.normal(k_x, (2, 1, 28, 28), dtype=jnp.float32)

    out = jax.jit(mnist_cnn_forward)(params, x)
    out = jax.block_until_ready(out)

    assert out.shape == (2, 10) and out.dtype == jnp.float32
    # log_softmax rows should sum to 1 in probability space
    assert jnp.allclose(jnp.sum(jnp.exp(out), axis=-1), 1.0, atol=1e-3)
    print("KERNEL_OK")
</pallas_src>

<mosaic_0001>
module attributes {stable_mosaic.version = 11 : i64} {
  func.func @_conv_relu_pool_kernel(%arg0: i32, %arg1: memref<1x1x786xf32, #tpu.memory_space<vmem>>, %arg2: memref<16x9xbf16, #tpu.memory_space<vmem>>, %arg3: memref<16x1xf32, #tpu.memory_space<vmem>>, %arg4: memref<699x171xf32, #tpu.memory_space<vmem>>, %arg5: memref<1x16x171xf32, #tpu.memory_space<vmem>>) attributes {dimension_semantics = [#tpu.dimension_semantics<parallel>], iteration_bounds = array<i64: 2>, scalar_prefetch = 0 : i64, scratch_operands = 0 : i64, tpu.core_type = #tpu.core_type<tc>, window_params = [{transform_indices = @transform_0, window_bounds = array<i64: 1, 1, 786>}, {pipeline_mode = #tpu.pipeline_mode<synchronous>, transform_indices = @transform_1, window_bounds = array<i64: 16, 9>}, {pipeline_mode = #tpu.pipeline_mode<synchronous>, transform_indices = @transform_2, window_bounds = array<i64: 16, 1>}, {pipeline_mode = #tpu.pipeline_mode<synchronous>, transform_indices = @transform_3, window_bounds = array<i64: 699, 171>}, {transform_indices = @transform_4, window_bounds = array<i64: 1, 16, 171>}]} {
    %c0 = arith.constant 0 : index
    %c0_0 = arith.constant 0 : index
    %c0_1 = arith.constant 0 : index
    %0 = vector.load %arg1[%c0, %c0_0, %c0_1] : memref<1x1x786xf32, #tpu.memory_space<vmem>>, vector<1x1x786xf32>
    %1 = vector.shape_cast %0 : vector<1x1x786xf32> to vector<1x786xf32>
    %cst = arith.constant 0.000000e+00 : f32
    %2 = vector.broadcast %cst : f32 to vector<16x728xf32>
    %3 = vector.extract_strided_slice %1 {offsets = [0, 0], sizes = [1, 728], strides = [1, 1]} : vector<1x786xf32> to vector<1x728xf32>
    %c0_2 = arith.constant 0 : index
    %c0_3 = arith.constant 0 : index
    %4 = vector.load %arg2[%c0_2, %c0_3] : memref<16x9xbf16, #tpu.memory_space<vmem>>, vector<16x1xbf16>
    %5 = arith.extf %4 : vector<16x1xbf16> to vector<16x1xf32>
    %6 = vector.broadcast %5 : vector<16x1xf32> to vector<16x728xf32>
    %7 = vector.broadcast %3 : vector<1x728xf32> to vector<16x728xf32>
    %8 = arith.mulf %6, %7 : vector<16x728xf32>
    %9 = arith.addf %2, %8 : vector<16x728xf32>
    %10 = vector.extract_strided_slice %1 {offsets = [0, 1], sizes = [1, 728], strides = [1, 1]} : vector<1x786xf32> to vector<1x728xf32>
    %c0_4 = arith.constant 0 : index
    %c1 = arith.constant 1 : index
    %11 = vector.load %arg2[%c0_4, %c1] : memref<16x9xbf16, #tpu.memory_space<vmem>>, vector<16x1xbf16>
    %12 = arith.extf %11 : vector<16x1xbf16> to vector<16x1xf32>
    %13 = vector.broadcast %12 : vector<16x1xf32> to vector<16x728xf32>
    %14 = vector.broadcast %10 : vector<1x728xf32> to vector<16x728xf32>
    %15 = arith.mulf %13, %14 : vector<16x728xf32>
    %16 = arith.addf %9, %15 : vector<16x728xf32>
    %17 = vector.extract_strided_slice %1 {offsets = [0, 2], sizes = [1, 728], strides = [1, 1]} : vector<1x786xf32> to vector<1x728xf32>
    %c0_5 = arith.constant 0 : index
    %c2 = arith.constant 2 : index
    %18 = vector.load %arg2[%c0_5, %c2] : memref<16x9xbf16, #tpu.memory_space<vmem>>, vector<16x1xbf16>
    %19 = arith.extf %18 : vector<16x1xbf16> to vector<16x1xf32>
    %20 = vector.broadcast %19 : vector<16x1xf32> to vector<16x728xf32>
    %21 = vector.broadcast %17 : vector<1x728xf32> to vector<16x728xf32>
    %22 = arith.mulf %20, %21 : vector<16x728xf32>
    %23 = arith.addf %16, %22 : vector<16x728xf32>
    %24 = vector.extract_strided_slice %1 {offsets = [0, 28], sizes = [1, 728], strides = [1, 1]} : vector<1x786xf32> to vector<1x728xf32>
    %c0_6 = arith.constant 0 : index
    %c3 = arith.constant 3 : index
    %25 = vector.load %arg2[%c0_6, %c3] : memref<16x9xbf16, #tpu.memory_space<vmem>>, vector<16x1xbf16>
    %26 = arith.extf %25 : vector<16x1xbf16> to vector<16x1xf32>
    %27 = vector.broadcast %26 : vector<16x1xf32> to vector<16x728xf32>
    %28 = vector.broadcast %24 : vector<1x728xf32> to vector<16x728xf32>
    %29 = arith.mulf %27, %28 : vector<16x728xf32>
    %30 = arith.addf %23, %29 : vector<16x728xf32>
    %31 = vector.extract_strided_slice %1 {offsets = [0, 29], sizes = [1, 728], strides = [1, 1]} : vector<1x786xf32> to vector<1x728xf32>
    %c0_7 = arith.constant 0 : index
    %c4 = arith.constant 4 : index
    %32 = vector.load %arg2[%c0_7, %c4] : memref<16x9xbf16, #tpu.memory_space<vmem>>, vector<16x1xbf16>
    %33 = arith.extf %32 : vector<16x1xbf16> to vector<16x1xf32>
    %34 = vector.broadcast %33 : vector<16x1xf32> to vector<16x728xf32>
    %35 = vector.broadcast %31 : vector<1x728xf32> to vector<16x728xf32>
    %36 = arith.mulf %34, %35 : vector<16x728xf32>
    %37 = arith.addf %30, %36 : vector<16x728xf32>
    %38 = vector.extract_strided_slice %1 {offsets = [0, 30], sizes = [1, 728], strides = [1, 1]} : vector<1x786xf32> to vector<1x728xf32>
    %c0_8 = arith.constant 0 : index
    %c5 = arith.constant 5 : index
    %39 = vector.load %arg2[%c0_8, %c5] : memref<16x9xbf16, #tpu.memory_space<vmem>>, vector<16x1xbf16>
    %40 = arith.extf %39 : vector<16x1xbf16> to vector<16x1xf32>
    %41 = vector.broadcast %40 : vector<16x1xf32> to vector<16x728xf32>
    %42 = vector.broadcast %38 : vector<1x728xf32> to vector<16x728xf32>
    %43 = arith.mulf %41, %42 : vector<16x728xf32>
    %44 = arith.addf %37, %43 : vector<16x728xf32>
    %45 = vector.extract_strided_slice %1 {offsets = [0, 56], sizes = [1, 728], strides = [1, 1]} : vector<1x786xf32> to vector<1x728xf32>
    %c0_9 = arith.constant 0 : index
    %c6 = arith.constant 6 : index
    %46 = vector.load %arg2[%c0_9, %c6] : memref<16x9xbf16, #tpu.memory_space<vmem>>, vector<16x1xbf16>
    %47 = arith.extf %46 : vector<16x1xbf16> to vector<16x1xf32>
    %48 = vector.broadcast %47 : vector<16x1xf32> to vector<16x728xf32>
    %49 = vector.broadcast %45 : vector<1x728xf32> to vector<16x728xf32>
    %50 = arith.mulf %48, %49 : vector<16x728xf32>
    %51 = arith.addf %44, %50 : vector<16x728xf32>
    %52 = vector.extract_strided_slice %1 {offsets = [0, 57], sizes = [1, 728], strides = [1, 1]} : vector<1x786xf32> to vector<1x728xf32>
    %c0_10 = arith.constant 0 : index
    %c7 = arith.constant 7 : index
    %53 = vector.load %arg2[%c0_10, %c7] : memref<16x9xbf16, #tpu.memory_space<vmem>>, vector<16x1xbf16>
    %54 = arith.extf %53 : vector<16x1xbf16> to vector<16x1xf32>
    %55 = vector.broadcast %54 : vector<16x1xf32> to vector<16x728xf32>
    %56 = vector.broadcast %52 : vector<1x728xf32> to vector<16x728xf32>
    %57 = arith.mulf %55, %56 : vector<16x728xf32>
    %58 = arith.addf %51, %57 : vector<16x728xf32>
    %59 = vector.extract_strided_slice %1 {offsets = [0, 58], sizes = [1, 728], strides = [1, 1]} : vector<1x786xf32> to vector<1x728xf32>
    %c0_11 = arith.constant 0 : index
    %c8 = arith.constant 8 : index
    %60 = vector.load %arg2[%c0_11, %c8] : memref<16x9xbf16, #tpu.memory_space<vmem>>, vector<16x1xbf16>
    %61 = arith.extf %60 : vector<16x1xbf16> to vector<16x1xf32>
    %62 = vector.broadcast %61 : vector<16x1xf32> to vector<16x728xf32>
    %63 = vector.broadcast %59 : vector<1x728xf32> to vector<16x728xf32>
    %64 = arith.mulf %62, %63 : vector<16x728xf32>
    %65 = arith.addf %58, %64 : vector<16x728xf32>
    %c0_12 = arith.constant 0 : index
    %c0_13 = arith.constant 0 : index
    %66 = vector.load %arg3[%c0_12, %c0_13] : memref<16x1xf32, #tpu.memory_space<vmem>>, vector<16x1xf32>
    %67 = vector.broadcast %66 : vector<16x1xf32> to vector<16x728xf32>
    %68 = arith.addf %65, %67 : vector<16x728xf32>
    %cst_14 = arith.constant 0.000000e+00 : f32
    %69 = vector.broadcast %cst_14 : f32 to vector<16x728xf32>
    %70 = arith.maximumf %68, %69 : vector<16x728xf32>
    %71 = vector.extract_strided_slice %70 {offsets = [0, 0], sizes = [16, 699], strides = [1, 1]} : vector<16x728xf32> to vector<16x699xf32>
    %72 = vector.extract_strided_slice %70 {offsets = [0, 1], sizes = [16, 699], strides = [1, 1]} : vector<16x728xf32> to vector<16x699xf32>
    %73 = arith.maximumf %71, %72 : vector<16x699xf32>
    %74 = vector.extract_strided_slice %70 {offsets = [0, 28], sizes = [16, 699], strides = [1, 1]} : vector<16x728xf32> to vector<16x699xf32>
    %75 = vector.extract_strided_slice %70 {offsets = [0, 29], sizes = [16, 699], strides = [1, 1]} : vector<16x728xf32> to vector<16x699xf32>
    %76 = arith.maximumf %74, %75 : vector<16x699xf32>
    %77 = arith.maximumf %73, %76 : vector<16x699xf32>
    %c0_15 = arith.constant 0 : index
    %c0_16 = arith.constant 0 : index
    %78 = vector.load %arg4[%c0_15, %c0_16] : memref<699x171xf32, #tpu.memory_space<vmem>>, vector<699x171xf32>
    %cst_17 = arith.constant dense<0.000000e+00> : vector<16x171xf32>
    %79 = tpu.matmul %77, %78, %cst_17 {dimension_numbers = #tpu.dot_dimension_numbers<[1], [0], [0], [1], [0, 0, 1, 1], [], []>} : vector<16x699xf32>, vector<699x171xf32>, vector<16x171xf32> -> vector<16x171xf32>
    %c0_18 = arith.constant 0 : index
    %c0_19 = arith.constant 0 : index
    %c0_20 = arith.constant 0 : index
    %80 = vector.load %arg5[%c0_18, %c0_19, %c0_20] : memref<1x16x171xf32, #tpu.memory_space<vmem>>, vector<1x16x171xf32>
    %81 = vector.shape_cast %80 : vector<1x16x171xf32> to vector<16x171xf32>
    %82 = vector.shape_cast %79 : vector<16x171xf32> to vector<1x16x171xf32>
    tpu.vector_store %arg5[%c0_18, %c0_19, %c0_20], %82 {strides = array<i32>} : memref<1x16x171xf32, #tpu.memory_space<vmem>>, vector<1x16x171xf32>,
    return
  }
  func.func @transform_0(%arg0: i32) -> (i32, i32, i32) {
    %c0_i32 = arith.constant 0 : i32
    %c0_i32_0 = arith.constant 0 : i32
    %c0_i32_1 = arith.constant 0 : i32
    return %arg0, %c0_i32, %c0_i32_0 : i32, i32, i32
  }
  func.func @transform_1(%arg0: i32) -> (i32, i32) {
    %c0_i32 = arith.constant 0 : i32
    %c0_i32_0 = arith.constant 0 : i32
    %c0_i32_1 = arith.constant 0 : i32
    return %c0_i32, %c0_i32_0 : i32, i32
  }
  func.func @transform_2(%arg0: i32) -> (i32, i32) {
    %c0_i32 = arith.constant 0 : i32
    %c0_i32_0 = arith.constant 0 : i32
    %c0_i32_1 = arith.constant 0 : i32
    return %c0_i32, %c0_i32_0 : i32, i32
  }
  func.func @transform_3(%arg0: i32) -> (i32, i32) {
    %c0_i32 = arith.constant 0 : i32
    %c0_i32_0 = arith.constant 0 : i32
    %c0_i32_1 = arith.constant 0 : i32
    return %c0_i32, %c0_i32_0 : i32, i32
  }
  func.func @transform_4(%arg0: i32) -> (i32, i32, i32) {
    %c0_i32 = arith.constant 0 : i32
    %c0_i32_0 = arith.constant 0 : i32
    %c0_i32_1 = arith.constant 0 : i32
    return %arg0, %c0_i32, %c0_i32_0 : i32, i32, i32
  }
}

module attributes {stable_mosaic.version = 11 : i64} {
  func.func @_conv_relu_pool_kernel(%arg0: i32, %arg1: memref<1x16x171xf32, #tpu.memory_space<vmem>>, %arg2: memref<32x144xbf16, #tpu.memory_space<vmem>>, %arg3: memref<32x1xf32, #tpu.memory_space<vmem>>, %arg4: memref<129x25xf32, #tpu.memory_space<vmem>>, %arg5: memref<1x32x25xf32, #tpu.memory_space<vmem>>) attributes {dimension_semantics = [#tpu.dimension_semantics<parallel>], iteration_bounds = array<i64: 2>, scalar_prefetch = 0 : i64, scratch_operands = 0 : i64, tpu.core_type = #tpu.core_type<tc>, window_params = [{transform_indices = @transform_0, window_bounds = array<i64: 1, 16, 171>}, {pipeline_mode = #tpu.pipeline_mode<synchronous>, transform_indices = @transform_1, window_bounds = array<i64: 32, 144>}, {pipeline_mode = #tpu.pipeline_mode<synchronous>, transform_indices = @transform_2, window_bounds = array<i64: 32, 1>}, {pipeline_mode = #tpu.pipeline_mode<synchronous>, transform_indices = @transform_3, window_bounds = array<i64: 129, 25>}, {transform_indices = @transform_4, window_bounds = array<i64: 1, 32, 25>}]} {
    %c0 = arith.constant 0 : index
    %c0_0 = arith.constant 0 : index
    %c0_1 = arith.constant 0 : index
    %0 = vector.load %arg1[%c0, %c0_0, %c0_1] : memref<1x16x171xf32, #tpu.memory_space<vmem>>, vector<1x16x171xf32>
    %1 = vector.shape_cast %0 : vector<1x16x171xf32> to vector<16x171xf32>
    %cst = arith.constant 0.000000e+00 : f32
    %2 = vector.broadcast %cst : f32 to vector<32x143xf32>
    %3 = vector.extract_strided_slice %1 {offsets = [0, 0], sizes = [16, 143], strides = [1, 1]} : vector<16x171xf32> to vector<16x143xf32>
    %c0_2 = arith.constant 0 : index
    %c0_3 = arith.constant 0 : index
    %4 = vector.load %arg2[%c0_2, %c0_3] : memref<32x144xbf16, #tpu.memory_space<vmem>>, vector<32x16xbf16>
    %5 = arith.truncf %3 : vector<16x143xf32> to vector<16x143xbf16>
    %cst_4 = arith.constant dense<0.000000e+00> : vector<32x143xf32>
    %6 = tpu.matmul %4, %5, %cst_4 {dimension_numbers = #tpu.dot_dimension_numbers<[1], [0], [0], [1], [0, 0, 1, 1], [], []>} : vector<32x16xbf16>, vector<16x143xbf16>, vector<32x143xf32> -> vector<32x143xf32>
    %7 = arith.addf %2, %6 : vector<32x143xf32>
    %8 = vector.extract_strided_slice %1 {offsets = [0, 1], sizes = [16, 143], strides = [1, 1]} : vector<16x171xf32> to vector<16x143xf32>
    %c0_5 = arith.constant 0 : index
    %c16 = arith.constant 16 : index
    %9 = vector.load %arg2[%c0_5, %c16] : memref<32x144xbf16, #tpu.memory_space<vmem>>, vector<32x16xbf16>
    %10 = arith.truncf %8 : vector<16x143xf32> to vector<16x143xbf16>
    %cst_6 = arith.constant dense<0.000000e+00> : vector<32x143xf32>
    %11 = tpu.matmul %9, %10, %cst_6 {dimension_numbers = #tpu.dot_dimension_numbers<[1], [0], [0], [1], [0, 0, 1, 1], [], []>} : vector<32x16xbf16>, vector<16x143xbf16>, vector<32x143xf32> -> vector<32x143xf32>
    %12 = arith.addf %7, %11 : vector<32x143xf32>
    %13 = vector.extract_strided_slice %1 {offsets = [0, 2], sizes = [16, 143], strides = [1, 1]} : vector<16x171xf32> to vector<16x143xf32>
    %c0_7 = arith.constant 0 : index
    %c32 = arith.constant 32 : index
    %14 = vector.load %arg2[%c0_7, %c32] : memref<32x144xbf16, #tpu.memory_space<vmem>>, vector<32x16xbf16>
    %15 = arith.truncf %13 : vector<16x143xf32> to vector<16x143xbf16>
    %cst_8 = arith.constant dense<0.000000e+00> : vector<32x143xf32>
    %16 = tpu.matmul %14, %15, %cst_8 {dimension_numbers = #tpu.dot_dimension_numbers<[1], [0], [0], [1], [0, 0, 1, 1], [], []>} : vector<32x16xbf16>, vector<16x143xbf16>, vector<32x143xf32> -> vector<32x143xf32>
    %17 = arith.addf %12, %16 : vector<32x143xf32>
    %18 = vector.extract_strided_slice %1 {offsets = [0, 13], sizes = [16, 143], strides = [1, 1]} : vector<16x171xf32> to vector<16x143xf32>
    %c0_9 = arith.constant 0 : index
    %c48 = arith.constant 48 : index
    %19 = vector.load %arg2[%c0_9, %c48] : memref<32x144xbf16, #tpu.memory_space<vmem>>, vector<32x16xbf16>
    %20 = arith.truncf %18 : vector<16x143xf32> to vector<16x143xbf16>
    %cst_10 = arith.constant dense<0.000000e+00> : vector<32x143xf32>
    %21 = tpu.matmul %19, %20, %cst_10 {dimension_numbers = #tpu.dot_dimension_numbers<[1], [0], [0], [1], [0, 0, 1, 1], [], []>} : vector<32x16xbf16>, vector<16x143xbf16>, vector<32x143xf32> -> vector<32x143xf32>
    %22 = arith.addf %17, %21 : vector<32x143xf32>
    %23 = vector.extract_strided_slice %1 {offsets = [0, 14], sizes = [16, 143], strides = [1, 1]} : vector<16x171xf32> to vector<16x143xf32>
    %c0_11 = arith.constant 0 : index
    %c64 = arith.constant 64 : index
    %24 = vector.load %arg2[%c0_11, %c64] : memref<32x144xbf16, #tpu.memory_space<vmem>>, vector<32x16xbf16>
    %25 = arith.truncf %23 : vector<16x143xf32> to vector<16x143xbf16>
    %cst_12 = arith.constant dense<0.000000e+00> : vector<32x143xf32>
    %26 = tpu.matmul %24, %25, %cst_12 {dimension_numbers = #tpu.dot_dimension_numbers<[1], [0], [0], [1], [0, 0, 1, 1], [], []>} : vector<32x16xbf16>, vector<16x143xbf16>, vector<32x143xf32> -> vector<32x143xf32>
    %27 = arith.addf %22, %26 : vector<32x143xf32>
    %28 = vector.extract_strided_slice %1 {offsets = [0, 15], sizes = [16, 143], strides = [1, 1]} : vector<16x171xf32> to vector<16x143xf32>
    %c0_13 = arith.constant 0 : index
    %c80 = arith.constant 80 : index
    %29 = vector.load %arg2[%c0_13, %c80] : memref<32x144xbf16, #tpu.memory_space<vmem>>, vector<32x16xbf16>
    %30 = arith.truncf %28 : vector<16x143xf32> to vector<16x143xbf16>
    %cst_14 = arith.constant dense<0.000000e+00> : vector<32x143xf32>
    %31 = tpu.matmul %29, %30, %cst_14 {dimension_numbers = #tpu.dot_dimension_numbers<[1], [0], [0], [1], [0, 0, 1, 1], [], []>} : vector<32x16xbf16>, vector<16x143xbf16>, vector<32x143xf32> -> vector<32x143xf32>
    %32 = arith.addf %27, %31 : vector<32x143xf32>
    %33 = vector.extract_strided_slice %1 {offsets = [0, 26], sizes = [16, 143], strides = [1, 1]} : vector<16x171xf32> to vector<16x143xf32>
    %c0_15 = arith.constant 0 : index
    %c96 = arith.constant 96 : index
    %34 = vector.load %arg2[%c0_15, %c96] : memref<32x144xbf16, #tpu.memory_space<vmem>>, vector<32x16xbf16>
    %35 = arith.truncf %33 : vector<16x143xf32> to vector<16x143xbf16>
    %cst_16 = arith.constant dense<0.000000e+00> : vector<32x143xf32>
    %36 = tpu.matmul %34, %35, %cst_16 {dimension_numbers = #tpu.dot_dimension_numbers<[1], [0], [0], [1], [0, 0, 1, 1], [], []>} : vector<32x16xbf16>, vector<16x143xbf16>, vector<32x143xf32> -> vector<32x143xf32>
    %37 = arith.addf %32, %36 : vector<32x143xf32>
    %38 = vector.extract_strided_slice %1 {offsets = [0, 27], sizes = [16, 143], strides = [1, 1]} : vector<16x171xf32> to vector<16x143xf32>
    %c0_17 = arith.constant 0 : index
    %c112 = arith.constant 112 : index
    %39 = vector.load %arg2[%c0_17, %c112] : memref<32x144xbf16, #tpu.memory_space<vmem>>, vector<32x16xbf16>
    %40 = arith.truncf %38 : vector<16x143xf32> to vector<16x143xbf16>
    %cst_18 = arith.constant dense<0.000000e+00> : vector<32x143xf32>
    %41 = tpu.matmul %39, %40, %cst_18 {dimension_numbers = #tpu.dot_dimension_numbers<[1], [0], [0], [1], [0, 0, 1, 1], [], []>} : vector<32x16xbf16>, vector<16x143xbf16>, vector<32x143xf32> -> vector<32x143xf32>
    %42 = arith.addf %37, %41 : vector<32x143xf32>
    %43 = vector.extract_strided_slice %1 {offsets = [0, 28], sizes = [16, 143], strides = [1, 1]} : vector<16x171xf32> to vector<16x143xf32>
    %c0_19 = arith.constant 0 : index
    %c128 = arith.constant 128 : index
    %44 = vector.load %arg2[%c0_19, %c128] : memref<32x144xbf16, #tpu.memory_space<vmem>>, vector<32x16xbf16>
    %45 = arith.truncf %43 : vector<16x143xf32> to vector<16x143xbf16>
    %cst_20 = arith.constant dense<0.000000e+00> : vector<32x143xf32>
    %46 = tpu.matmul %44, %45, %cst_20 {dimension_numbers = #tpu.dot_dimension_numbers<[1], [0], [0], [1], [0, 0, 1, 1], [], []>} : vector<32x16xbf16>, vector<16x143xbf16>, vector<32x143xf32> -> vector<32x143xf32>
    %47 = arith.addf %42, %46 : vector<32x143xf32>
    %c0_21 = arith.constant 0 : index
    %c0_22 = arith.constant 0 : index
    %48 = vector.load %arg3[%c0_21, %c0_22] : memref<32x1xf32, #tpu.memory_space<vmem>>, vector<32x1xf32>
    %49 = vector.broadcast %48 : vector<32x1xf32> to vector<32x143xf32>
    %50 = arith.addf %47, %49 : vector<32x143xf32>
    %cst_23 = arith.constant 0.000000e+00 : f32
    %51 = vector.broadcast %cst_23 : f32 to vector<32x143xf32>
    %52 = arith.maximumf %50, %51 : vector<32x143xf32>
    %53 = vector.extract_strided_slice %52 {offsets = [0, 0], sizes = [32, 129], strides = [1, 1]} : vector<32x143xf32> to vector<32x129xf32>
    %54 = vector.extract_strided_slice %52 {offsets = [0, 1], sizes = [32, 129], strides = [1, 1]} : vector<32x143xf32> to vector<32x129xf32>
    %55 = arith.maximumf %53, %54 : vector<32x129xf32>
    %56 = vector.extract_strided_slice %52 {offsets = [0, 13], sizes = [32, 129], strides = [1, 1]} : vector<32x143xf32> to vector<32x129xf32>
    %57 = vector.extract_strided_slice %52 {offsets = [0, 14], sizes = [32, 129], strides = [1, 1]} : vector<32x143xf32> to vector<32x129xf32>
    %58 = arith.maximumf %56, %57 : vector<32x129xf32>
    %59 = arith.maximumf %55, %58 : vector<32x129xf32>
    %c0_24 = arith.constant 0 : index
    %c0_25 = arith.constant 0 : index
    %60 = vector.load %arg4[%c0_24, %c0_25] : memref<129x25xf32, #tpu.memory_space<vmem>>, vector<129x25xf32>
    %cst_26 = arith.constant dense<0.000000e+00> : vector<32x25xf32>
    %61 = tpu.matmul %59, %60, %cst_26 {dimension_numbers = #tpu.dot_dimension_numbers<[1], [0], [0], [1], [0, 0, 1, 1], [], []>} : vector<32x129xf32>, vector<129x25xf32>, vector<32x25xf32> -> vector<32x25xf32>
    %c0_27 = arith.constant 0 : index
    %c0_28 = arith.constant 0 : index
    %c0_29 = arith.constant 0 : index
    %62 = vector.load %arg5[%c0_27, %c0_28, %c0_29] : memref<1x32x25xf32, #tpu.memory_space<vmem>>, vector<1x32x25xf32>
    %63 = vector.shape_cast %62 : vector<1x32x25xf32> to vector<32x25xf32>
    %64 = vector.shape_cast %61 : vector<32x25xf32> to vector<1x32x25xf32>
    tpu.vector_store %arg5[%c0_27, %c0_28, %c0_29], %64 {strides = array<i32>} : memref<1x32x25xf32, #tpu.memory_space<vmem>>, vector<1x32x25xf32>,
    return
  }
  func.func @transform_0(%arg0: i32) -> (i32, i32, i32) {
    %c0_i32 = arith.constant 0 : i32
    %c0_i32_0 = arith.constant 0 : i32
    %c0_i32_1 = arith.constant 0 : i32
    return %arg0, %c0_i32, %c0_i32_0 : i32, i32, i32
  }
  func.func @transform_1(%arg0: i32) -> (i32, i32) {
    %c0_i32 = arith.constant 0 : i32
    %c0_i32_0 = arith.constant 0 : i32
    %c0_i32_1 = arith.constant 0 : i32
    return %c0_i32, %c0_i32_0 : i32, i32
  }
  func.func @transform_2(%arg0: i32) -> (i32, i32) {
    %c0_i32 = arith.constant 0 : i32
    %c0_i32_0 = arith.constant 0 : i32
    %c0_i32_1 = arith.constant 0 : i32
    return %c0_i32, %c0_i32_0 : i32, i32
  }
  func.func @transform_3(%arg0: i32) -> (i32, i32) {
    %c0_i32 = arith.constant 0 : i32
    %c0_i32_0 = arith.constant 0 : i32
    %c0_i32_1 = arith.constant 0 : i32
    return %c0_i32, %c0_i32_0 : i32, i32
  }
  func.func @transform_4(%arg0: i32) -> (i32, i32, i32) {
    %c0_i32 = arith.constant 0 : i32
    %c0_i32_0 = arith.constant 0 : i32
    %c0_i32_1 = arith.constant 0 : i32
    return %arg0, %c0_i32, %c0_i32_0 : i32, i32, i32
  }
}

module attributes {stable_mosaic.version = 11 : i64} {
  func.func @_mlp_head_kernel(%arg0: i32, %arg1: memref<8x800xf32, #tpu.memory_space<vmem>>, %arg2: memref<800x128xbf16, #tpu.memory_space<vmem>>, %arg3: memref<1x128xf32, #tpu.memory_space<vmem>>, %arg4: memref<128x10xbf16, #tpu.memory_space<vmem>>, %arg5: memref<1x10xf32, #tpu.memory_space<vmem>>, %arg6: memref<8x10xf32, #tpu.memory_space<vmem>>) attributes {dimension_semantics = [#tpu.dimension_semantics<parallel>], iteration_bounds = array<i64: 1>, scalar_prefetch = 0 : i64, scratch_operands = 0 : i64, tpu.core_type = #tpu.core_type<tc>, window_params = [{transform_indices = @transform_0, window_bounds = array<i64: 8, 800>}, {pipeline_mode = #tpu.pipeline_mode<synchronous>, transform_indices = @transform_1, window_bounds = array<i64: 800, 128>}, {pipeline_mode = #tpu.pipeline_mode<synchronous>, transform_indices = @transform_2, window_bounds = array<i64: 1, 128>}, {pipeline_mode = #tpu.pipeline_mode<synchronous>, transform_indices = @transform_3, window_bounds = array<i64: 128, 10>}, {pipeline_mode = #tpu.pipeline_mode<synchronous>, transform_indices = @transform_4, window_bounds = array<i64: 1, 10>}, {transform_indices = @transform_5, window_bounds = array<i64: 8, 10>}]} {
    %c0 = arith.constant 0 : index
    %c0_0 = arith.constant 0 : index
    %0 = vector.load %arg1[%c0, %c0_0] : memref<8x800xf32, #tpu.memory_space<vmem>>, vector<8x800xf32>
    %1 = arith.truncf %0 : vector<8x800xf32> to vector<8x800xbf16>
    %c0_1 = arith.constant 0 : index
    %c0_2 = arith.constant 0 : index
    %2 = vector.load %arg2[%c0_1, %c0_2] : memref<800x128xbf16, #tpu.memory_space<vmem>>, vector<800x128xbf16>
    %cst = arith.constant dense<0.000000e+00> : vector<8x128xf32>
    %3 = tpu.matmul %1, %2, %cst {dimension_numbers = #tpu.dot_dimension_numbers<[1], [0], [0], [1], [0, 0, 1, 1], [], []>} : vector<8x800xbf16>, vector<800x128xbf16>, vector<8x128xf32> -> vector<8x128xf32>
    %c0_3 = arith.constant 0 : index
    %c0_4 = arith.constant 0 : index
    %4 = vector.load %arg3[%c0_3, %c0_4] : memref<1x128xf32, #tpu.memory_space<vmem>>, vector<1x128xf32>
    %5 = vector.broadcast %4 : vector<1x128xf32> to vector<8x128xf32>
    %6 = arith.addf %3, %5 : vector<8x128xf32>
    %cst_5 = arith.constant 0.000000e+00 : f32
    %7 = vector.broadcast %cst_5 : f32 to vector<8x128xf32>
    %8 = arith.maximumf %6, %7 : vector<8x128xf32>
    %9 = arith.truncf %8 : vector<8x128xf32> to vector<8x128xbf16>
    %c0_6 = arith.constant 0 : index
    %c0_7 = arith.constant 0 : index
    %10 = vector.load %arg4[%c0_6, %c0_7] : memref<128x10xbf16, #tpu.memory_space<vmem>>, vector<128x10xbf16>
    %cst_8 = arith.constant dense<0.000000e+00> : vector<8x10xf32>
    %11 = tpu.matmul %9, %10, %cst_8 {dimension_numbers = #tpu.dot_dimension_numbers<[1], [0], [0], [1], [0, 0, 1, 1], [], []>} : vector<8x128xbf16>, vector<128x10xbf16>, vector<8x10xf32> -> vector<8x10xf32>
    %c0_9 = arith.constant 0 : index
    %c0_10 = arith.constant 0 : index
    %12 = vector.load %arg5[%c0_9, %c0_10] : memref<1x10xf32, #tpu.memory_space<vmem>>, vector<1x10xf32>
    %13 = vector.broadcast %12 : vector<1x10xf32> to vector<8x10xf32>
    %14 = arith.addf %11, %13 : vector<8x10xf32>
    %cst_11 = arith.constant 0.000000e+00 : f32
    %15 = vector.broadcast %cst_11 : f32 to vector<8x10xf32>
    %16 = arith.maximumf %14, %15 : vector<8x10xf32>
    %cst_12 = arith.constant dense<0xFF800000> : vector<8xf32>
    %17 = vector.multi_reduction <maximumf>, %16, %cst_12 [1] : vector<8x10xf32> to vector<8xf32>
    %18 = vector.shape_cast %17 : vector<8xf32> to vector<8x1xf32>
    %19 = vector.broadcast %18 : vector<8x1xf32> to vector<8x10xf32>
    %20 = arith.subf %16, %19 : vector<8x10xf32>
    %21 = math.exp %20 : vector<8x10xf32>
    %cst_13 = arith.constant dense<0.000000e+00> : vector<8xf32>
    %22 = vector.multi_reduction <add>, %21, %cst_13 [1] : vector<8x10xf32> to vector<8xf32>
    %23 = vector.shape_cast %22 : vector<8xf32> to vector<8x1xf32>
    %24 = math.log %23 : vector<8x1xf32>
    %25 = arith.addf %18, %24 : vector<8x1xf32>
    %26 = vector.broadcast %25 : vector<8x1xf32> to vector<8x10xf32>
    %27 = arith.subf %16, %26 : vector<8x10xf32>
    %c0_14 = arith.constant 0 : index
    %c0_15 = arith.constant 0 : index
    %28 = vector.load %arg6[%c0_14, %c0_15] : memref<8x10xf32, #tpu.memory_space<vmem>>, vector<8x10xf32>
    tpu.vector_store %arg6[%c0_14, %c0_15], %27 {strides = array<i32>} : memref<8x10xf32, #tpu.memory_space<vmem>>, vector<8x10xf32>,
    return
  }
  func.func @transform_0(%arg0: i32) -> (i32, i32) {
    %c0_i32 = arith.constant 0 : i32
    %c0_i32_0 = arith.constant 0 : i32
    return %arg0, %c0_i32 : i32, i32
  }
  func.func @transform_1(%arg0: i32) -> (i32, i32) {
    %c0_i32 = arith.constant 0 : i32
    %c0_i32_0 = arith.constant 0 : i32
    %c0_i32_1 = arith.constant 0 : i32
    return %c0_i32, %c0_i32_0 : i32, i32
  }
  func.func @transform_2(%arg0: i32) -> (i32, i32) {
    %c0_i32 = arith.constant 0 : i32
    %c0_i32_0 = arith.constant 0 : i32
    %c0_i32_1 = arith.constant 0 : i32
    return %c0_i32, %c0_i32_0 : i32, i32
  }
  func.func @transform_3(%arg0: i32) -> (i32, i32) {
    %c0_i32 = arith.constant 0 : i32
    %c0_i32_0 = arith.constant 0 : i32
    %c0_i32_1 = arith.constant 0 : i32
    return %c0_i32, %c0_i32_0 : i32, i32
  }
  func.func @transform_4(%arg0: i32) -> (i32, i32) {
    %c0_i32 = arith.constant 0 : i32
    %c0_i32_0 = arith.constant 0 : i32
    %c0_i32_1 = arith.constant 0 : i32
    return %c0_i32, %c0_i32_0 : i32, i32
  }
  func.func @transform_5(%arg0: i32) -> (i32, i32) {
    %c0_i32 = arith.constant 0 : i32
    %c0_i32_0 = arith.constant 0 : i32
    return %arg0, %c0_i32 : i32, i32
  }
}

</mosaic_0001>

<llo_original>
// kernel: mnist_cnn_forward.3
$region0: #{mnist_cnn_forward.3}
  #allocation0 [shape = 'u32[]', space=smem, size = 0x4, offset = 0x4, fixed_abs, tag = 'smem constant byte address 0x4 - core index']
  #allocation1 [shape = 'u32[144,128]{1,0:T(1,128)}', space=vmem, size = 0x12000, scoped, tag = 'internal scratch']
  %s0 = inlined_call_operand.vmem [shape: f32[2,1,786], index: 0, kind: input, shape index: {}]
  %s1 = inlined_call_operand.vmem [shape: bf16[16,9], index: 1, kind: input, shape index: {}]
  %s2 = inlined_call_operand.vmem [shape: f32[16,1], index: 2, kind: input, shape index: {}]
  %s3 = inlined_call_operand.vmem [shape: f32[699,171], index: 3, kind: input, shape index: {}]
  %s4 = inlined_call_operand.vmem [shape: f32[2,16,171], index: 4, kind: output, shape index: {}]
  %s5 = sld [smem:[#allocation0]]
  $region49: #{mnist_cnn_forward.3} parent=0
    _
  %s7 = ssub.s32 1, %s5
  %s8 = scalar_select 0, %s7, %s5
  loop: start=0, step=1, limit=4
  $region2: #{mnist_cnn_forward.3} parent=0 // loop_pre_header
    _
  $region3: #{mnist_cnn_forward.3} parent=0 // loop_header
    %s10 = sphi 0, %s14
    %p11 = scmp.ge.s32.totalorder %s10, 4
    %s20 = sphi 0, %s22
    %s23 = sphi 0, %s20
    %s24 = sphi 0, %s23
    %s40 = sphi 0, %s24
    %s44 = sphi 0, %s44
    %s46 = sphi 0, %s44
    %s47 = sphi 0, %s46
    %s61 = sphi 0, %s47
    %s65 = sphi 0, %s65
    %s67 = sphi 0, %s65
    %s68 = sphi 0, %s67
    %s82 = sphi 0, %s68
    %s86 = sphi 0, %s86
    %s88 = sphi 0, %s86
    %s89 = sphi 0, %s88
    %s103 = sphi 0, %s89
    %s109 = sphi 0, %s111
    %s112 = sphi 0, %s109
    %s113 = sphi 0, %s112
    %s129 = sphi 0, %s113
  $region4: #{mnist_cnn_forward.3} parent=0 // loop_header_branch
    %13 = sbr.rel (%p11) target = $region8
  $region5: #{mnist_cnn_forward.3} parent=0 // loop_body
    %s15 = ssub.s32 %s10, 1
    %s16 = ssub.s32 %s10, 2
    %s17 = sadd.s32 %s10, 1
    %s18 = ssub.s32 %s10, %s17
    %p19 = scmp.eq.s32.totalorder %s18, 0
    %s21 = sadd.s32 %s20, 1
    %s22 = scalar_select %p19, %s20, %s21
    %p25 = pneg %p19
    %p26 = scmp.eq.s32.totalorder %s10, 1
    %p27 = por %p25, %p26
    %p28 = scmp.ne.s32.totalorder %s20, %s23
    %p29 = scmp.eq.s32.totalorder %s10, 0
    %p30 = por %p28, %p29
    %p31 = scmp.ne.s32.totalorder %s20, %s23
    %p32 = scmp.eq.s32.totalorder %s15, 1
    %p33 = por %p31, %p32
    %p34 = scmp.ne.s32.totalorder %s23, %s24
    %p35 = scmp.eq.s32.totalorder %s15, 0
    %p36 = por %p34, %p35
    %p37 = scmp.ne.s32.totalorder %s23, %s24
    %p38 = scmp.eq.s32.totalorder %s16, 1
    %p39 = por %p37, %p38
    %p41 = scmp.ne.s32.totalorder %s24, %s40
    %p42 = scmp.eq.s32.totalorder %s16, 0
    %p43 = por %p41, %p42
    %s45 = sadd.s32 %s44, 1
    %p48 = scmp.eq.s32.totalorder %s10, 1
    %p49 = scmp.ne.s32.totalorder %s44, %s46
    %p50 = scmp.eq.s32.totalorder %s10, 0
    %p51 = por %p49, %p50
    %p52 = scmp.ne.s32.totalorder %s44, %s46
    %p53 = scmp.eq.s32.totalorder %s15, 1
    %p54 = por %p52, %p53
    %p55 = scmp.ne.s32.totalorder %s46, %s47
    %p56 = scmp.eq.s32.totalorder %s15, 0
    %p57 = por %p55, %p56
    %p58 = scmp.ne.s32.totalorder %s46, %s47
    %p59 = scmp.eq.s32.totalorder %s16, 1
    %p60 = por %p58, %p59
    %p62 = scmp.ne.s32.totalorder %s47, %s61
    %p63 = scmp.eq.s32.totalorder %s16, 0
    %p64 = por %p62, %p63
    %s66 = sadd.s32 %s65, 1
    %p69 = scmp.eq.s32.totalorder %s10, 1
    %p70 = scmp.ne.s32.totalorder %s65, %s67
    %p71 = scmp.eq.s32.totalorder %s10, 0
    %p72 = por %p70, %p71
    %p73 = scmp.ne.s32.totalorder %s65, %s67
    %p74 = scmp.eq.s32.totalorder %s15, 1
    %p75 = por %p73, %p74
    %p76 = scmp.ne.s32.totalorder %s67, %s68
    %p77 = scmp.eq.s32.totalorder %s15, 0
    %p78 = por %p76, %p77
    %p79 = scmp.ne.s32.totalorder %s67, %s68
    %p80 = scmp.eq.s32.totalorder %s16, 1
    %p81 = por %p79, %p80
    %p83 = scmp.ne.s32.totalorder %s68, %s82
    %p84 = scmp.eq.s32.totalorder %s16, 0
    %p85 = por %p83, %p84
    %s87 = sadd.s32 %s86, 1
    %p90 = scmp.eq.s32.totalorder %s10, 1
    %p91 = scmp.ne.s32.totalorder %s86, %s88
    %p92 = scmp.eq.s32.totalorder %s10, 0
    %p93 = por %p91, %p92
    %p94 = scmp.ne.s32.totalorder %s86, %s88
    %p95 = scmp.eq.s32.totalorder %s15, 1
    %p96 = por %p94, %p95
    %p97 = scmp.ne.s32.totalorder %s88, %s89
    %p98 = scmp.eq.s32.totalorder %s15, 0
    %p99 = por %p97, %p98
    %p100 = scmp.ne.s32.totalorder %s88, %s89
    %p101 = scmp.eq.s32.totalorder %s16, 1
    %p102 = por %p100, %p101
    %p104 = scmp.ne.s32.totalorder %s89, %s103
    %p105 = scmp.eq.s32.totalorder %s16, 0
    %p106 = por %p104, %p105
    %s107 = ssub.s32 %s10, %s17
    %p108 = scmp.eq.s32.totalorder %s107, 0
    %s110 = sadd.s32 %s109, 1
    %s111 = scalar_select %p108, %s109, %s110
    %p114 = pneg %p108
    %p115 = scmp.eq.s32.totalorder %s10, 1
    %p116 = por %p114, %p115
    %p117 = scmp.ne.s32.totalorder %s109, %s112
    %p118 = scmp.eq.s32.totalorder %s10, 0
    %p119 = por %p117, %p118
    %p120 = scmp.ne.s32.totalorder %s109, %s112
    %p121 = scmp.eq.s32.totalorder %s15, 1
    %p122 = por %p120, %p121
    %p123 = scmp.ne.s32.totalorder %s112, %s113
    %p124 = scmp.eq.s32.totalorder %s15, 0
    %p125 = por %p123, %p124
    %p126 = scmp.ne.s32.totalorder %s112, %s113
    %p127 = scmp.eq.s32.totalorder %s16, 1
    %p128 = por %p126, %p127
    %p130 = scmp.ne.s32.totalorder %s113, %s129
    %p131 = scmp.eq.s32.totalorder %s16, 0
    %p132 = por %p130, %p131
    %p133 = scmp.le.s32.totalorder 1, %s10
    %p134 = scmp.lt.s32.totalorder %s10, 3
    %p135 = pnand %p133, %p134
    %p136 = pneg %p135
    // Predicated region
    $region9: #{mnist_cnn_forward.3} parent=5 // pred_check
      _
    $region10: #{mnist_cnn_forward.3} parent=5 // pred_check_branch
      %138 = sbr.rel (%p135) target = $region12
    $region11: #{mnist_cnn_forward.3} parent=5 // pred_region
      %s139 = ssub.s32 %s10, 1
      // Predicated region
      $region13: #{mnist_cnn_forward.3} parent=11 // pred_check
        %p140 = pneg %p57
      $region14: #{mnist_cnn_forward.3} parent=11 // pred_check_branch
        %142 = sbr.rel (%p140) target = $region16
      $region15: #{mnist_cnn_forward.3} parent=11 // pred_region
        _
      $region16: #{mnist_cnn_forward.3} parent=11 // pred_fallthru
        _
      // Predicated region
      $region17: #{mnist_cnn_forward.3} parent=11 // pred_check
        %p143 = pneg %p78
      $region18: #{mnist_cnn_forward.3} parent=11 // pred_check_branch
        %145 = sbr.rel (%p143) target = $region20
      $region19: #{mnist_cnn_forward.3} parent=11 // pred_region
        _
      $region20: #{mnist_cnn_forward.3} parent=11 // pred_fallthru
        _
      // Predicated region
      $region21: #{mnist_cnn_forward.3} parent=11 // pred_check
        %p146 = pneg %p99
      $region22: #{mnist_cnn_forward.3} parent=11 // pred_check_branch
        %148 = sbr.rel (%p146) target = $region24
      $region23: #{mnist_cnn_forward.3} parent=11 // pred_region
        _
      $region24: #{mnist_cnn_forward.3} parent=11 // pred_fallthru
        _
    $region12: #{mnist_cnn_forward.3} parent=5 // pred_fallthru
      _
    %p149 = scmp.lt.s32.totalorder %s10, 2
    // Predicated region
    $region25: #{mnist_cnn_forward.3} parent=5 // pred_check
      %p150 = pneg %p149
    $region26: #{mnist_cnn_forward.3} parent=5 // pred_check_branch
      %152 = sbr.rel (%p150) target = $region28
    $region27: #{mnist_cnn_forward.3} parent=5 // pred_region
      // Predicated region
      $region29: #{mnist_cnn_forward.3} parent=27 // pred_check
        %p153 = pneg %p30
      $region30: #{mnist_cnn_forward.3} parent=27 // pred_check_branch
        %155 = sbr.rel (%p153) target = $region32
      $region31: #{mnist_cnn_forward.3} parent=27 // pred_region
        %p156 = scmp.lt.s32.totalorder %s10, 1
        %s157 = scalar_select %p156, %s10, 1
        %s158 = smul.addr %s157, 7
        %s159 = scalar_lea.vmem %s0, %s158
      $region32: #{mnist_cnn_forward.3} parent=27 // pred_fallthru
        _
    $region28: #{mnist_cnn_forward.3} parent=5 // pred_fallthru
      _
    %p160 = scmp.le.s32.totalorder 1, %s10
    %p161 = scmp.lt.s32.totalorder %s10, 3
    %p162 = pnand %p160, %p161
    %p163 = pneg %p162
    // Predicated region
    $region33: #{mnist_cnn_forward.3} parent=5 // pred_check
      _
    $region34: #{mnist_cnn_forward.3} parent=5 // pred_check_branch
      %165 = sbr.rel (%p162) target = $region36
    $region35: #{mnist_cnn_forward.3} parent=5 // pred_region
      %s166 = ssub.s32 %s10, 1
      %p167 = scmp.lt.s32.totalorder %s15, 1
      %s168 = scalar_select %p167, %s15, 1
      %s169 = smul.addr %s168, 7
      %s170 = scalar_lea.vmem %s0, %s169
      %p171 = pneg %p36
      %p172 = pneg %p33
      %p173 = pneg %p57
      %p174 = pneg %p54
      %p175 = pneg %p78
      %p176 = pneg %p75
      %p177 = pneg %p99
      %p178 = pneg %p96
      %p179 = pneg %p125
      %p180 = pneg %p122
      %p181 = scmp.lt.s32.totalorder %s15, 1
      %s182 = scalar_select %p181, %s15, 1
      %s183 = smul.addr %s182, 4
      %s184 = smul.addr %s183, 8
      %s185 = scalar_lea.vmem %s4, %s184
      %p186 = scmp.lt.s32.totalorder %s15, 1
      %s187 = scalar_select %p186, %s15, 1
      %s188 = smul.addr %s187, 7
      %s189 = scalar_lea.vmem %s0, %s188
      %p190 = scmp.lt.s32.totalorder %s15, 1
      %s191 = scalar_select %p190, %s15, 1
      %s192 = smul.addr %s191, 4
      %s193 = smul.addr %s192, 8
      %s194 = scalar_lea.vmem %s4, %s193
      %v195 = vld [vmem:[%s189] sm:$0x7f]
      %v196 = vld [vmem:[%s1] sm:$0xf]
      %v197 = vld [vmem:[%s1 + $0x4] sm:$0xf]
      %v198 = vunpack.c.l.bf16 %v196
      %v199 = vunpack.c.l.bf16 %v197
      %201 = vset.pattern.permute.xlu0 0
      %202 = vperm.xlu0 %201, %v198
      %v203 = vpop.permute.xlu0 %202
      %206 = vset.pattern.permute.xlu0 0
      %207 = vperm.xlu0 %206, %v199
      %v208 = vpop.permute.xlu0 %207
      %v211 = vlaneseq
      %v212 = vshrl.u32 %v211, 7
      %v213 = vsub.s32 0, %v212
      %v214 = vrot.slane %v195, %v213
      %v215 = vlaneseq
      %v216 = vshrl.u32 %v215, 7
      %v217 = vsub.s32 1, %v216
      %v218 = vrot.slane %v195, %v217
      %v219 = vlaneseq
      %v220 = vshrl.u32 %v219, 7
      %v221 = vsub.s32 2, %v220
      %v222 = vrot.slane %v195, %v221
      %v223 = vlaneseq
      %v224 = vshrl.u32 %v223, 7
      %v225 = vsub.s32 3, %v224
      %v226 = vrot.slane %v195, %v225
      %v227 = vlaneseq
      %v228 = vshrl.u32 %v227, 7
      %v229 = vsub.s32 4, %v228
      %v230 = vrot.slane %v195, %v229
      %v231 = vlaneseq
      %v232 = vshrl.u32 %v231, 7
      %v233 = vsub.s32 5, %v232
      %v234 = vrot.slane %v195, %v233
      %v241 = vmul.f32 %v203, %v214
      %v242 = vmul.f32 %v203, %v218
      %v243 = vmul.f32 %v203, %v222
      %v244 = vmul.f32 %v203, %v226
      %v245 = vmul.f32 %v203, %v230
      %v246 = vmul.f32 %v203, %v234
      %v247 = vmul.f32 %v208, %v214
      %v248 = vmul.f32 %v208, %v218
      %v249 = vmul.f32 %v208, %v222
      %v250 = vmul.f32 %v208, %v226
      %v251 = vmul.f32 %v208, %v230
      %v252 = vmul.f32 %v208, %v234
      %v253 = vadd.f32 %v241, 0.0
      %v254 = vadd.f32 %v242, 0.0
      %v255 = vadd.f32 %v243, 0.0
      %v256 = vadd.f32 %v244, 0.0
      %v257 = vadd.f32 %v245, 0.0
      %v258 = vadd.f32 %v246, 0.0
      %v259 = vadd.f32 %v247, 0.0
      %v260 = vadd.f32 %v248, 0.0
      %v261 = vadd.f32 %v249, 0.0
      %v262 = vadd.f32 %v250, 0.0
      %v263 = vadd.f32 %v251, 0.0
      %v264 = vadd.f32 %v252, 0.0
      %265 = vset.pattern.permute.xlu0 1
      %266 = vperm.xlu0 %265, %v198
      %v267 = vpop.permute.xlu0 %266
      %269 = vset.pattern.permute.xlu0 1
      %270 = vperm.xlu0 %269, %v199
      %v271 = vpop.permute.xlu0 %270
      %v273 = vmul.f32 %v267, %v214
      %v274 = vmul.f32 %v267, %v218
      %v275 = vmul.f32 %v267, %v222
      %v276 = vmul.f32 %v267, %v226
      %v277 = vmul.f32 %v267, %v230
      %v278 = vmul.f32 %v267, %v234
      %v279 = vmul.f32 %v271, %v214
      %v280 = vmul.f32 %v271, %v218
      %v281 = vmul.f32 %v271, %v222
      %v282 = vmul.f32 %v271, %v226
      %v283 = vmul.f32 %v271, %v230
      %v284 = vmul.f32 %v271, %v234
      %297 = vrot.lane.b32.xlu0 %v273, 127
      %v298 = vpop.permute.xlu0 %297
      %299 = vrot.lane.b32.xlu0 %v274, 127
      %v300 = vpop.permute.xlu0 %299
      %301 = vrot.lane.b32.xlu0 %v275, 127
      %v302 = vpop.permute.xlu0 %301
      %303 = vrot.lane.b32.xlu0 %v276, 127
      %v304 = vpop.permute.xlu0 %303
      %305 = vrot.lane.b32.xlu0 %v277, 127
      %v306 = vpop.permute.xlu0 %305
      %307 = vrot.lane.b32.xlu0 %v278, 127
      %v308 = vpop.permute.xlu0 %307
      %309 = vrot.lane.b32.xlu0 %v279, 127
      %v310 = vpop.permute.xlu0 %309
      %311 = vrot.lane.b32.xlu0 %v280, 127
      %v312 = vpop.permute.xlu0 %311
      %313 = vrot.lane.b32.xlu0 %v281, 127
      %v314 = vpop.permute.xlu0 %313
      %315 = vrot.lane.b32.xlu0 %v282, 127
      %v316 = vpop.permute.xlu0 %315
      %317 = vrot.lane.b32.xlu0 %v283, 127
      %v318 = vpop.permute.xlu0 %317
      %319 = vrot.lane.b32.xlu0 %v284, 127
      %v320 = vpop.permute.xlu0 %319
      %vm321 = vcmask 1039360
      %v322 = vsel %vm321, %v298, %v300
      %v323 = vsel %vm321, %v300, %v302
      %v324 = vsel %vm321, %v302, %v304
      %v325 = vsel %vm321, %v304, %v306
      %v326 = vsel %vm321, %v306, %v308
      %v327 = vsel %vm321, %v310, %v312
      %v328 = vsel %vm321, %v312, %v314
      %v329 = vsel %vm321, %v314, %v316
      %v330 = vsel %vm321, %v316, %v318
      %v331 = vsel %vm321, %v318, %v320
      %v344 = vadd.f32 %v253, %v322
      %v345 = vadd.f32 %v254, %v323
      %v346 = vadd.f32 %v255, %v324
      %v347 = vadd.f32 %v256, %v325
      %v348 = vadd.f32 %v257, %v326
      %v349 = vadd.f32 %v258, %v308
      %v350 = vadd.f32 %v259, %v327
      %v351 = vadd.f32 %v260, %v328
      %v352 = vadd.f32 %v261, %v329
      %v353 = vadd.f32 %v262, %v330
      %v354 = vadd.f32 %v263, %v331
      %v355 = vadd.f32 %v264, %v320
      %356 = vset.pattern.permute.xlu0 2
      %357 = vperm.xlu0 %356, %v198
      %v358 = vpop.permute.xlu0 %357
      %360 = vset.pattern.permute.xlu0 2
      %361 = vperm.xlu0 %360, %v199
      %v362 = vpop.permute.xlu0 %361
      %v364 = vmul.f32 %v358, %v214
      %v365 = vmul.f32 %v358, %v218
      %v366 = vmul.f32 %v358, %v222
      %v367 = vmul.f32 %v358, %v226
      %v368 = vmul.f32 %v358, %v230
      %v369 = vmul.f32 %v358, %v234
      %v370 = vmul.f32 %v362, %v214
      %v371 = vmul.f32 %v362, %v218
      %v372 = vmul.f32 %v362, %v222
      %v373 = vmul.f32 %v362, %v226
      %v374 = vmul.f32 %v362, %v230
      %v375 = vmul.f32 %v362, %v234
      %388 = vrot.lane.b32.xlu0 %v364, 126
      %v389 = vpop.permute.xlu0 %388
      %390 = vrot.lane.b32.xlu0 %v365, 126
      %v391 = vpop.permute.xlu0 %390
      %392 = vrot.lane.b32.xlu0 %v366, 126
      %v393 = vpop.permute.xlu0 %392
      %394 = vrot.lane.b32.xlu0 %v367, 126
      %v395 = vpop.permute.xlu0 %394
      %396 = vrot.lane.b32.xlu0 %v368, 126
      %v397 = vpop.permute.xlu0 %396
      %398 = vrot.lane.b32.xlu0 %v369, 126
      %v399 = vpop.permute.xlu0 %398
      %400 = vrot.lane.b32.xlu0 %v370, 126
      %v401 = vpop.permute.xlu0 %400
      %402 = vrot.lane.b32.xlu0 %v371, 126
      %v403 = vpop.permute.xlu0 %402
      %404 = vrot.lane.b32.xlu0 %v372, 126
      %v405 = vpop.permute.xlu0 %404
      %406 = vrot.lane.b32.xlu0 %v373, 126
      %v407 = vpop.permute.xlu0 %406
      %408 = vrot.lane.b32.xlu0 %v374, 126
      %v409 = vpop.permute.xlu0 %408
      %410 = vrot.lane.b32.xlu0 %v375, 126
      %v411 = vpop.permute.xlu0 %410
      %vm412 = vcmask 1031168
      %v413 = vsel %vm412, %v389, %v391
      %v414 = vsel %vm412, %v391, %v393
      %v415 = vsel %vm412, %v393, %v395
      %v416 = vsel %vm412, %v395, %v397
      %v417 = vsel %vm412, %v397, %v399
      %v418 = vsel %vm412, %v401, %v403
      %v419 = vsel %vm412, %v403, %v405
      %v420 = vsel %vm412, %v405, %v407
      %v421 = vsel %vm412, %v407, %v409
      %v422 = vsel %vm412, %v409, %v411
      %v435 = vadd.f32 %v344, %v413
      %v436 = vadd.f32 %v345, %v414
      %v437 = vadd.f32 %v346, %v415
      %v438 = vadd.f32 %v347, %v416
      %v439 = vadd.f32 %v348, %v417
      %v440 = vadd.f32 %v349, %v399
      %v441 = vadd.f32 %v350, %v418
      %v442 = vadd.f32 %v351, %v419
      %v443 = vadd.f32 %v352, %v420
      %v444 = vadd.f32 %v353, %v421
      %v445 = vadd.f32 %v354, %v422
      %v446 = vadd.f32 %v355, %v411
      %447 = vset.pattern.permute.xlu0 3
      %448 = vperm.xlu0 %447, %v198
      %v449 = vpop.permute.xlu0 %448
      %451 = vset.pattern.permute.xlu0 3
      %452 = vperm.xlu0 %451, %v199
      %v453 = vpop.permute.xlu0 %452
      %v455 = vmul.f32 %v449, %v214
      %v456 = vmul.f32 %v449, %v218
      %v457 = vmul.f32 %v449, %v222
      %v458 = vmul.f32 %v449, %v226
      %v459 = vmul.f32 %v449, %v230
      %v460 = vmul.f32 %v449, %v234
      %v461 = vmul.f32 %v453, %v214
      %v462 = vmul.f32 %v453, %v218
      %v463 = vmul.f32 %v453, %v222
      %v464 = vmul.f32 %v453, %v226
      %v465 = vmul.f32 %v453, %v230
      %v466 = vmul.f32 %v453, %v234
      %479 = vrot.lane.b32.xlu0 %v455, 100
      %v480 = vpop.permute.xlu0 %479
      %481 = vrot.lane.b32.xlu0 %v456, 100
      %v482 = vpop.permute.xlu0 %481
      %483 = vrot.lane.b32.xlu0 %v457, 100
      %v484 = vpop.permute.xlu0 %483
      %485 = vrot.lane.b32.xlu0 %v458, 100
      %v486 = vpop.permute.xlu0 %485
      %487 = vrot.lane.b32.xlu0 %v459, 100
      %v488 = vpop.permute.xlu0 %487
      %489 = vrot.lane.b32.xlu0 %v460, 100
      %v490 = vpop.permute.xlu0 %489
      %491 = vrot.lane.b32.xlu0 %v461, 100
      %v492 = vpop.permute.xlu0 %491
      %493 = vrot.lane.b32.xlu0 %v462, 100
      %v494 = vpop.permute.xlu0 %493
      %495 = vrot.lane.b32.xlu0 %v463, 100
      %v496 = vpop.permute.xlu0 %495
      %497 = vrot.lane.b32.xlu0 %v464, 100
      %v498 = vpop.permute.xlu0 %497
      %499 = vrot.lane.b32.xlu0 %v465, 100
      %v500 = vpop.permute.xlu0 %499
      %501 = vrot.lane.b32.xlu0 %v466, 100
      %v502 = vpop.permute.xlu0 %501
      %vm503 = vcmask 818176
      %v504 = vsel %vm503, %v480, %v482
      %v505 = vsel %vm503, %v482, %v484
      %v506 = vsel %vm503, %v484, %v486
      %v507 = vsel %vm503, %v486, %v488
      %v508 = vsel %vm503, %v488, %v490
      %v509 = vsel %vm503, %v492, %v494
      %v510 = vsel %vm503, %v494, %v496
      %v511 = vsel %vm503, %v496, %v498
      %v512 = vsel %vm503, %v498, %v500
      %v513 = vsel %vm503, %v500, %v502
      %v526 = vadd.f32 %v435, %v504
      %v527 = vadd.f32 %v436, %v505
      %v528 = vadd.f32 %v437, %v506
      %v529 = vadd.f32 %v438, %v507
      %v530 = vadd.f32 %v439, %v508
      %v531 = vadd.f32 %v440, %v490
      %v532 = vadd.f32 %v441, %v509
      %v533 = vadd.f32 %v442, %v510
      %v534 = vadd.f32 %v443, %v511
      %v535 = vadd.f32 %v444, %v512
      %v536 = vadd.f32 %v445, %v513
      %v537 = vadd.f32 %v446, %v502
      %538 = vset.pattern.permute.xlu0 4
      %539 = vperm.xlu0 %538, %v198
      %v540 = vpop.permute.xlu0 %539
      %542 = vset.pattern.permute.xlu0 4
      %543 = vperm.xlu0 %542, %v199
      %v544 = vpop.permute.xlu0 %543
      %v546 = vmul.f32 %v540, %v214
      %v547 = vmul.f32 %v540, %v218
      %v548 = vmul.f32 %v540, %v222
      %v549 = vmul.f32 %v540, %v226
      %v550 = vmul.f32 %v540, %v230
      %v551 = vmul.f32 %v540, %v234
      %v552 = vmul.f32 %v544, %v214
      %v553 = vmul.f32 %v544, %v218
      %v554 = vmul.f32 %v544, %v222
      %v555 = vmul.f32 %v544, %v226
      %v556 = vmul.f32 %v544, %v230
      %v557 = vmul.f32 %v544, %v234
      %570 = vrot.lane.b32.xlu0 %v546, 99
      %v571 = vpop.permute.xlu0 %570
      %572 = vrot.lane.b32.xlu0 %v547, 99
      %v573 = vpop.permute.xlu0 %572
      %574 = vrot.lane.b32.xlu0 %v548, 99
      %v575 = vpop.permute.xlu0 %574
      %576 = vrot.lane.b32.xlu0 %v549, 99
      %v577 = vpop.permute.xlu0 %576
      %578 = vrot.lane.b32.xlu0 %v550, 99
      %v579 = vpop.permute.xlu0 %578
      %580 = vrot.lane.b32.xlu0 %v551, 99
      %v581 = vpop.permute.xlu0 %580
      %582 = vrot.lane.b32.xlu0 %v552, 99
      %v583 = vpop.permute.xlu0 %582
      %584 = vrot.lane.b32.xlu0 %v553, 99
      %v585 = vpop.permute.xlu0 %584
      %586 = vrot.lane.b32.xlu0 %v554, 99
      %v587 = vpop.permute.xlu0 %586
      %588 = vrot.lane.b32.xlu0 %v555, 99
      %v589 = vpop.permute.xlu0 %588
      %590 = vrot.lane.b32.xlu0 %v556, 99
      %v591 = vpop.permute.xlu0 %590
      %592 = vrot.lane.b32.xlu0 %v557, 99
      %v593 = vpop.permute.xlu0 %592
      %vm594 = vcmask 809984
      %v595 = vsel %vm594, %v571, %v573
      %v596 = vsel %vm594, %v573, %v575
      %v597 = vsel %vm594, %v575, %v577
      %v598 = vsel %vm594, %v577, %v579
      %v599 = vsel %vm594, %v579, %v581
      %v600 = vsel %vm594, %v583, %v585
      %v601 = vsel %vm594, %v585, %v587
      %v602 = vsel %vm594, %v587, %v589
      %v603 = vsel %vm594, %v589, %v591
      %v604 = vsel %vm594, %v591, %v593
      %v617 = vadd.f32 %v526, %v595
      %v618 = vadd.f32 %v527, %v596
      %v619 = vadd.f32 %v528, %v597
      %v620 = vadd.f32 %v529, %v598
      %v621 = vadd.f32 %v530, %v599
      %v622 = vadd.f32 %v531, %v581
      %v623 = vadd.f32 %v532, %v600
      %v624 = vadd.f32 %v533, %v601
      %v625 = vadd.f32 %v534, %v602
      %v626 = vadd.f32 %v535, %v603
      %v627 = vadd.f32 %v536, %v604
      %v628 = vadd.f32 %v537, %v593
      %629 = vset.pattern.permute.xlu0 5
      %630 = vperm.xlu0 %629, %v198
      %v631 = vpop.permute.xlu0 %630
      %633 = vset.pattern.permute.xlu0 5
      %634 = vperm.xlu0 %633, %v199
      %v635 = vpop.permute.xlu0 %634
      %v637 = vmul.f32 %v631, %v214
      %v638 = vmul.f32 %v631, %v218
      %v639 = vmul.f32 %v631, %v222
      %v640 = vmul.f32 %v631, %v226
      %v641 = vmul.f32 %v631, %v230
      %v642 = vmul.f32 %v631, %v234
      %v643 = vmul.f32 %v635, %v214
      %v644 = vmul.f32 %v635, %v218
      %v645 = vmul.f32 %v635, %v222
      %v646 = vmul.f32 %v635, %v226
      %v647 = vmul.f32 %v635, %v230
      %v648 = vmul.f32 %v635, %v234
      %661 = vrot.lane.b32.xlu0 %v637, 98
      %v662 = vpop.permute.xlu0 %661
      %663 = vrot.lane.b32.xlu0 %v638, 98
      %v664 = vpop.permute.xlu0 %663
      %665 = vrot.lane.b32.xlu0 %v639, 98
      %v666 = vpop.permute.xlu0 %665
      %667 = vrot.lane.b32.xlu0 %v640, 98
      %v668 = vpop.permute.xlu0 %667
      %669 = vrot.lane.b32.xlu0 %v641, 98
      %v670 = vpop.permute.xlu0 %669
      %671 = vrot.lane.b32.xlu0 %v642, 98
      %v672 = vpop.permute.xlu0 %671
      %673 = vrot.lane.b32.xlu0 %v643, 98
      %v674 = vpop.permute.xlu0 %673
      %675 = vrot.lane.b32.xlu0 %v644, 98
      %v676 = vpop.permute.xlu0 %675
      %677 = vrot.lane.b32.xlu0 %v645, 98
      %v678 = vpop.permute.xlu0 %677
      %679 = vrot.lane.b32.xlu0 %v646, 98
      %v680 = vpop.permute.xlu0 %679
      %681 = vrot.lane.b32.xlu0 %v647, 98
      %v682 = vpop.permute.xlu0 %681
      %683 = vrot.lane.b32.xlu0 %v648, 98
      %v684 = vpop.permute.xlu0 %683
      %vm685 = vcmask 801792
      %v686 = vsel %vm685, %v662, %v664
      %v687 = vsel %vm685, %v664, %v666
      %v688 = vsel %vm685, %v666, %v668
      %v689 = vsel %vm685, %v668, %v670
      %v690 = vsel %vm685, %v670, %v672
      %v691 = vsel %vm685, %v674, %v676
      %v692 = vsel %vm685, %v676, %v678
      %v693 = vsel %vm685, %v678, %v680
      %v694 = vsel %vm685, %v680, %v682
      %v695 = vsel %vm685, %v682, %v684
      %v708 = vadd.f32 %v617, %v686
      %v709 = vadd.f32 %v618, %v687
      %v710 = vadd.f32 %v619, %v688
      %v711 = vadd.f32 %v620, %v689
      %v712 = vadd.f32 %v621, %v690
      %v713 = vadd.f32 %v622, %v672
      %v714 = vadd.f32 %v623, %v691
      %v715 = vadd.f32 %v624, %v692
      %v716 = vadd.f32 %v625, %v693
      %v717 = vadd.f32 %v626, %v694
      %v718 = vadd.f32 %v627, %v695
      %v719 = vadd.f32 %v628, %v684
      %720 = vset.pattern.permute.xlu0 6
      %721 = vperm.xlu0 %720, %v198
      %v722 = vpop.permute.xlu0 %721
      %724 = vset.pattern.permute.xlu0 6
      %725 = vperm.xlu0 %724, %v199
      %v726 = vpop.permute.xlu0 %725
      %v728 = vlaneseq
      %v729 = vshrl.u32 %v728, 7
      %v730 = vsub.s32 6, %v729
      %v731 = vrot.slane %v195, %v730
      %v733 = vmul.f32 %v722, %v214
      %v734 = vmul.f32 %v722, %v218
      %v735 = vmul.f32 %v722, %v222
      %v736 = vmul.f32 %v722, %v226
      %v737 = vmul.f32 %v722, %v230
      %v738 = vmul.f32 %v722, %v234
      %v739 = vmul.f32 %v722, %v731
      %v740 = vmul.f32 %v726, %v214
      %v741 = vmul.f32 %v726, %v218
      %v742 = vmul.f32 %v726, %v222
      %v743 = vmul.f32 %v726, %v226
      %v744 = vmul.f32 %v726, %v230
      %v745 = vmul.f32 %v726, %v234
      %v746 = vmul.f32 %v726, %v731
      %761 = vrot.lane.b32.xlu0 %v733, 72
      %v762 = vpop.permute.xlu0 %761
      %763 = vrot.lane.b32.xlu0 %v734, 72
      %v764 = vpop.permute.xlu0 %763
      %765 = vrot.lane.b32.xlu0 %v735, 72
      %v766 = vpop.permute.xlu0 %765
      %767 = vrot.lane.b32.xlu0 %v736, 72
      %v768 = vpop.permute.xlu0 %767
      %769 = vrot.lane.b32.xlu0 %v737, 72
      %v770 = vpop.permute.xlu0 %769
      %771 = vrot.lane.b32.xlu0 %v738, 72
      %v772 = vpop.permute.xlu0 %771
      %773 = vrot.lane.b32.xlu0 %v739, 72
      %v774 = vpop.permute.xlu0 %773
      %775 = vrot.lane.b32.xlu0 %v740, 72
      %v776 = vpop.permute.xlu0 %775
      %777 = vrot.lane.b32.xlu0 %v741, 72
      %v778 = vpop.permute.xlu0 %777
      %779 = vrot.lane.b32.xlu0 %v742, 72
      %v780 = vpop.permute.xlu0 %779
      %781 = vrot.lane.b32.xlu0 %v743, 72
      %v782 = vpop.permute.xlu0 %781
      %783 = vrot.lane.b32.xlu0 %v744, 72
      %v784 = vpop.permute.xlu0 %783
      %785 = vrot.lane.b32.xlu0 %v745, 72
      %v786 = vpop.permute.xlu0 %785
      %787 = vrot.lane.b32.xlu0 %v746, 72
      %v788 = vpop.permute.xlu0 %787
      %vm789 = vcmask 588800
      %v790 = vsel %vm789, %v762, %v764
      %v791 = vsel %vm789, %v764, %v766
      %v792 = vsel %vm789, %v766, %v768
      %v793 = vsel %vm789, %v768, %v770
      %v794 = vsel %vm789, %v770, %v772
      %v795 = vsel %vm789, %v772, %v774
      %v796 = vsel %vm789, %v776, %v778
      %v797 = vsel %vm789, %v778, %v780
      %v798 = vsel %vm789, %v780, %v782
      %v799 = vsel %vm789, %v782, %v784
      %v800 = vsel %vm789, %v784, %v786
      %v801 = vsel %vm789, %v786, %v788
      %v814 = vadd.f32 %v708, %v790
      %v815 = vadd.f32 %v709, %v791
      %v816 = vadd.f32 %v710, %v792
      %v817 = vadd.f32 %v711, %v793
      %v818 = vadd.f32 %v712, %v794
      %v819 = vadd.f32 %v713, %v795
      %v820 = vadd.f32 %v714, %v796
      %v821 = vadd.f32 %v715, %v797
      %v822 = vadd.f32 %v716, %v798
      %v823 = vadd.f32 %v717, %v799
      %v824 = vadd.f32 %v718, %v800
      %v825 = vadd.f32 %v719, %v801
      %826 = vset.pattern.permute.xlu0 7
      %827 = vperm.xlu0 %826, %v198
      %v828 = vpop.permute.xlu0 %827
      %830 = vset.pattern.permute.xlu0 7
      %831 = vperm.xlu0 %830, %v199
      %v832 = vpop.permute.xlu0 %831
      %v834 = vmul.f32 %v828, %v214
      %v835 = vmul.f32 %v828, %v218
      %v836 = vmul.f32 %v828, %v222
      %v837 = vmul.f32 %v828, %v226
      %v838 = vmul.f32 %v828, %v230
      %v839 = vmul.f32 %v828, %v234
      %v840 = vmul.f32 %v828, %v731
      %v841 = vmul.f32 %v832, %v214
      %v842 = vmul.f32 %v832, %v218
      %v843 = vmul.f32 %v832, %v222
      %v844 = vmul.f32 %v832, %v226
      %v845 = vmul.f32 %v832, %v230
      %v846 = vmul.f32 %v832, %v234
      %v847 = vmul.f32 %v832, %v731
      %862 = vrot.lane.b32.xlu0 %v834, 71
      %v863 = vpop.permute.xlu0 %862
      %864 = vrot.lane.b32.xlu0 %v835, 71
      %v865 = vpop.permute.xlu0 %864
      %866 = vrot.lane.b32.xlu0 %v836, 71
      %v867 = vpop.permute.xlu0 %866
      %868 = vrot.lane.b32.xlu0 %v837, 71
      %v869 = vpop.permute.xlu0 %868
      %870 = vrot.lane.b32.xlu0 %v838, 71
      %v871 = vpop.permute.xlu0 %870
      %872 = vrot.lane.b32.xlu0 %v839, 71
      %v873 = vpop.permute.xlu0 %872
      %874 = vrot.lane.b32.xlu0 %v840, 71
      %v875 = vpop.permute.xlu0 %874
      %876 = vrot.lane.b32.xlu0 %v841, 71
      %v877 = vpop.permute.xlu0 %876
      %878 = vrot.lane.b32.xlu0 %v842, 71
      %v879 = vpop.permute.xlu0 %878
      %880 = vrot.lane.b32.xlu0 %v843, 71
      %v881 = vpop.permute.xlu0 %880
      %882 = vrot.lane.b32.xlu0 %v844, 71
      %v883 = vpop.permute.xlu0 %882
      %884 = vrot.lane.b32.xlu0 %v845, 71
      %v885 = vpop.permute.xlu0 %884
      %886 = vrot.lane.b32.xlu0 %v846, 71
      %v887 = vpop.permute.xlu0 %886
      %888 = vrot.lane.b32.xlu0 %v847, 71
      %v889 = vpop.permute.xlu0 %888
      %vm890 = vcmask 580608
      %v891 = vsel %vm890, %v863, %v865
      %v892 = vsel %vm890, %v865, %v867
      %v893 = vsel %vm890, %v867, %v869
      %v894 = vsel %vm890, %v869, %v871
      %v895 = vsel %vm890, %v871, %v873
      %v896 = vsel %vm890, %v873, %v875
      %v897 = vsel %vm890, %v877, %v879
      %v898 = vsel %vm890, %v879, %v881
      %v899 = vsel %vm890, %v881, %v883
      %v900 = vsel %vm890, %v883, %v885
      %v901 = vsel %vm890, %v885, %v887
      %v902 = vsel %vm890, %v887, %v889
      %v915 = vadd.f32 %v814, %v891
      %v916 = vadd.f32 %v815, %v892
      %v917 = vadd.f32 %v816, %v893
      %v918 = vadd.f32 %v817, %v894
      %v919 = vadd.f32 %v818, %v895
      %v920 = vadd.f32 %v819, %v896
      %v921 = vadd.f32 %v820, %v897
      %v922 = vadd.f32 %v821, %v898
      %v923 = vadd.f32 %v822, %v899
      %v924 = vadd.f32 %v823, %v900
      %v925 = vadd.f32 %v824, %v901
      %v926 = vadd.f32 %v825, %v902
      %927 = vset.pattern.permute.xlu0 8
      %928 = vperm.xlu0 %927, %v198
      %v929 = vpop.permute.xlu0 %928
      %931 = vset.pattern.permute.xlu0 8
      %932 = vperm.xlu0 %931, %v199
      %v933 = vpop.permute.xlu0 %932
      %v935 = vmul.f32 %v929, %v214
      %v936 = vmul.f32 %v929, %v218
      %v937 = vmul.f32 %v929, %v222
      %v938 = vmul.f32 %v929, %v226
      %v939 = vmul.f32 %v929, %v230
      %v940 = vmul.f32 %v929, %v234
      %v941 = vmul.f32 %v929, %v731
      %v942 = vmul.f32 %v933, %v214
      %v943 = vmul.f32 %v933, %v218
      %v944 = vmul.f32 %v933, %v222
      %v945 = vmul.f32 %v933, %v226
      %v946 = vmul.f32 %v933, %v230
      %v947 = vmul.f32 %v933, %v234
      %v948 = vmul.f32 %v933, %v731
      %963 = vrot.lane.b32.xlu0 %v935, 70
      %v964 = vpop.permute.xlu0 %963
      %965 = vrot.lane.b32.xlu0 %v936, 70
      %v966 = vpop.permute.xlu0 %965
      %967 = vrot.lane.b32.xlu0 %v937, 70
      %v968 = vpop.permute.xlu0 %967
      %969 = vrot.lane.b32.xlu0 %v938, 70
      %v970 = vpop.permute.xlu0 %969
      %971 = vrot.lane.b32.xlu0 %v939, 70
      %v972 = vpop.permute.xlu0 %971
      %973 = vrot.lane.b32.xlu0 %v940, 70
      %v974 = vpop.permute.xlu0 %973
      %975 = vrot.lane.b32.xlu0 %v941, 70
      %v976 = vpop.permute.xlu0 %975
      %977 = vrot.lane.b32.xlu0 %v942, 70
      %v978 = vpop.permute.xlu0 %977
      %979 = vrot.lane.b32.xlu0 %v943, 70
      %v980 = vpop.permute.xlu0 %979
      %981 = vrot.lane.b32.xlu0 %v944, 70
      %v982 = vpop.permute.xlu0 %981
      %983 = vrot.lane.b32.xlu0 %v945, 70
      %v984 = vpop.permute.xlu0 %983
      %985 = vrot.lane.b32.xlu0 %v946, 70
      %v986 = vpop.permute.xlu0 %985
      %987 = vrot.lane.b32.xlu0 %v947, 70
      %v988 = vpop.permute.xlu0 %987
      %989 = vrot.lane.b32.xlu0 %v948, 70
      %v990 = vpop.permute.xlu0 %989
      %vm991 = vcmask 572416
      %v992 = vsel %vm991, %v964, %v966
      %v993 = vsel %vm991, %v966, %v968
      %v994 = vsel %vm991, %v968, %v970
      %v995 = vsel %vm991, %v970, %v972
      %v996 = vsel %vm991, %v972, %v974
      %v997 = vsel %vm991, %v974, %v976
      %v998 = vsel %vm991, %v978, %v980
      %v999 = vsel %vm991, %v980, %v982
      %v1000 = vsel %vm991, %v982, %v984
      %v1001 = vsel %vm991, %v984, %v986
      %v1002 = vsel %vm991, %v986, %v988
      %v1003 = vsel %vm991, %v988, %v990
      %v1016 = vadd.f32 %v915, %v992
      %v1017 = vadd.f32 %v916, %v993
      %v1018 = vadd.f32 %v917, %v994
      %v1019 = vadd.f32 %v918, %v995
      %v1020 = vadd.f32 %v919, %v996
      %v1021 = vadd.f32 %v920, %v997
      %v1022 = vadd.f32 %v921, %v998
      %v1023 = vadd.f32 %v922, %v999
      %v1024 = vadd.f32 %v923, %v1000
      %v1025 = vadd.f32 %v924, %v1001
      %v1026 = vadd.f32 %v925, %v1002
      %v1027 = vadd.f32 %v926, %v1003
      %v1028 = vld [vmem:[%s2] sm:$0xff]
      %v1029 = vld [vmem:[%s2 + $0x8] sm:$0xff]
      %1031 = vset.pattern.permute.xlu0 0
      %1032 = vperm.xlu0 %1031, %v1028
      %v1033 = vpop.permute.xlu0 %1032
      %1036 = vset.pattern.permute.xlu0 0
      %1037 = vperm.xlu0 %1036, %v1029
      %v1038 = vpop.permute.xlu0 %1037
      %v1040 = vadd.f32 %v1016, %v1033
      %v1041 = vadd.f32 %v1017, %v1033
      %v1042 = vadd.f32 %v1018, %v1033
      %v1043 = vadd.f32 %v1019, %v1033
      %v1044 = vadd.f32 %v1020, %v1033
      %v1045 = vadd.f32 %v1021, %v1033
      %v1046 = vadd.f32 %v1022, %v1038
      %v1047 = vadd.f32 %v1023, %v1038
      %v1048 = vadd.f32 %v1024, %v1038
      %v1049 = vadd.f32 %v1025, %v1038
      %v1050 = vadd.f32 %v1026, %v1038
      %v1051 = vadd.f32 %v1027, %v1038
      %v1052 = vmax.f32 %v1040, 0.0
      %v1053 = vmax.f32 %v1041, 0.0
      %v1054 = vmax.f32 %v1042, 0.0
      %v1055 = vmax.f32 %v1043, 0.0
      %v1056 = vmax.f32 %v1044, 0.0
      %v1057 = vmax.f32 %v1045, 0.0
      %v1058 = vmax.f32 %v1046, 0.0
      %v1059 = vmax.f32 %v1047, 0.0
      %v1060 = vmax.f32 %v1048, 0.0
      %v1061 = vmax.f32 %v1049, 0.0
      %v1062 = vmax.f32 %v1050, 0.0
      %v1063 = vmax.f32 %v1051, 0.0
      %1076 = vrot.lane.b32.xlu0 %v1052, 127
      %v1077 = vpop.permute.xlu0 %1076
      %1078 = vrot.lane.b32.xlu0 %v1053, 127
      %v1079 = vpop.permute.xlu0 %1078
      %1080 = vrot.lane.b32.xlu0 %v1054, 127
      %v1081 = vpop.permute.xlu0 %1080
      %1082 = vrot.lane.b32.xlu0 %v1055, 127
      %v1083 = vpop.permute.xlu0 %1082
      %1084 = vrot.lane.b32.xlu0 %v1056, 127
      %v1085 = vpop.permute.xlu0 %1084
      %1086 = vrot.lane.b32.xlu0 %v1057, 127
      %v1087 = vpop.permute.xlu0 %1086
      %1088 = vrot.lane.b32.xlu0 %v1058, 127
      %v1089 = vpop.permute.xlu0 %1088
      %1090 = vrot.lane.b32.xlu0 %v1059, 127
      %v1091 = vpop.permute.xlu0 %1090
      %1092 = vrot.lane.b32.xlu0 %v1060, 127
      %v1093 = vpop.permute.xlu0 %1092
      %1094 = vrot.lane.b32.xlu0 %v1061, 127
      %v1095 = vpop.permute.xlu0 %1094
      %1096 = vrot.lane.b32.xlu0 %v1062, 127
      %v1097 = vpop.permute.xlu0 %1096
      %1098 = vrot.lane.b32.xlu0 %v1063, 127
      %v1099 = vpop.permute.xlu0 %1098
      %v1100 = vsel %vm321, %v1077, %v1079
      %v1101 = vsel %vm321, %v1079, %v1081
      %v1102 = vsel %vm321, %v1081, %v1083
      %v1103 = vsel %vm321, %v1083, %v1085
      %v1104 = vsel %vm321, %v1085, %v1087
      %v1105 = vsel %vm321, %v1089, %v1091
      %v1106 = vsel %vm321, %v1091, %v1093
      %v1107 = vsel %vm321, %v1093, %v1095
      %v1108 = vsel %vm321, %v1095, %v1097
      %v1109 = vsel %vm321, %v1097, %v1099
      %v1122 = vmax.f32 %v1052, %v1100
      %v1123 = vmax.f32 %v1053, %v1101
      %v1124 = vmax.f32 %v1054, %v1102
      %v1125 = vmax.f32 %v1055, %v1103
      %v1126 = vmax.f32 %v1056, %v1104
      %v1127 = vmax.f32 %v1057, %v1087
      %v1128 = vmax.f32 %v1058, %v1105
      %v1129 = vmax.f32 %v1059, %v1106
      %v1130 = vmax.f32 %v1060, %v1107
      %v1131 = vmax.f32 %v1061, %v1108
      %v1132 = vmax.f32 %v1062, %v1109
      %v1133 = vmax.f32 %v1063, %v1099
      %1146 = vrot.lane.b32.xlu0 %v1122, 100
      %v1147 = vpop.permute.xlu0 %1146
      %1148 = vrot.lane.b32.xlu0 %v1123, 100
      %v1149 = vpop.permute.xlu0 %1148
      %1150 = vrot.lane.b32.xlu0 %v1124, 100
      %v1151 = vpop.permute.xlu0 %1150
      %1152 = vrot.lane.b32.xlu0 %v1125, 100
      %v1153 = vpop.permute.xlu0 %1152
      %1154 = vrot.lane.b32.xlu0 %v1126, 100
      %v1155 = vpop.permute.xlu0 %1154
      %1156 = vrot.lane.b32.xlu0 %v1127, 100
      %v1157 = vpop.permute.xlu0 %1156
      %1158 = vrot.lane.b32.xlu0 %v1128, 100
      %v1159 = vpop.permute.xlu0 %1158
      %1160 = vrot.lane.b32.xlu0 %v1129, 100
      %v1161 = vpop.permute.xlu0 %1160
      %1162 = vrot.lane.b32.xlu0 %v1130, 100
      %v1163 = vpop.permute.xlu0 %1162
      %1164 = vrot.lane.b32.xlu0 %v1131, 100
      %v1165 = vpop.permute.xlu0 %1164
      %1166 = vrot.lane.b32.xlu0 %v1132, 100
      %v1167 = vpop.permute.xlu0 %1166
      %1168 = vrot.lane.b32.xlu0 %v1133, 100
      %v1169 = vpop.permute.xlu0 %1168
      %v1170 = vsel %vm503, %v1147, %v1149
      %v1171 = vsel %vm503, %v1149, %v1151
      %v1172 = vsel %vm503, %v1151, %v1153
      %v1173 = vsel %vm503, %v1153, %v1155
      %v1174 = vsel %vm503, %v1155, %v1157
      %v1175 = vsel %vm503, %v1159, %v1161
      %v1176 = vsel %vm503, %v1161, %v1163
      %v1177 = vsel %vm503, %v1163, %v1165
      %v1178 = vsel %vm503, %v1165, %v1167
      %v1179 = vsel %vm503, %v1167, %v1169
      %v1192 = vmax.f32 %v1122, %v1170
      %v1193 = vmax.f32 %v1123, %v1171
      %v1194 = vmax.f32 %v1124, %v1172
      %v1195 = vmax.f32 %v1125, %v1173
      %v1196 = vmax.f32 %v1126, %v1174
      %v1197 = vmax.f32 %v1127, %v1157
      %v1198 = vmax.f32 %v1128, %v1175
      %v1199 = vmax.f32 %v1129, %v1176
      %v1200 = vmax.f32 %v1130, %v1177
      %v1201 = vmax.f32 %v1131, %v1178
      %v1202 = vmax.f32 %v1132, %v1179
      %v1203 = vmax.f32 %v1133, %v1169
      %v1204 = vld [vmem:[%s3] sm:$0xff]
      %v1205 = vld [vmem:[%s3 + $0x8] sm:$0xff]
      %v1206 = vld [vmem:[%s3 + $0x10] sm:$0xff]
      %v1207 = vld [vmem:[%s3 + $0x18] sm:$0xff]
      %v1208 = vld [vmem:[%s3 + $0x20] sm:$0xff]
      %v1209 = vld [vmem:[%s3 + $0x28] sm:$0xff]
      %v1210 = vld [vmem:[%s3 + $0x30] sm:$0xff]
      %v1211 = vld [vmem:[%s3 + $0x38] sm:$0xff]
      %v1212 = vld [vmem:[%s3 + $0x40] sm:$0xff]
      %v1213 = vld [vmem:[%s3 + $0x48] sm:$0xff]
      %v1214 = vld [vmem:[%s3 + $0x50] sm:$0xff]
      %v1215 = vld [vmem:[%s3 + $0x58] sm:$0xff]
      %v1216 = vld [vmem:[%s3 + $0x60] sm:$0xff]
      %v1217 = vld [vmem:[%s3 + $0x68] sm:$0xff]
      %v1218 = vld [vmem:[%s3 + $0x70] sm:$0xff]
      %v1219 = vld [vmem:[%s3 + $0x78] sm:$0xff]
      %v1220 = vld [vmem:[%s3 + $0x80] sm:$0xff]
      %v1221 = vld [vmem:[%s3 + $0x88] sm:$0xff]
      %v1222 = vld [vmem:[%s3 + $0x90] sm:$0xff]
      %v1223 = vld [vmem:[%s3 + $0x98] sm:$0xff]
      %v1224 = vld [vmem:[%s3 + $0xa0] sm:$0xff]
      %v1225 = vld [vmem:[%s3 + $0xa8] sm:$0xff]
      %v1226 = vld [vmem:[%s3 + $0xb0] sm:$0xff]
      %v1227 = vld [vmem:[%s3 + $0xb8] sm:$0xff]
      %v1228 = vld [vmem:[%s3 + $0xc0] sm:$0xff]
      %v1229 = vld [vmem:[%s3 + $0xc8] sm:$0xff]
      %v1230 = vld [vmem:[%s3 + $0xd0] sm:$0xff]
      %v1231 = vld [vmem:[%s3 + $0xd8] sm:$0xff]
      %v1232 = vld [vmem:[%s3 + $0xe0] sm:$0xff]
      %v1233 = vld [vmem:[%s3 + $0xe8] sm:$0xff]
      %v1234 = vld [vmem:[%s3 + $0xf0] sm:$0xff]
      %v1235 = vld [vmem:[%s3 + $0xf8] sm:$0xff]
      %v1236 = vld [vmem:[%s3 + $0x100] sm:$0xff]
      %v1237 = vld [vmem:[%s3 + $0x108] sm:$0xff]
      %v1238 = vld [vmem:[%s3 + $0x110] sm:$0xff]
      %v1239 = vld [vmem:[%s3 + $0x118] sm:$0xff]
      %v1240 = vld [vmem:[%s3 + $0x120] sm:$0xff]
      %v1241 = vld [vmem:[%s3 + $0x128] sm:$0xff]
      %v1242 = vld [vmem:[%s3 + $0x130] sm:$0xff]
      %v1243 = vld [vmem:[%s3 + $0x138] sm:$0xff]
      %v1244 = vld [vmem:[%s3 + $0x140] sm:$0xff]
      %v1245 = vld [vmem:[%s3 + $0x148] sm:$0xff]
      %v1246 = vld [vmem:[%s3 + $0x150] sm:$0xff]
      %v1247 = vld [vmem:[%s3 + $0x158] sm:$0xff]
      %v1248 = vld [vmem:[%s3 + $0x160] sm:$0xff]
      %v1249 = vld [vmem:[%s3 + $0x168] sm:$0xff]
      %v1250 = vld [vmem:[%s3 + $0x170] sm:$0xff]
      %v1251 = vld [vmem:[%s3 + $0x178] sm:$0xff]
      %v1252 = vld [vmem:[%s3 + $0x180] sm:$0xff]
      %v1253 = vld [vmem:[%s3 + $0x188] sm:$0xff]
      %v1254 = vld [vmem:[%s3 + $0x190] sm:$0xff]
      %v1255 = vld [vmem:[%s3 + $0x198] sm:$0xff]
      %v1256 = vld [vmem:[%s3 + $0x1a0] sm:$0xff]
      %v1257 = vld [vmem:[%s3 + $0x1a8] sm:$0xff]
      %v1258 = vld [vmem:[%s3 + $0x1b0] sm:$0xff]
      %v1259 = vld [vmem:[%s3 + $0x1b8] sm:$0xff]
      %v1260 = vld [vmem:[%s3 + $0x1c0] sm:$0xff]
      %v1261 = vld [vmem:[%s3 + $0x1c8] sm:$0xff]
      %v1262 = vld [vmem:[%s3 + $0x1d0] sm:$0xff]
      %v1263 = vld [vmem:[%s3 + $0x1d8] sm:$0xff]
      %v1264 = vld [vmem:[%s3 + $0x1e0] sm:$0xff]
      %v1265 = vld [vmem:[%s3 + $0x1e8] sm:$0xff]
      %v1266 = vld [vmem:[%s3 + $0x1f0] sm:$0xff]
      %v1267 = vld [vmem:[%s3 + $0x1f8] sm:$0xff]
      %v1268 = vld [vmem:[%s3 + $0x200] sm:$0xff]
      %v1269 = vld [vmem:[%s3 + $0x208] sm:$0xff]
      %v1270 = vld [vmem:[%s3 + $0x210] sm:$0xff]
      %v1271 = vld [vmem:[%s3 + $0x218] sm:$0xff]
      %v1272 = vld [vmem:[%s3 + $0x220] sm:$0xff]
      %v1273 = vld [vmem:[%s3 + $0x228] sm:$0xff]
      %v1274 = vld [vmem:[%s3 + $0x230] sm:$0xff]
      %v1275 = vld [vmem:[%s3 + $0x238] sm:$0xff]
      %v1276 = vld [vmem:[%s3 + $0x240] sm:$0xff]
      %v1277 = vld [vmem:[%s3 + $0x248] sm:$0xff]
      %v1278 = vld [vmem:[%s3 + $0x250] sm:$0xff]
      %v1279 = vld [vmem:[%s3 + $0x258] sm:$0xff]
      %v1280 = vld [vmem:[%s3 + $0x260] sm:$0xff]
      %v1281 = vld [vmem:[%s3 + $0x268] sm:$0xff]
      %v1282 = vld [vmem:[%s3 + $0x270] sm:$0xff]
      %v1283 = vld [vmem:[%s3 + $0x278] sm:$0xff]
      %v1284 = vld [vmem:[%s3 + $0x280] sm:$0xff]
      %v1285 = vld [vmem:[%s3 + $0x288] sm:$0xff]
      %v1286 = vld [vmem:[%s3 + $0x290] sm:$0xff]
      %v1287 = vld [vmem:[%s3 + $0x298] sm:$0xff]
      %v1288 = vld [vmem:[%s3 + $0x2a0] sm:$0xff]
      %v1289 = vld [vmem:[%s3 + $0x2a8] sm:$0xff]
      %v1290 = vld [vmem:[%s3 + $0x2b0] sm:$0xff]
      %v1291 = vld [vmem:[%s3 + $0x2b8] sm:$0xff]
      %v1292 = vld [vmem:[%s3 + $0x2c0] sm:$0xff]
      %v1293 = vld [vmem:[%s3 + $0x2c8] sm:$0xff]
      %v1294 = vld [vmem:[%s3 + $0x2d0] sm:$0xff]
      %v1295 = vld [vmem:[%s3 + $0x2d8] sm:$0xff]
      %v1296 = vld [vmem:[%s3 + $0x2e0] sm:$0xff]
      %v1297 = vld [vmem:[%s3 + $0x2e8] sm:$0xff]
      %v1298 = vld [vmem:[%s3 + $0x2f0] sm:$0xff]
      %v1299 = vld [vmem:[%s3 + $0x2f8] sm:$0xff]
      %v1300 = vld [vmem:[%s3 + $0x300] sm:$0xff]
      %v1301 = vld [vmem:[%s3 + $0x308] sm:$0xff]
      %v1302 = vld [vmem:[%s3 + $0x310] sm:$0xff]
      %v1303 = vld [vmem:[%s3 + $0x318] sm:$0xff]
      %v1304 = vld [vmem:[%s3 + $0x320] sm:$0xff]
      %v1305 = vld [vmem:[%s3 + $0x328] sm:$0xff]
      %v1306 = vld [vmem:[%s3 + $0x330] sm:$0xff]
      %v1307 = vld [vmem:[%s3 + $0x338] sm:$0xff]
      %v1308 = vld [vmem:[%s3 + $0x340] sm:$0xff]
      %v1309 = vld [vmem:[%s3 + $0x348] sm:$0xff]
      %v1310 = vld [vmem:[%s3 + $0x350] sm:$0xff]
      %v1311 = vld [vmem:[%s3 + $0x358] sm:$0xff]
      %v1312 = vld [vmem:[%s3 + $0x360] sm:$0xff]
      %v1313 = vld [vmem:[%s3 + $0x368] sm:$0xff]
      %v1314 = vld [vmem:[%s3 + $0x370] sm:$0xff]
      %v1315 = vld [vmem:[%s3 + $0x378] sm:$0xff]
      %v1316 = vld [vmem:[%s3 + $0x380] sm:$0xff]
      %v1317 = vld [vmem:[%s3 + $0x388] sm:$0xff]
      %v1318 = vld [vmem:[%s3 + $0x390] sm:$0xff]
      %v1319 = vld [vmem:[%s3 + $0x398] sm:$0xff]
      %v1320 = vld [vmem:[%s3 + $0x3a0] sm:$0xff]
      %v1321 = vld [vmem:[%s3 + $0x3a8] sm:$0xff]
      %v1322 = vld [vmem:[%s3 + $0x3b0] sm:$0xff]
      %v1323 = vld [vmem:[%s3 + $0x3b8] sm:$0xff]
      %v1324 = vld [vmem:[%s3 + $0x3c0] sm:$0xff]
      %v1325 = vld [vmem:[%s3 + $0x3c8] sm:$0xff]
      %v1326 = vld [vmem:[%s3 + $0x3d0] sm:$0xff]
      %v1327 = vld [vmem:[%s3 + $0x3d8] sm:$0xff]
      %v1328 = vld [vmem:[%s3 + $0x3e0] sm:$0xff]
      %v1329 = vld [vmem:[%s3 + $0x3e8] sm:$0xff]
      %v1330 = vld [vmem:[%s3 + $0x3f0] sm:$0xff]
      %v1331 = vld [vmem:[%s3 + $0x3f8] sm:$0xff]
      %v1332 = vld [vmem:[%s3 + $0x400] sm:$0xff]
      %v1333 = vld [vmem:[%s3 + $0x408] sm:$0xff]
      %v1334 = vld [vmem:[%s3 + $0x410] sm:$0xff]
      %v1335 = vld [vmem:[%s3 + $0x418] sm:$0xff]
      %v1336 = vld [vmem:[%s3 + $0x420] sm:$0xff]
      %v1337 = vld [vmem:[%s3 + $0x428] sm:$0xff]
      %v1338 = vld [vmem:[%s3 + $0x430] sm:$0xff]
      %v1339 = vld [vmem:[%s3 + $0x438] sm:$0xff]
      %v1340 = vld [vmem:[%s3 + $0x440] sm:$0xff]
      %v1341 = vld [vmem:[%s3 + $0x448] sm:$0xff]
      %v1342 = vld [vmem:[%s3 + $0x450] sm:$0xff]
      %v1343 = vld [vmem:[%s3 + $0x458] sm:$0xff]
      %v1344 = vld [vmem:[%s3 + $0x460] sm:$0xff]
      %v1345 = vld [vmem:[%s3 + $0x468] sm:$0xff]
      %v1346 = vld [vmem:[%s3 + $0x470] sm:$0xff]
      %v1347 = vld [vmem:[%s3 + $0x478] sm:$0xff]
      %v1348 = vld [vmem:[%s3 + $0x480] sm:$0xff]
      %v1349 = vld [vmem:[%s3 + $0x488] sm:$0xff]
      %v1350 = vld [vmem:[%s3 + $0x490] sm:$0xff]
      %v1351 = vld [vmem:[%s3 + $0x498] sm:$0xff]
      %v1352 = vld [vmem:[%s3 + $0x4a0] sm:$0xff]
      %v1353 = vld [vmem:[%s3 + $0x4a8] sm:$0xff]
      %v1354 = vld [vmem:[%s3 + $0x4b0] sm:$0xff]
      %v1355 = vld [vmem:[%s3 + $0x4b8] sm:$0xff]
      %v1356 = vld [vmem:[%s3 + $0x4c0] sm:$0xff]
      %v1357 = vld [vmem:[%s3 + $0x4c8] sm:$0xff]
      %v1358 = vld [vmem:[%s3 + $0x4d0] sm:$0xff]
      %v1359 = vld [vmem:[%s3 + $0x4d8] sm:$0xff]
      %v1360 = vld [vmem:[%s3 + $0x4e0] sm:$0xff]
      %v1361 = vld [vmem:[%s3 + $0x4e8] sm:$0xff]
      %v1362 = vld [vmem:[%s3 + $0x4f0] sm:$0xff]
      %v1363 = vld [vmem:[%s3 + $0x4f8] sm:$0xff]
      %v1364 = vld [vmem:[%s3 + $0x500] sm:$0xff]
      %v1365 = vld [vmem:[%s3 + $0x508] sm:$0xff]
      %v1366 = vld [vmem:[%s3 + $0x510] sm:$0xff]
      %v1367 = vld [vmem:[%s3 + $0x518] sm:$0xff]
      %v1368 = vld [vmem:[%s3 + $0x520] sm:$0xff]
      %v1369 = vld [vmem:[%s3 + $0x528] sm:$0xff]
      %v1370 = vld [vmem:[%s3 + $0x530] sm:$0xff]
      %v1371 = vld [vmem:[%s3 + $0x538] sm:$0xff]
      %v1372 = vld [vmem:[%s3 + $0x540] sm:$0xff]
      %v1373 = vld [vmem:[%s3 + $0x548] sm:$0xff]
      %v1374 = vld [vmem:[%s3 + $0x550] sm:$0xff]
      %v1375 = vld [vmem:[%s3 + $0x558] sm:$0xff]
      %v1376 = vld [vmem:[%s3 + $0x560] sm:$0xff]
      %v1377 = vld [vmem:[%s3 + $0x568] sm:$0xff]
      %v1378 = vld [vmem:[%s3 + $0x570] sm:$0x7]
      %v1379 = vld [vmem:[%s3 + $0x578] sm:$0x7]
      %vm1380 = vcmask 482304
      %v1382 = vsel %vm1380, %v1197, 0
      %v1385 = vsel %vm1380, %v1203, 0
      %vm1387 = vcmask 1042432
      %v1389 = vsel %vm1387, %v1378, 0
      %v1392 = vsel %vm1387, %v1379, 0
      %1394 = vmatprep.subr.mxu0 %v1235
      %1395 = vmatpush1.msra.mxu0 %v1234
      %1396 = vmatprep.subr.mxu0 %v1233
      %1397 = vmatpush1.msra.mxu0 %v1232
      %1398 = vmatprep.subr.mxu0 %v1231
      %1399 = vmatpush1.msra.mxu0 %v1230
      %1400 = vmatprep.subr.mxu0 %v1229
      %1401 = vmatpush1.msra.mxu0 %v1228
      %1402 = vmatprep.subr.mxu0 %v1227
      %1403 = vmatpush1.msra.mxu0 %v1226
      %1404 = vmatprep.subr.mxu0 %v1225
      %1405 = vmatpush1.msra.mxu0 %v1224
      %1406 = vmatprep.subr.mxu0 %v1223
      %1407 = vmatpush1.msra.mxu0 %v1222
      %1408 = vmatprep.subr.mxu0 %v1221
      %1409 = vmatpush1.msra.mxu0 %v1220
      %1410 = vmatprep.subr.mxu0 %v1219
      %1411 = vmatpush1.msra.mxu0 %v1218
      %1412 = vmatprep.subr.mxu0 %v1217
      %1413 = vmatpush1.msra.mxu0 %v1216
      %1414 = vmatprep.subr.mxu0 %v1215
      %1415 = vmatpush1.msra.mxu0 %v1214
      %1416 = vmatprep.subr.mxu0 %v1213
      %1417 = vmatpush1.msra.mxu0 %v1212
      %1418 = vmatprep.subr.mxu0 %v1211
      %1419 = vmatpush1.msra.mxu0 %v1210
      %1420 = vmatprep.subr.mxu0 %v1209
      %1421 = vmatpush1.msra.mxu0 %v1208
      %1422 = vmatprep.subr.mxu0 %v1207
      %1423 = vmatpush1.msra.mxu0 %v1206
      %1424 = vmatprep.subr.mxu0 %v1205
      %1425 = vmatpush1.msra.mxu0 %v1204
      %1426 = vmatprep.subr.mxu0 %v1267
      %1427 = vmatpush2.msra.mxu0 %v1266
      %1428 = vmatprep.subr.mxu0 %v1265
      %1429 = vmatpush2.msra.mxu0 %v1264
      %1430 = vmatprep.subr.mxu0 %v1263
      %1431 = vmatpush2.msra.mxu0 %v1262
      %1432 = vmatprep.subr.mxu0 %v1261
      %1433 = vmatpush2.msra.mxu0 %v1260
      %1434 = vmatprep.subr.mxu0 %v1259
      %1435 = vmatpush2.msra.mxu0 %v1258
      %1436 = vmatprep.subr.mxu0 %v1257
      %1437 = vmatpush2.msra.mxu0 %v1256
      %1438 = vmatprep.subr.mxu0 %v1255
      %1439 = vmatpush2.msra.mxu0 %v1254
      %1440 = vmatprep.subr.mxu0 %v1253
      %1441 = vmatpush2.msra.mxu0 %v1252
      %1442 = vmatprep.subr.mxu0 %v1251
      %1443 = vmatpush2.msra.mxu0 %v1250
      %1444 = vmatprep.subr.mxu0 %v1249
      %1445 = vmatpush2.msra.mxu0 %v1248
      %1446 = vmatprep.subr.mxu0 %v1247
      %1447 = vmatpush2.msra.mxu0 %v1246
      %1448 = vmatprep.subr.mxu0 %v1245
      %1449 = vmatpush2.msra.mxu0 %v1244
      %1450 = vmatprep.subr.mxu0 %v1243
      %1451 = vmatpush2.msra.mxu0 %v1242
      %1452 = vmatprep.subr.mxu0 %v1241
      %1453 = vmatpush2.msra.mxu0 %v1240
      %1454 = vmatprep.subr.mxu0 %v1239
      %1455 = vmatpush2.msra.mxu0 %v1238
      %1456 = vmatprep.subr.mxu0 %v1237
      %1457 = vmatpush2.msra.mxu0 %v1236
      %1458 = vmatprep.mubr.f32.mxu0 %v1193
      %1459 = vmatmul.mubr.f32.gmra.mxu0 %v1192
      %v1460 = vpop.f32.mrf.mxu0
      %v1461 = vadd.f32 0.0, %v1460
      %v1462 = vpop.f32.mrf.mxu0
      %v1463 = vadd.f32 0.0, %v1462
      %1464 = vmatprep.mubr.f32.mxu0 %v1199
      %1465 = vmatmul.mubr.f32.gmra.mxu0 %v1198
      %v1466 = vpop.f32.mrf.mxu0
      %v1467 = vadd.f32 0.0, %v1466
      %v1468 = vpop.f32.mrf.mxu0
      %v1469 = vadd.f32 0.0, %v1468
      %1470 = vdwg.mxu0
      %1471 = vmatprep.subr.mxu0 %v1299
      %1472 = vmatpush1.msra.mxu0 %v1298
      %1473 = vmatprep.subr.mxu0 %v1297
      %1474 = vmatpush1.msra.mxu0 %v1296
      %1475 = vmatprep.subr.mxu0 %v1295
      %1476 = vmatpush1.msra.mxu0 %v1294
      %1477 = vmatprep.subr.mxu0 %v1293
      %1478 = vmatpush1.msra.mxu0 %v1292
      %1479 = vmatprep.subr.mxu0 %v1291
      %1480 = vmatpush1.msra.mxu0 %v1290
      %1481 = vmatprep.subr.mxu0 %v1289
      %1482 = vmatpush1.msra.mxu0 %v1288
      %1483 = vmatprep.subr.mxu0 %v1287
      %1484 = vmatpush1.msra.mxu0 %v1286
      %1485 = vmatprep.subr.mxu0 %v1285
      %1486 = vmatpush1.msra.mxu0 %v1284
      %1487 = vmatprep.subr.mxu0 %v1283
      %1488 = vmatpush1.msra.mxu0 %v1282
      %1489 = vmatprep.subr.mxu0 %v1281
      %1490 = vmatpush1.msra.mxu0 %v1280
      %1491 = vmatprep.subr.mxu0 %v1279
      %1492 = vmatpush1.msra.mxu0 %v1278
      %1493 = vmatprep.subr.mxu0 %v1277
      %1494 = vmatpush1.msra.mxu0 %v1276
      %1495 = vmatprep.subr.mxu0 %v1275
      %1496 = vmatpush1.msra.mxu0 %v1274
      %1497 = vmatprep.subr.mxu0 %v1273
      %1498 = vmatpush1.msra.mxu0 %v1272
      %1499 = vmatprep.subr.mxu0 %v1271
      %1500 = vmatpush1.msra.mxu0 %v1270
      %1501 = vmatprep.subr.mxu0 %v1269
      %1502 = vmatpush1.msra.mxu0 %v1268
      %1503 = vmatprep.subr.mxu0 %v1331
      %1504 = vmatpush2.msra.mxu0 %v1330
      %1505 = vmatprep.subr.mxu0 %v1329
      %1506 = vmatpush2.msra.mxu0 %v1328
      %1507 = vmatprep.subr.mxu0 %v1327
      %1508 = vmatpush2.msra.mxu0 %v1326
      %1509 = vmatprep.subr.mxu0 %v1325
      %1510 = vmatpush2.msra.mxu0 %v1324
      %1511 = vmatprep.subr.mxu0 %v1323
      %1512 = vmatpush2.msra.mxu0 %v1322
      %1513 = vmatprep.subr.mxu0 %v1321
      %1514 = vmatpush2.msra.mxu0 %v1320
      %1515 = vmatprep.subr.mxu0 %v1319
      %1516 = vmatpush2.msra.mxu0 %v1318
      %1517 = vmatprep.subr.mxu0 %v1317
      %1518 = vmatpush2.msra.mxu0 %v1316
      %1519 = vmatprep.subr.mxu0 %v1315
      %1520 = vmatpush2.msra.mxu0 %v1314
      %1521 = vmatprep.subr.mxu0 %v1313
      %1522 = vmatpush2.msra.mxu0 %v1312
      %1523 = vmatprep.subr.mxu0 %v1311
      %1524 = vmatpush2.msra.mxu0 %v1310
      %1525 = vmatprep.subr.mxu0 %v1309
      %1526 = vmatpush2.msra.mxu0 %v1308
      %1527 = vmatprep.subr.mxu0 %v1307
      %1528 = vmatpush2.msra.mxu0 %v1306
      %1529 = vmatprep.subr.mxu0 %v1305
      %1530 = vmatpush2.msra.mxu0 %v1304
      %1531 = vmatprep.subr.mxu0 %v1303
      %1532 = vmatpush2.msra.mxu0 %v1302
      %1533 = vmatprep.subr.mxu0 %v1301
      %1534 = vmatpush2.msra.mxu0 %v1300
      %1535 = vmatprep.mubr.f32.mxu0 %v1195
      %1536 = vmatmul.mubr.f32.gmra.mxu0 %v1194
      %v1537 = vpop.f32.mrf.mxu0
      %v1538 = vadd.f32 %v1461, %v1537
      %v1539 = vpop.f32.mrf.mxu0
      %v1540 = vadd.f32 %v1463, %v1539
      %1541 = vmatprep.mubr.f32.mxu0 %v1201
      %1542 = vmatmul.mubr.f32.gmra.mxu0 %v1200
      %v1543 = vpop.f32.mrf.mxu0
      %v1544 = vadd.f32 %v1467, %v1543
      %v1545 = vpop.f32.mrf.mxu0
      %v1546 = vadd.f32 %v1469, %v1545
      %1547 = vdwg.mxu0
      %1548 = vmatprep.subr.mxu0 %v1363
      %1549 = vmatpush1.msra.mxu0 %v1362
      %1550 = vmatprep.subr.mxu0 %v1361
      %1551 = vmatpush1.msra.mxu0 %v1360
      %1552 = vmatprep.subr.mxu0 %v1359
      %1553 = vmatpush1.msra.mxu0 %v1358
      %1554 = vmatprep.subr.mxu0 %v1357
      %1555 = vmatpush1.msra.mxu0 %v1356
      %1556 = vmatprep.subr.mxu0 %v1355
      %1557 = vmatpush1.msra.mxu0 %v1354
      %1558 = vmatprep.subr.mxu0 %v1353
      %1559 = vmatpush1.msra.mxu0 %v1352
      %1560 = vmatprep.subr.mxu0 %v1351
      %1561 = vmatpush1.msra.mxu0 %v1350
      %1562 = vmatprep.subr.mxu0 %v1349
      %1563 = vmatpush1.msra.mxu0 %v1348
      %1564 = vmatprep.subr.mxu0 %v1347
      %1565 = vmatpush1.msra.mxu0 %v1346
      %1566 = vmatprep.subr.mxu0 %v1345
      %1567 = vmatpush1.msra.mxu0 %v1344
      %1568 = vmatprep.subr.mxu0 %v1343
      %1569 = vmatpush1.msra.mxu0 %v1342
      %1570 = vmatprep.subr.mxu0 %v1341
      %1571 = vmatpush1.msra.mxu0 %v1340
      %1572 = vmatprep.subr.mxu0 %v1339
      %1573 = vmatpush1.msra.mxu0 %v1338
      %1574 = vmatprep.subr.mxu0 %v1337
      %1575 = vmatpush1.msra.mxu0 %v1336
      %1576 = vmatprep.subr.mxu0 %v1335
      %1577 = vmatpush1.msra.mxu0 %v1334
      %1578 = vmatprep.subr.mxu0 %v1333
      %1579 = vmatpush1.msra.mxu0 %v1332
      %1580 = vmatprep.subr.mxu0 0.0
      %1581 = vmatpush2.msra.mxu0 0.0
      %1582 = vmatprep.subr.mxu0 0.0
      %1583 = vmatpush2.msra.mxu0 0.0
      %1584 = vmatprep.subr.mxu0 0.0
      %1585 = vmatpush2.msra.mxu0 0.0
      %1586 = vmatprep.subr.mxu0 0.0
      %1587 = vmatpush2.msra.mxu0 0.0
      %1588 = vmatprep.subr.mxu0 0.0
      %1589 = vmatpush2.msra.mxu0 0.0
      %1590 = vmatprep.subr.mxu0 0.0
      %1591 = vmatpush2.msra.mxu0 0.0
      %1592 = vmatprep.subr.mxu0 0.0
      %1593 = vmatpush2.msra.mxu0 0.0
      %1594 = vmatprep.subr.mxu0 0.0
      %1595 = vmatpush2.msra.mxu0 0.0
      %1596 = vmatprep.subr.mxu0 %v1392
      %1597 = vmatpush2.msra.mxu0 %v1389
      %1598 = vmatprep.subr.mxu0 %v1377
      %1599 = vmatpush2.msra.mxu0 %v1376
      %1600 = vmatprep.subr.mxu0 %v1375
      %1601 = vmatpush2.msra.mxu0 %v1374
      %1602 = vmatprep.subr.mxu0 %v1373
      %1603 = vmatpush2.msra.mxu0 %v1372
      %1604 = vmatprep.subr.mxu0 %v1371
      %1605 = vmatpush2.msra.mxu0 %v1370
      %1606 = vmatprep.subr.mxu0 %v1369
      %1607 = vmatpush2.msra.mxu0 %v1368
      %1608 = vmatprep.subr.mxu0 %v1367
      %1609 = vmatpush2.msra.mxu0 %v1366
      %1610 = vmatprep.subr.mxu0 %v1365
      %1611 = vmatpush2.msra.mxu0 %v1364
      %1612 = vmatprep.mubr.f32.mxu0 %v1382
      %1613 = vmatmul.mubr.f32.gmra.mxu0 %v1196
      %v1614 = vpop.f32.mrf.mxu0
      %v1615 = vadd.f32 %v1538, %v1614
      %v1616 = vpop.f32.mrf.mxu0
      %v1617 = vadd.f32 %v1540, %v1616
      %1618 = vmatprep.mubr.f32.mxu0 %v1385
      %1619 = vmatmul.mubr.f32.gmra.mxu0 %v1202
      %v1620 = vpop.f32.mrf.mxu0
      %v1621 = vadd.f32 %v1544, %v1620
      %v1622 = vpop.f32.mrf.mxu0
      %v1623 = vadd.f32 %v1546, %v1622
      %1624 = vdwg.mxu0
      %1625 = vst [vmem:[%s194] sm:$0xff] %v1615
      %vm1626 = vcmask 351232
      %1627 = vst.msk [vmem:[%s194 + $0x8] sm:$0xff] %vm1626, %v1617
      %1628 = vst [vmem:[%s194 + $0x10] sm:$0xff] %v1621
      %1629 = vst.msk [vmem:[%s194 + $0x18] sm:$0xff] %vm1626, %v1623
      %p1630 = scmp.lt.s32.totalorder %s15, 1
      %s1631 = scalar_select %p1630, %s15, 1
      %s1632 = smul.addr %s1631, 4
      %s1633 = smul.addr %s1632, 8
      %s1634 = scalar_lea.vmem %s4, %s1633
      // Predicated region
      $region37: #{mnist_cnn_forward.3} parent=35 // pred_check
        %p1635 = pneg %p122
      $region38: #{mnist_cnn_forward.3} parent=35 // pred_check_branch
        %1637 = sbr.rel (%p1635) target = $region40
      $region39: #{mnist_cnn_forward.3} parent=35 // pred_region
        _
      $region40: #{mnist_cnn_forward.3} parent=35 // pred_fallthru
        _
    $region36: #{mnist_cnn_forward.3} parent=5 // pred_fallthru
      _
    %p1638 = scmp.le.s32.totalorder 2, %s10
    // Predicated region
    $region41: #{mnist_cnn_forward.3} parent=5 // pred_check
      %p1639 = pneg %p1638
    $region42: #{mnist_cnn_forward.3} parent=5 // pred_check_branch
      %1641 = sbr.rel (%p1639) target = $region44
    $region43: #{mnist_cnn_forward.3} parent=5 // pred_region
      %s1642 = ssub.s32 %s10, 2
      // Predicated region
      $region45: #{mnist_cnn_forward.3} parent=43 // pred_check
        %p1643 = pneg %p128
      $region46: #{mnist_cnn_forward.3} parent=43 // pred_check_branch
        %1645 = sbr.rel (%p1643) target = $region48
      $region47: #{mnist_cnn_forward.3} parent=43 // pred_region
        %p1646 = scmp.lt.s32.totalorder %s16, 1
        %s1647 = scalar_select %p1646, %s16, 1
        %s1648 = smul.addr %s1647, 4
        %s1649 = smul.addr %s1648, 8
        %s1650 = scalar_lea.vmem %s4, %s1649
      $region48: #{mnist_cnn_forward.3} parent=43 // pred_fallthru
        _
    $region44: #{mnist_cnn_forward.3} parent=5 // pred_fallthru
      _
  $region6: #{mnist_cnn_forward.3} parent=0 // loop_footer
    %s14 = sadd.s32 1, %s10
  $region7: #{mnist_cnn_forward.3} parent=0 // loop_footer_branch
    %9 = sbr.rel target = $region3
  $region8: #{mnist_cnn_forward.3} parent=0 // loop_exit
    _

// kernel: mnist_cnn_forward.5
$region0: #{mnist_cnn_forward.5}
  #allocation0 [shape = 'u32[]', space=smem, size = 0x4, offset = 0x4, fixed_abs, tag = 'smem constant byte address 0x4 - core index']
  #allocation1 [shape = 'u32[144,128]{1,0:T(1,128)}', space=vmem, size = 0x12000, scoped, tag = 'internal scratch']
  %s0 = inlined_call_operand.vmem [shape: f32[8,800], index: 0, kind: input, shape index: {}]
  %s1 = inlined_call_operand.vmem [shape: bf16[800,128], index: 1, kind: input, shape index: {}]
  %s2 = inlined_call_operand.vmem [shape: f32[1,128], index: 2, kind: input, shape index: {}]
  %s3 = inlined_call_operand.vmem [shape: bf16[128,10], index: 3, kind: input, shape index: {}]
  %s4 = inlined_call_operand.vmem [shape: f32[1,10], index: 4, kind: input, shape index: {}]
  %s5 = inlined_call_operand.vmem [shape: f32[8,10], index: 5, kind: output, shape index: {}]
  %s6 = sld [smem:[#allocation0]]
  $region30: #{mnist_cnn_forward.5} parent=0
    _
  %s8 = ssub.s32 1, %s6
  %s9 = scalar_select 0, %s8, %s6
  // Predicated region
  $region2: #{mnist_cnn_forward.5} parent=0 // pred_check
    _
  $region3: #{mnist_cnn_forward.5} parent=0 // pred_check_branch
    %11 = sbr.rel (0) target = $region5
  $region4: #{mnist_cnn_forward.5} parent=0 // pred_region
    _
  $region5: #{mnist_cnn_forward.5} parent=0 // pred_fallthru
    _
  // Predicated region
  $region6: #{mnist_cnn_forward.5} parent=0 // pred_check
    _
  $region7: #{mnist_cnn_forward.5} parent=0 // pred_check_branch
    %13 = sbr.rel (0) target = $region9
  $region8: #{mnist_cnn_forward.5} parent=0 // pred_region
    _
  $region9: #{mnist_cnn_forward.5} parent=0 // pred_fallthru
    _
  // Predicated region
  $region10: #{mnist_cnn_forward.5} parent=0 // pred_check
    _
  $region11: #{mnist_cnn_forward.5} parent=0 // pred_check_branch
    %15 = sbr.rel (0) target = $region13
  $region12: #{mnist_cnn_forward.5} parent=0 // pred_region
    _
  $region13: #{mnist_cnn_forward.5} parent=0 // pred_fallthru
    _
  // Predicated region
  $region14: #{mnist_cnn_forward.5} parent=0 // pred_check
    _
  $region15: #{mnist_cnn_forward.5} parent=0 // pred_check_branch
    %17 = sbr.rel (0) target = $region17
  $region16: #{mnist_cnn_forward.5} parent=0 // pred_region
    _
  $region17: #{mnist_cnn_forward.5} parent=0 // pred_fallthru
    _
  // Predicated region
  $region18: #{mnist_cnn_forward.5} parent=0 // pred_check
    _
  $region19: #{mnist_cnn_forward.5} parent=0 // pred_check_branch
    %19 = sbr.rel (0) target = $region21
  $region20: #{mnist_cnn_forward.5} parent=0 // pred_region
    _
  $region21: #{mnist_cnn_forward.5} parent=0 // pred_fallthru
    _
  %v21 = vld [vmem:[%s0] sm:$0xff]
  %v22 = vld [vmem:[%s0 + $0x8] sm:$0xff]
  %v23 = vld [vmem:[%s0 + $0x10] sm:$0xff]
  %v24 = vld [vmem:[%s0 + $0x18] sm:$0xff]
  %v25 = vld [vmem:[%s0 + $0x20] sm:$0xff]
  %v26 = vld [vmem:[%s0 + $0x28] sm:$0xff]
  %v27 = vld [vmem:[%s0 + $0x30] sm:$0xff]
  %v28 = vpack.c.bf16 %v21, %v21
  %v29 = vpack.c.bf16 %v22, %v22
  %v30 = vpack.c.bf16 %v23, %v23
  %v31 = vpack.c.bf16 %v24, %v24
  %v32 = vpack.c.bf16 %v25, %v25
  %v33 = vpack.c.bf16 %v26, %v26
  %v34 = vpack.c.bf16 %v27, %v27
  %v35 = vld [vmem:[%s1] sm:$0xf]
  %v36 = vld [vmem:[%s1 + $0x4] sm:$0xf]
  %v37 = vld [vmem:[%s1 + $0x8] sm:$0xf]
  %v38 = vld [vmem:[%s1 + $0xc] sm:$0xf]
  %v39 = vld [vmem:[%s1 + $0x10] sm:$0xf]
  %v40 = vld [vmem:[%s1 + $0x14] sm:$0xf]
  %v41 = vld [vmem:[%s1 + $0x18] sm:$0xf]
  %v42 = vld [vmem:[%s1 + $0x1c] sm:$0xf]
  %v43 = vld [vmem:[%s1 + $0x20] sm:$0xf]
  %v44 = vld [vmem:[%s1 + $0x24] sm:$0xf]
  %v45 = vld [vmem:[%s1 + $0x28] sm:$0xf]
  %v46 = vld [vmem:[%s1 + $0x2c] sm:$0xf]
  %v47 = vld [vmem:[%s1 + $0x30] sm:$0xf]
  %v48 = vld [vmem:[%s1 + $0x34] sm:$0xf]
  %v49 = vld [vmem:[%s1 + $0x38] sm:$0xf]
  %v50 = vld [vmem:[%s1 + $0x3c] sm:$0xf]
  %v51 = vld [vmem:[%s1 + $0x40] sm:$0xf]
  %v52 = vld [vmem:[%s1 + $0x44] sm:$0xf]
  %v53 = vld [vmem:[%s1 + $0x48] sm:$0xf]
  %v54 = vld [vmem:[%s1 + $0x4c] sm:$0xf]
  %v55 = vld [vmem:[%s1 + $0x50] sm:$0xf]
  %v56 = vld [vmem:[%s1 + $0x54] sm:$0xf]
  %v57 = vld [vmem:[%s1 + $0x58] sm:$0xf]
  %v58 = vld [vmem:[%s1 + $0x5c] sm:$0xf]
  %v59 = vld [vmem:[%s1 + $0x60] sm:$0xf]
  %v60 = vld [vmem:[%s1 + $0x64] sm:$0xf]
  %v61 = vld [vmem:[%s1 + $0x68] sm:$0xf]
  %v62 = vld [vmem:[%s1 + $0x6c] sm:$0xf]
  %v63 = vld [vmem:[%s1 + $0x70] sm:$0xf]
  %v64 = vld [vmem:[%s1 + $0x74] sm:$0xf]
  %v65 = vld [vmem:[%s1 + $0x78] sm:$0xf]
  %v66 = vld [vmem:[%s1 + $0x7c] sm:$0xf]
  %v67 = vld [vmem:[%s1 + $0x80] sm:$0xf]
  %v68 = vld [vmem:[%s1 + $0x84] sm:$0xf]
  %v69 = vld [vmem:[%s1 + $0x88] sm:$0xf]
  %v70 = vld [vmem:[%s1 + $0x8c] sm:$0xf]
  %v71 = vld [vmem:[%s1 + $0x90] sm:$0xf]
  %v72 = vld [vmem:[%s1 + $0x94] sm:$0xf]
  %v73 = vld [vmem:[%s1 + $0x98] sm:$0xf]
  %v74 = vld [vmem:[%s1 + $0x9c] sm:$0xf]
  %v75 = vld [vmem:[%s1 + $0xa0] sm:$0xf]
  %v76 = vld [vmem:[%s1 + $0xa4] sm:$0xf]
  %v77 = vld [vmem:[%s1 + $0xa8] sm:$0xf]
  %v78 = vld [vmem:[%s1 + $0xac] sm:$0xf]
  %v79 = vld [vmem:[%s1 + $0xb0] sm:$0xf]
  %v80 = vld [vmem:[%s1 + $0xb4] sm:$0xf]
  %v81 = vld [vmem:[%s1 + $0xb8] sm:$0xf]
  %v82 = vld [vmem:[%s1 + $0xbc] sm:$0xf]
  %v83 = vld [vmem:[%s1 + $0xc0] sm:$0xf]
  %v84 = vld [vmem:[%s1 + $0xc4] sm:$0xf]
  %v85 = vld [vmem:[%s1 + $0xc8] sm:$0xf]
  %v86 = vld [vmem:[%s1 + $0xcc] sm:$0xf]
  %v87 = vld [vmem:[%s1 + $0xd0] sm:$0xf]
  %v88 = vld [vmem:[%s1 + $0xd4] sm:$0xf]
  %v89 = vld [vmem:[%s1 + $0xd8] sm:$0xf]
  %v90 = vld [vmem:[%s1 + $0xdc] sm:$0xf]
  %v91 = vld [vmem:[%s1 + $0xe0] sm:$0xf]
  %v92 = vld [vmem:[%s1 + $0xe4] sm:$0xf]
  %v93 = vld [vmem:[%s1 + $0xe8] sm:$0xf]
  %v94 = vld [vmem:[%s1 + $0xec] sm:$0xf]
  %v95 = vld [vmem:[%s1 + $0xf0] sm:$0xf]
  %v96 = vld [vmem:[%s1 + $0xf4] sm:$0xf]
  %v97 = vld [vmem:[%s1 + $0xf8] sm:$0xf]
  %v98 = vld [vmem:[%s1 + $0xfc] sm:$0xf]
  %v99 = vld [vmem:[%s1 + $0x100] sm:$0xf]
  %v100 = vld [vmem:[%s1 + $0x104] sm:$0xf]
  %v101 = vld [vmem:[%s1 + $0x108] sm:$0xf]
  %v102 = vld [vmem:[%s1 + $0x10c] sm:$0xf]
  %v103 = vld [vmem:[%s1 + $0x110] sm:$0xf]
  %v104 = vld [vmem:[%s1 + $0x114] sm:$0xf]
  %v105 = vld [vmem:[%s1 + $0x118] sm:$0xf]
  %v106 = vld [vmem:[%s1 + $0x11c] sm:$0xf]
  %v107 = vld [vmem:[%s1 + $0x120] sm:$0xf]
  %v108 = vld [vmem:[%s1 + $0x124] sm:$0xf]
  %v109 = vld [vmem:[%s1 + $0x128] sm:$0xf]
  %v110 = vld [vmem:[%s1 + $0x12c] sm:$0xf]
  %v111 = vld [vmem:[%s1 + $0x130] sm:$0xf]
  %v112 = vld [vmem:[%s1 + $0x134] sm:$0xf]
  %v113 = vld [vmem:[%s1 + $0x138] sm:$0xf]
  %v114 = vld [vmem:[%s1 + $0x13c] sm:$0xf]
  %v115 = vld [vmem:[%s1 + $0x140] sm:$0xf]
  %v116 = vld [vmem:[%s1 + $0x144] sm:$0xf]
  %v117 = vld [vmem:[%s1 + $0x148] sm:$0xf]
  %v118 = vld [vmem:[%s1 + $0x14c] sm:$0xf]
  %v119 = vld [vmem:[%s1 + $0x150] sm:$0xf]
  %v120 = vld [vmem:[%s1 + $0x154] sm:$0xf]
  %v121 = vld [vmem:[%s1 + $0x158] sm:$0xf]
  %v122 = vld [vmem:[%s1 + $0x15c] sm:$0xf]
  %v123 = vld [vmem:[%s1 + $0x160] sm:$0xf]
  %v124 = vld [vmem:[%s1 + $0x164] sm:$0xf]
  %v125 = vld [vmem:[%s1 + $0x168] sm:$0xf]
  %v126 = vld [vmem:[%s1 + $0x16c] sm:$0xf]
  %v127 = vld [vmem:[%s1 + $0x170] sm:$0xf]
  %v128 = vld [vmem:[%s1 + $0x174] sm:$0xf]
  %v129 = vld [vmem:[%s1 + $0x178] sm:$0xf]
  %v130 = vld [vmem:[%s1 + $0x17c] sm:$0xf]
  %v131 = vld [vmem:[%s1 + $0x180] sm:$0xf]
  %v132 = vld [vmem:[%s1 + $0x184] sm:$0xf]
  %v133 = vld [vmem:[%s1 + $0x188] sm:$0xf]
  %v134 = vld [vmem:[%s1 + $0x18c] sm:$0xf]
  %v135 = vld [vmem:[%s2] sm:$0x1]
  %v137 = vlaneseq
  %v138 = vshrl.u32 %v137, 7
  %v139 = vsub.s32 0, %v138
  %v140 = vrot.slane %v135, %v139
  %v242 = vunpack.c.l.b16 %v35
  %v243 = vunpack.c.l.b16 %v36
  %v244 = vunpack.c.l.b16 %v37
  %v245 = vunpack.c.l.b16 %v38
  %v246 = vunpack.c.l.b16 %v39
  %v247 = vunpack.c.l.b16 %v40
  %v248 = vunpack.c.l.b16 %v41
  %v249 = vunpack.c.l.b16 %v42
  %v250 = vunpack.c.l.b16 %v43
  %v251 = vunpack.c.l.b16 %v44
  %v252 = vunpack.c.l.b16 %v45
  %v253 = vunpack.c.l.b16 %v46
  %v254 = vunpack.c.l.b16 %v47
  %v255 = vunpack.c.l.b16 %v48
  %v256 = vunpack.c.l.b16 %v49
  %v257 = vunpack.c.l.b16 %v50
  %v258 = vunpack.c.l.b16 %v51
  %v259 = vunpack.c.l.b16 %v52
  %v260 = vunpack.c.l.b16 %v53
  %v261 = vunpack.c.l.b16 %v54
  %v262 = vunpack.c.l.b16 %v55
  %v263 = vunpack.c.l.b16 %v56
  %v264 = vunpack.c.l.b16 %v57
  %v265 = vunpack.c.l.b16 %v58
  %v266 = vunpack.c.l.b16 %v59
  %v267 = vunpack.c.l.b16 %v60
  %v268 = vunpack.c.l.b16 %v61
  %v269 = vunpack.c.l.b16 %v62
  %v270 = vunpack.c.l.b16 %v63
  %v271 = vunpack.c.l.b16 %v64
  %v272 = vunpack.c.l.b16 %v65
  %v273 = vunpack.c.l.b16 %v66
  %v274 = vunpack.c.l.b16 %v67
  %v275 = vunpack.c.l.b16 %v68
  %v276 = vunpack.c.l.b16 %v69
  %v277 = vunpack.c.l.b16 %v70
  %v278 = vunpack.c.l.b16 %v71
  %v279 = vunpack.c.l.b16 %v72
  %v280 = vunpack.c.l.b16 %v73
  %v281 = vunpack.c.l.b16 %v74
  %v282 = vunpack.c.l.b16 %v75
  %v283 = vunpack.c.l.b16 %v76
  %v284 = vunpack.c.l.b16 %v77
  %v285 = vunpack.c.l.b16 %v78
  %v286 = vunpack.c.l.b16 %v79
  %v287 = vunpack.c.l.b16 %v80
  %v288 = vunpack.c.l.b16 %v81
  %v289 = vunpack.c.l.b16 %v82
  %v290 = vunpack.c.l.b16 %v83
  %v291 = vunpack.c.l.b16 %v84
  %v292 = vunpack.c.l.b16 %v85
  %v293 = vunpack.c.l.b16 %v86
  %v294 = vunpack.c.l.b16 %v87
  %v295 = vunpack.c.l.b16 %v88
  %v296 = vunpack.c.l.b16 %v89
  %v297 = vunpack.c.l.b16 %v90
  %v298 = vunpack.c.l.b16 %v91
  %v299 = vunpack.c.l.b16 %v92
  %v300 = vunpack.c.l.b16 %v93
  %v301 = vunpack.c.l.b16 %v94
  %v302 = vunpack.c.l.b16 %v95
  %v303 = vunpack.c.l.b16 %v96
  %v304 = vunpack.c.l.b16 %v97
  %v305 = vunpack.c.l.b16 %v98
  %v306 = vunpack.c.l.b16 %v99
  %v307 = vunpack.c.l.b16 %v100
  %v308 = vunpack.c.l.b16 %v101
  %v309 = vunpack.c.l.b16 %v102
  %v310 = vunpack.c.l.b16 %v103
  %v311 = vunpack.c.l.b16 %v104
  %v312 = vunpack.c.l.b16 %v105
  %v313 = vunpack.c.l.b16 %v106
  %v314 = vunpack.c.l.b16 %v107
  %v315 = vunpack.c.l.b16 %v108
  %v316 = vunpack.c.l.b16 %v109
  %v317 = vunpack.c.l.b16 %v110
  %v318 = vunpack.c.l.b16 %v111
  %v319 = vunpack.c.l.b16 %v112
  %v320 = vunpack.c.l.b16 %v113
  %v321 = vunpack.c.l.b16 %v114
  %v322 = vunpack.c.l.b16 %v115
  %v323 = vunpack.c.l.b16 %v116
  %v324 = vunpack.c.l.b16 %v117
  %v325 = vunpack.c.l.b16 %v118
  %v326 = vunpack.c.l.b16 %v119
  %v327 = vunpack.c.l.b16 %v120
  %v328 = vunpack.c.l.b16 %v121
  %v329 = vunpack.c.l.b16 %v122
  %v330 = vunpack.c.l.b16 %v123
  %v331 = vunpack.c.l.b16 %v124
  %v332 = vunpack.c.l.b16 %v125
  %v333 = vunpack.c.l.b16 %v126
  %v334 = vunpack.c.l.b16 %v127
  %v335 = vunpack.c.l.b16 %v128
  %v336 = vunpack.c.l.b16 %v129
  %v337 = vunpack.c.l.b16 %v130
  %v338 = vunpack.c.l.b16 %v131
  %v339 = vunpack.c.l.b16 %v132
  %v340 = vunpack.c.l.b16 %v133
  %v341 = vunpack.c.l.b16 %v134
  %v342 = vpack.c.b16 %v243, %v242
  %v343 = vpack.c.b16 %v245, %v244
  %v344 = vpack.c.b16 %v247, %v246
  %v345 = vpack.c.b16 %v249, %v248
  %v346 = vpack.c.b16 %v251, %v250
  %v347 = vpack.c.b16 %v253, %v252
  %v348 = vpack.c.b16 %v255, %v254
  %v349 = vpack.c.b16 %v257, %v256
  %v350 = vpack.c.b16 %v259, %v258
  %v351 = vpack.c.b16 %v261, %v260
  %v352 = vpack.c.b16 %v263, %v262
  %v353 = vpack.c.b16 %v265, %v264
  %v354 = vpack.c.b16 %v267, %v266
  %v355 = vpack.c.b16 %v269, %v268
  %v356 = vpack.c.b16 %v271, %v270
  %v357 = vpack.c.b16 %v273, %v272
  %v358 = vpack.c.b16 %v275, %v274
  %v359 = vpack.c.b16 %v277, %v276
  %v360 = vpack.c.b16 %v279, %v278
  %v361 = vpack.c.b16 %v281, %v280
  %v362 = vpack.c.b16 %v283, %v282
  %v363 = vpack.c.b16 %v285, %v284
  %v364 = vpack.c.b16 %v287, %v286
  %v365 = vpack.c.b16 %v289, %v288
  %v366 = vpack.c.b16 %v291, %v290
  %v367 = vpack.c.b16 %v293, %v292
  %v368 = vpack.c.b16 %v295, %v294
  %v369 = vpack.c.b16 %v297, %v296
  %v370 = vpack.c.b16 %v299, %v298
  %v371 = vpack.c.b16 %v301, %v300
  %v372 = vpack.c.b16 %v303, %v302
  %v373 = vpack.c.b16 %v305, %v304
  %v374 = vpack.c.b16 %v307, %v306
  %v375 = vpack.c.b16 %v309, %v308
  %v376 = vpack.c.b16 %v311, %v310
  %v377 = vpack.c.b16 %v313, %v312
  %v378 = vpack.c.b16 %v315, %v314
  %v379 = vpack.c.b16 %v317, %v316
  %v380 = vpack.c.b16 %v319, %v318
  %v381 = vpack.c.b16 %v321, %v320
  %v382 = vpack.c.b16 %v323, %v322
  %v383 = vpack.c.b16 %v325, %v324
  %v384 = vpack.c.b16 %v327, %v326
  %v385 = vpack.c.b16 %v329, %v328
  %v386 = vpack.c.b16 %v331, %v330
  %v387 = vpack.c.b16 %v333, %v332
  %v388 = vpack.c.b16 %v335, %v334
  %v389 = vpack.c.b16 %v337, %v336
  %v390 = vpack.c.b16 %v339, %v338
  %v391 = vpack.c.b16 %v341, %v340
  %vm442 = vcmask 261120
  %v444 = vsel %vm442, %v34, 0
  %446 = vmatprep.subr.bf16.mxu0 0
  %447 = vmatpush1.bf16.msra.mxu0 %v349
  %448 = vmatprep.subr.bf16.mxu0 0
  %449 = vmatpush1.bf16.msra.mxu0 %v348
  %450 = vmatprep.subr.bf16.mxu0 0
  %451 = vmatpush1.bf16.msra.mxu0 %v347
  %452 = vmatprep.subr.bf16.mxu0 0
  %453 = vmatpush1.bf16.msra.mxu0 %v346
  %454 = vmatprep.subr.bf16.mxu0 0
  %455 = vmatpush1.bf16.msra.mxu0 %v345
  %456 = vmatprep.subr.bf16.mxu0 0
  %457 = vmatpush1.bf16.msra.mxu0 %v344
  %458 = vmatprep.subr.bf16.mxu0 0
  %459 = vmatpush1.bf16.msra.mxu0 %v343
  %460 = vmatprep.subr.bf16.mxu0 0
  %461 = vmatpush1.bf16.msra.mxu0 %v342
  %462 = vmatprep.subr.bf16.mxu0 0
  %463 = vmatpush2.bf16.msra.mxu0 %v357
  %464 = vmatprep.subr.bf16.mxu0 0
  %465 = vmatpush2.bf16.msra.mxu0 %v356
  %466 = vmatprep.subr.bf16.mxu0 0
  %467 = vmatpush2.bf16.msra.mxu0 %v355
  %468 = vmatprep.subr.bf16.mxu0 0
  %469 = vmatpush2.bf16.msra.mxu0 %v354
  %470 = vmatprep.subr.bf16.mxu0 0
  %471 = vmatpush2.bf16.msra.mxu0 %v353
  %472 = vmatprep.subr.bf16.mxu0 0
  %473 = vmatpush2.bf16.msra.mxu0 %v352
  %474 = vmatprep.subr.bf16.mxu0 0
  %475 = vmatpush2.bf16.msra.mxu0 %v351
  %476 = vmatprep.subr.bf16.mxu0 0
  %477 = vmatpush2.bf16.msra.mxu0 %v350
  %478 = vmatprep.mubr.bf16.mxu0 %v29
  %479 = vmatmul.mubr.bf16.gmra.mxu0 %v28
  %v480 = vpop.f32.mrf.mxu0
  %v481 = vadd.f32 %v140, %v480
  %v482 = vpop.f32.mrf.mxu0
  %v483 = vpop.f32.mrf.mxu0
  %v484 = vpop.f32.mrf.mxu0
  %485 = vdwg.mxu0
  %486 = vmatprep.subr.bf16.mxu0 0
  %487 = vmatpush1.bf16.msra.mxu0 %v365
  %488 = vmatprep.subr.bf16.mxu0 0
  %489 = vmatpush1.bf16.msra.mxu0 %v364
  %490 = vmatprep.subr.bf16.mxu0 0
  %491 = vmatpush1.bf16.msra.mxu0 %v363
  %492 = vmatprep.subr.bf16.mxu0 0
  %493 = vmatpush1.bf16.msra.mxu0 %v362
  %494 = vmatprep.subr.bf16.mxu0 0
  %495 = vmatpush1.bf16.msra.mxu0 %v361
  %496 = vmatprep.subr.bf16.mxu0 0
  %497 = vmatpush1.bf16.msra.mxu0 %v360
  %498 = vmatprep.subr.bf16.mxu0 0
  %499 = vmatpush1.bf16.msra.mxu0 %v359
  %500 = vmatprep.subr.bf16.mxu0 0
  %501 = vmatpush1.bf16.msra.mxu0 %v358
  %502 = vmatprep.subr.bf16.mxu0 0
  %503 = vmatpush2.bf16.msra.mxu0 %v373
  %504 = vmatprep.subr.bf16.mxu0 0
  %505 = vmatpush2.bf16.msra.mxu0 %v372
  %506 = vmatprep.subr.bf16.mxu0 0
  %507 = vmatpush2.bf16.msra.mxu0 %v371
  %508 = vmatprep.subr.bf16.mxu0 0
  %509 = vmatpush2.bf16.msra.mxu0 %v370
  %510 = vmatprep.subr.bf16.mxu0 0
  %511 = vmatpush2.bf16.msra.mxu0 %v369
  %512 = vmatprep.subr.bf16.mxu0 0
  %513 = vmatpush2.bf16.msra.mxu0 %v368
  %514 = vmatprep.subr.bf16.mxu0 0
  %515 = vmatpush2.bf16.msra.mxu0 %v367
  %516 = vmatprep.subr.bf16.mxu0 0
  %517 = vmatpush2.bf16.msra.mxu0 %v366
  %518 = vmatprep.mubr.bf16.mxu0 %v31
  %519 = vmatmul.mubr.bf16.gmra.mxu0 %v30
  %v520 = vpop.f32.mrf.mxu0
  %v521 = vadd.f32 %v481, %v520
  %v522 = vpop.f32.mrf.mxu0
  %v523 = vpop.f32.mrf.mxu0
  %v524 = vpop.f32.mrf.mxu0
  %525 = vdwg.mxu0
  %526 = vmatprep.subr.bf16.mxu0 0
  %527 = vmatpush1.bf16.msra.mxu0 %v381
  %528 = vmatprep.subr.bf16.mxu0 0
  %529 = vmatpush1.bf16.msra.mxu0 %v380
  %530 = vmatprep.subr.bf16.mxu0 0
  %531 = vmatpush1.bf16.msra.mxu0 %v379
  %532 = vmatprep.subr.bf16.mxu0 0
  %533 = vmatpush1.bf16.msra.mxu0 %v378
  %534 = vmatprep.subr.bf16.mxu0 0
  %535 = vmatpush1.bf16.msra.mxu0 %v377
  %536 = vmatprep.subr.bf16.mxu0 0
  %537 = vmatpush1.bf16.msra.mxu0 %v376
  %538 = vmatprep.subr.bf16.mxu0 0
  %539 = vmatpush1.bf16.msra.mxu0 %v375
  %540 = vmatprep.subr.bf16.mxu0 0
  %541 = vmatpush1.bf16.msra.mxu0 %v374
  %542 = vmatprep.subr.bf16.mxu0 0
  %543 = vmatpush2.bf16.msra.mxu0 %v389
  %544 = vmatprep.subr.bf16.mxu0 0
  %545 = vmatpush2.bf16.msra.mxu0 %v388
  %546 = vmatprep.subr.bf16.mxu0 0
  %547 = vmatpush2.bf16.msra.mxu0 %v387
  %548 = vmatprep.subr.bf16.mxu0 0
  %549 = vmatpush2.bf16.msra.mxu0 %v386
  %550 = vmatprep.subr.bf16.mxu0 0
  %551 = vmatpush2.bf16.msra.mxu0 %v385
  %552 = vmatprep.subr.bf16.mxu0 0
  %553 = vmatpush2.bf16.msra.mxu0 %v384
  %554 = vmatprep.subr.bf16.mxu0 0
  %555 = vmatpush2.bf16.msra.mxu0 %v383
  %556 = vmatprep.subr.bf16.mxu0 0
  %557 = vmatpush2.bf16.msra.mxu0 %v382
  %558 = vmatprep.mubr.bf16.mxu0 %v33
  %559 = vmatmul.mubr.bf16.gmra.mxu0 %v32
  %v560 = vpop.f32.mrf.mxu0
  %v561 = vadd.f32 %v521, %v560
  %v562 = vpop.f32.mrf.mxu0
  %v563 = vpop.f32.mrf.mxu0
  %v564 = vpop.f32.mrf.mxu0
  %565 = vdwg.mxu0
  %566 = vmatprep.subr.bf16.mxu0 0
  %567 = vmatpush1.bf16.msra.mxu0 0
  %568 = vmatprep.subr.bf16.mxu0 0
  %569 = vmatpush1.bf16.msra.mxu0 0
  %570 = vmatprep.subr.bf16.mxu0 0
  %571 = vmatpush1.bf16.msra.mxu0 0
  %572 = vmatprep.subr.bf16.mxu0 0
  %573 = vmatpush1.bf16.msra.mxu0 0
  %574 = vmatprep.subr.bf16.mxu0 0
  %575 = vmatpush1.bf16.msra.mxu0 0
  %576 = vmatprep.subr.bf16.mxu0 0
  %577 = vmatpush1.bf16.msra.mxu0 0
  %578 = vmatprep.subr.bf16.mxu0 0
  %579 = vmatpush1.bf16.msra.mxu0 %v391
  %580 = vmatprep.subr.bf16.mxu0 0
  %581 = vmatpush1.bf16.msra.mxu0 %v390
  %582 = vmatprep.subr.bf16.mxu0 0
  %583 = vmatpush2.bf16.msra.mxu0 0
  %584 = vmatprep.subr.bf16.mxu0 0
  %585 = vmatpush2.bf16.msra.mxu0 0
  %586 = vmatprep.subr.bf16.mxu0 0
  %587 = vmatpush2.bf16.msra.mxu0 0
  %588 = vmatprep.subr.bf16.mxu0 0
  %589 = vmatpush2.bf16.msra.mxu0 0
  %590 = vmatprep.subr.bf16.mxu0 0
  %591 = vmatpush2.bf16.msra.mxu0 0
  %592 = vmatprep.subr.bf16.mxu0 0
  %593 = vmatpush2.bf16.msra.mxu0 0
  %594 = vmatprep.subr.bf16.mxu0 0
  %595 = vmatpush2.bf16.msra.mxu0 0
  %596 = vmatprep.subr.bf16.mxu0 0
  %597 = vmatpush2.bf16.msra.mxu0 0
  %598 = vmatprep.mubr.bf16.mxu0 0
  %599 = vmatmul.mubr.bf16.gmra.mxu0 %v444
  %v600 = vpop.f32.mrf.mxu0
  %v601 = vadd.f32 %v561, %v600
  %v602 = vpop.f32.mrf.mxu0
  %v603 = vpop.f32.mrf.mxu0
  %v604 = vpop.f32.mrf.mxu0
  %605 = vdwg.mxu0
  %v606 = vmax.f32 %v601, 0.0
  %v607 = vpack.c.bf16 %v606, %v606
  %v608 = vld [vmem:[%s3] sm:$0xf]
  %v609 = vld [vmem:[%s3 + $0x4] sm:$0xf]
  %v610 = vld [vmem:[%s3 + $0x8] sm:$0xf]
  %v611 = vld [vmem:[%s3 + $0xc] sm:$0xf]
  %v612 = vld [vmem:[%s3 + $0x10] sm:$0xf]
  %v613 = vld [vmem:[%s3 + $0x14] sm:$0xf]
  %v614 = vld [vmem:[%s3 + $0x18] sm:$0xf]
  %v615 = vld [vmem:[%s3 + $0x1c] sm:$0xf]
  %v616 = vld [vmem:[%s3 + $0x20] sm:$0xf]
  %v617 = vld [vmem:[%s3 + $0x24] sm:$0xf]
  %v618 = vld [vmem:[%s3 + $0x28] sm:$0xf]
  %v619 = vld [vmem:[%s3 + $0x2c] sm:$0xf]
  %v620 = vld [vmem:[%s3 + $0x30] sm:$0xf]
  %v621 = vld [vmem:[%s3 + $0x34] sm:$0xf]
  %v622 = vld [vmem:[%s3 + $0x38] sm:$0xf]
  %v623 = vld [vmem:[%s3 + $0x3c] sm:$0xf]
  %v624 = vld [vmem:[%s4] sm:$0x1]
  %v626 = vlaneseq
  %v627 = vshrl.u32 %v626, 7
  %v628 = vsub.s32 0, %v627
  %v629 = vrot.slane %v624, %v628
  %v647 = vunpack.c.l.b16 %v608
  %v648 = vunpack.c.l.b16 %v609
  %v649 = vunpack.c.l.b16 %v610
  %v650 = vunpack.c.l.b16 %v611
  %v651 = vunpack.c.l.b16 %v612
  %v652 = vunpack.c.l.b16 %v613
  %v653 = vunpack.c.l.b16 %v614
  %v654 = vunpack.c.l.b16 %v615
  %v655 = vunpack.c.l.b16 %v616
  %v656 = vunpack.c.l.b16 %v617
  %v657 = vunpack.c.l.b16 %v618
  %v658 = vunpack.c.l.b16 %v619
  %v659 = vunpack.c.l.b16 %v620
  %v660 = vunpack.c.l.b16 %v621
  %v661 = vunpack.c.l.b16 %v622
  %v662 = vunpack.c.l.b16 %v623
  %v663 = vpack.c.b16 %v648, %v647
  %v664 = vpack.c.b16 %v650, %v649
  %v665 = vpack.c.b16 %v652, %v651
  %v666 = vpack.c.b16 %v654, %v653
  %v667 = vpack.c.b16 %v656, %v655
  %v668 = vpack.c.b16 %v658, %v657
  %v669 = vpack.c.b16 %v660, %v659
  %v670 = vpack.c.b16 %v662, %v661
  %679 = vmatprep.subr.bf16.mxu0 0
  %680 = vmatpush1.bf16.msra.mxu0 %v670
  %681 = vmatprep.subr.bf16.mxu0 0
  %682 = vmatpush1.bf16.msra.mxu0 %v669
  %683 = vmatprep.subr.bf16.mxu0 0
  %684 = vmatpush1.bf16.msra.mxu0 %v668
  %685 = vmatprep.subr.bf16.mxu0 0
  %686 = vmatpush1.bf16.msra.mxu0 %v667
  %687 = vmatprep.subr.bf16.mxu0 0
  %688 = vmatpush1.bf16.msra.mxu0 %v666
  %689 = vmatprep.subr.bf16.mxu0 0
  %690 = vmatpush1.bf16.msra.mxu0 %v665
  %691 = vmatprep.subr.bf16.mxu0 0
  %692 = vmatpush1.bf16.msra.mxu0 %v664
  %693 = vmatprep.subr.bf16.mxu0 0
  %694 = vmatpush1.bf16.msra.mxu0 %v663
  %695 = vmatprep.subr.bf16.mxu0 0
  %696 = vmatpush2.bf16.msra.mxu0 0
  %697 = vmatprep.subr.bf16.mxu0 0
  %698 = vmatpush2.bf16.msra.mxu0 0
  %699 = vmatprep.subr.bf16.mxu0 0
  %700 = vmatpush2.bf16.msra.mxu0 0
  %701 = vmatprep.subr.bf16.mxu0 0
  %702 = vmatpush2.bf16.msra.mxu0 0
  %703 = vmatprep.subr.bf16.mxu0 0
  %704 = vmatpush2.bf16.msra.mxu0 0
  %705 = vmatprep.subr.bf16.mxu0 0
  %706 = vmatpush2.bf16.msra.mxu0 0
  %707 = vmatprep.subr.bf16.mxu0 0
  %708 = vmatpush2.bf16.msra.mxu0 0
  %709 = vmatprep.subr.bf16.mxu0 0
  %710 = vmatpush2.bf16.msra.mxu0 0
  %711 = vmatprep.mubr.bf16.mxu0 0
  %712 = vmatmul.mubr.bf16.gmra.mxu0 %v607
  %v713 = vpop.f32.mrf.mxu0
  %v714 = vadd.f32 %v629, %v713
  %v715 = vpop.f32.mrf.mxu0
  %v716 = vpop.f32.mrf.mxu0
  %v717 = vpop.f32.mrf.mxu0
  %718 = vdwg.mxu0
  %v719 = vmax.f32 %v714, 0.0
  %vm720 = vcmask 80896
  %v721 = vsel %vm720, %v719, -inf
  %722 = vmax.xlane.f32.xlu0 %v721
  %v723 = vpop.xlane.xlu0 %722
  %v724 = vsub.f32 %v719, %v723
  %v725 = vmul.f32 %v724, 1.442695
  %v726 = vpow.pop %v725
  %v727 = vsel %vm720, %v726, 0.0
  %728 = vadd.xlane.f32.xlu0 %v727
  %v729 = vpop.xlane.xlu0 %728
  %v730 = vlog2.pop %v729
  %v731 = vmul.f32 %v730, 0.6931472
  %v732 = vadd.f32 %v723, %v731
  %v733 = vsub.f32 %v719, %v732
  %734 = vst.msk [vmem:[%s5] sm:$0xff] %vm720, %v733
  // Predicated region
  $region22: #{mnist_cnn_forward.5} parent=0 // pred_check
    _
  $region23: #{mnist_cnn_forward.5} parent=0 // pred_check_branch
    %736 = sbr.rel (0) target = $region25
  $region24: #{mnist_cnn_forward.5} parent=0 // pred_region
    _
  $region25: #{mnist_cnn_forward.5} parent=0 // pred_fallthru
    _
  // Predicated region
  $region26: #{mnist_cnn_forward.5} parent=0 // pred_check
    _
  $region27: #{mnist_cnn_forward.5} parent=0 // pred_check_branch
    %738 = sbr.rel (0) target = $region29
  $region28: #{mnist_cnn_forward.5} parent=0 // pred_region
    _
  $region29: #{mnist_cnn_forward.5} parent=0 // pred_fallthru
    _

// kernel: mnist_cnn_forward.4
$region0: #{mnist_cnn_forward.4}
  #allocation0 [shape = 'u32[]', space=smem, size = 0x4, offset = 0x4, fixed_abs, tag = 'smem constant byte address 0x4 - core index']
  #allocation1 [shape = 'u32[144,128]{1,0:T(1,128)}', space=vmem, size = 0x12000, scoped, tag = 'internal scratch']
  %s0 = inlined_call_operand.vmem [shape: f32[2,16,171], index: 0, kind: input, shape index: {}]
  %s1 = inlined_call_operand.vmem [shape: bf16[32,144], index: 1, kind: input, shape index: {}]
  %s2 = inlined_call_operand.vmem [shape: f32[32,1], index: 2, kind: input, shape index: {}]
  %s3 = inlined_call_operand.vmem [shape: f32[129,25], index: 3, kind: input, shape index: {}]
  %s4 = inlined_call_operand.vmem [shape: f32[2,32,25], index: 4, kind: output, shape index: {}]
  %s5 = sld [smem:[#allocation0]]
  $region49: #{mnist_cnn_forward.4} parent=0
    _
  %s7 = ssub.s32 1, %s5
  %s8 = scalar_select 0, %s7, %s5
  loop: start=0, step=1, limit=4
  $region2: #{mnist_cnn_forward.4} parent=0 // loop_pre_header
    _
  $region3: #{mnist_cnn_forward.4} parent=0 // loop_header
    %s10 = sphi 0, %s14
    %p11 = scmp.ge.s32.totalorder %s10, 4
    %s20 = sphi 0, %s22
    %s23 = sphi 0, %s20
    %s24 = sphi 0, %s23
    %s40 = sphi 0, %s24
    %s44 = sphi 0, %s44
    %s46 = sphi 0, %s44
    %s47 = sphi 0, %s46
    %s61 = sphi 0, %s47
    %s65 = sphi 0, %s65
    %s67 = sphi 0, %s65
    %s68 = sphi 0, %s67
    %s82 = sphi 0, %s68
    %s86 = sphi 0, %s86
    %s88 = sphi 0, %s86
    %s89 = sphi 0, %s88
    %s103 = sphi 0, %s89
    %s109 = sphi 0, %s111
    %s112 = sphi 0, %s109
    %s113 = sphi 0, %s112
    %s129 = sphi 0, %s113
  $region4: #{mnist_cnn_forward.4} parent=0 // loop_header_branch
    %13 = sbr.rel (%p11) target = $region8
  $region5: #{mnist_cnn_forward.4} parent=0 // loop_body
    %s15 = ssub.s32 %s10, 1
    %s16 = ssub.s32 %s10, 2
    %s17 = sadd.s32 %s10, 1
    %s18 = ssub.s32 %s10, %s17
    %p19 = scmp.eq.s32.totalorder %s18, 0
    %s21 = sadd.s32 %s20, 1
    %s22 = scalar_select %p19, %s20, %s21
    %p25 = pneg %p19
    %p26 = scmp.eq.s32.totalorder %s10, 1
    %p27 = por %p25, %p26
    %p28 = scmp.ne.s32.totalorder %s20, %s23
    %p29 = scmp.eq.s32.totalorder %s10, 0
    %p30 = por %p28, %p29
    %p31 = scmp.ne.s32.totalorder %s20, %s23
    %p32 = scmp.eq.s32.totalorder %s15, 1
    %p33 = por %p31, %p32
    %p34 = scmp.ne.s32.totalorder %s23, %s24
    %p35 = scmp.eq.s32.totalorder %s15, 0
    %p36 = por %p34, %p35
    %p37 = scmp.ne.s32.totalorder %s23, %s24
    %p38 = scmp.eq.s32.totalorder %s16, 1
    %p39 = por %p37, %p38
    %p41 = scmp.ne.s32.totalorder %s24, %s40
    %p42 = scmp.eq.s32.totalorder %s16, 0
    %p43 = por %p41, %p42
    %s45 = sadd.s32 %s44, 1
    %p48 = scmp.eq.s32.totalorder %s10, 1
    %p49 = scmp.ne.s32.totalorder %s44, %s46
    %p50 = scmp.eq.s32.totalorder %s10, 0
    %p51 = por %p49, %p50
    %p52 = scmp.ne.s32.totalorder %s44, %s46
    %p53 = scmp.eq.s32.totalorder %s15, 1
    %p54 = por %p52, %p53
    %p55 = scmp.ne.s32.totalorder %s46, %s47
    %p56 = scmp.eq.s32.totalorder %s15, 0
    %p57 = por %p55, %p56
    %p58 = scmp.ne.s32.totalorder %s46, %s47
    %p59 = scmp.eq.s32.totalorder %s16, 1
    %p60 = por %p58, %p59
    %p62 = scmp.ne.s32.totalorder %s47, %s61
    %p63 = scmp.eq.s32.totalorder %s16, 0
    %p64 = por %p62, %p63
    %s66 = sadd.s32 %s65, 1
    %p69 = scmp.eq.s32.totalorder %s10, 1
    %p70 = scmp.ne.s32.totalorder %s65, %s67
    %p71 = scmp.eq.s32.totalorder %s10, 0
    %p72 = por %p70, %p71
    %p73 = scmp.ne.s32.totalorder %s65, %s67
    %p74 = scmp.eq.s32.totalorder %s15, 1
    %p75 = por %p73, %p74
    %p76 = scmp.ne.s32.totalorder %s67, %s68
    %p77 = scmp.eq.s32.totalorder %s15, 0
    %p78 = por %p76, %p77
    %p79 = scmp.ne.s32.totalorder %s67, %s68
    %p80 = scmp.eq.s32.totalorder %s16, 1
    %p81 = por %p79, %p80
    %p83 = scmp.ne.s32.totalorder %s68, %s82
    %p84 = scmp.eq.s32.totalorder %s16, 0
    %p85 = por %p83, %p84
    %s87 = sadd.s32 %s86, 1
    %p90 = scmp.eq.s32.totalorder %s10, 1
    %p91 = scmp.ne.s32.totalorder %s86, %s88
    %p92 = scmp.eq.s32.totalorder %s10, 0
    %p93 = por %p91, %p92
    %p94 = scmp.ne.s32.totalorder %s86, %s88
    %p95 = scmp.eq.s32.totalorder %s15, 1
    %p96 = por %p94, %p95
    %p97 = scmp.ne.s32.totalorder %s88, %s89
    %p98 = scmp.eq.s32.totalorder %s15, 0
    %p99 = por %p97, %p98
    %p100 = scmp.ne.s32.totalorder %s88, %s89
    %p101 = scmp.eq.s32.totalorder %s16, 1
    %p102 = por %p100, %p101
    %p104 = scmp.ne.s32.totalorder %s89, %s103
    %p105 = scmp.eq.s32.totalorder %s16, 0
    %p106 = por %p104, %p105
    %s107 = ssub.s32 %s10, %s17
    %p108 = scmp.eq.s32.totalorder %s107, 0
    %s110 = sadd.s32 %s109, 1
    %s111 = scalar_select %p108, %s109, %s110
    %p114 = pneg %p108
    %p115 = scmp.eq.s32.totalorder %s10, 1
    %p116 = por %p114, %p115
    %p117 = scmp.ne.s32.totalorder %s109, %s112
    %p118 = scmp.eq.s32.totalorder %s10, 0
    %p119 = por %p117, %p118
    %p120 = scmp.ne.s32.totalorder %s109, %s112
    %p121 = scmp.eq.s32.totalorder %s15, 1
    %p122 = por %p120, %p121
    %p123 = scmp.ne.s32.totalorder %s112, %s113
    %p124 = scmp.eq.s32.totalorder %s15, 0
    %p125 = por %p123, %p124
    %p126 = scmp.ne.s32.totalorder %s112, %s113
    %p127 = scmp.eq.s32.totalorder %s16, 1
    %p128 = por %p126, %p127
    %p130 = scmp.ne.s32.totalorder %s113, %s129
    %p131 = scmp.eq.s32.totalorder %s16, 0
    %p132 = por %p130, %p131
    %p133 = scmp.le.s32.totalorder 1, %s10
    %p134 = scmp.lt.s32.totalorder %s10, 3
    %p135 = pnand %p133, %p134
    %p136 = pneg %p135
    // Predicated region
    $region9: #{mnist_cnn_forward.4} parent=5 // pred_check
      _
    $region10: #{mnist_cnn_forward.4} parent=5 // pred_check_branch
      %138 = sbr.rel (%p135) target = $region12
    $region11: #{mnist_cnn_forward.4} parent=5 // pred_region
      %s139 = ssub.s32 %s10, 1
      // Predicated region
      $region13: #{mnist_cnn_forward.4} parent=11 // pred_check
        %p140 = pneg %p57
      $region14: #{mnist_cnn_forward.4} parent=11 // pred_check_branch
        %142 = sbr.rel (%p140) target = $region16
      $region15: #{mnist_cnn_forward.4} parent=11 // pred_region
        _
      $region16: #{mnist_cnn_forward.4} parent=11 // pred_fallthru
        _
      // Predicated region
      $region17: #{mnist_cnn_forward.4} parent=11 // pred_check
        %p143 = pneg %p78
      $region18: #{mnist_cnn_forward.4} parent=11 // pred_check_branch
        %145 = sbr.rel (%p143) target = $region20
      $region19: #{mnist_cnn_forward.4} parent=11 // pred_region
        _
      $region20: #{mnist_cnn_forward.4} parent=11 // pred_fallthru
        _
      // Predicated region
      $region21: #{mnist_cnn_forward.4} parent=11 // pred_check
        %p146 = pneg %p99
      $region22: #{mnist_cnn_forward.4} parent=11 // pred_check_branch
        %148 = sbr.rel (%p146) target = $region24
      $region23: #{mnist_cnn_forward.4} parent=11 // pred_region
        _
      $region24: #{mnist_cnn_forward.4} parent=11 // pred_fallthru
        _
    $region12: #{mnist_cnn_forward.4} parent=5 // pred_fallthru
      _
    %p149 = scmp.lt.s32.totalorder %s10, 2
    // Predicated region
    $region25: #{mnist_cnn_forward.4} parent=5 // pred_check
      %p150 = pneg %p149
    $region26: #{mnist_cnn_forward.4} parent=5 // pred_check_branch
      %152 = sbr.rel (%p150) target = $region28
    $region27: #{mnist_cnn_forward.4} parent=5 // pred_region
      // Predicated region
      $region29: #{mnist_cnn_forward.4} parent=27 // pred_check
        %p153 = pneg %p30
      $region30: #{mnist_cnn_forward.4} parent=27 // pred_check_branch
        %155 = sbr.rel (%p153) target = $region32
      $region31: #{mnist_cnn_forward.4} parent=27 // pred_region
        %p156 = scmp.lt.s32.totalorder %s10, 1
        %s157 = scalar_select %p156, %s10, 1
        %s158 = smul.addr %s157, 4
        %s159 = smul.addr %s158, 8
        %s160 = scalar_lea.vmem %s0, %s159
      $region32: #{mnist_cnn_forward.4} parent=27 // pred_fallthru
        _
    $region28: #{mnist_cnn_forward.4} parent=5 // pred_fallthru
      _
    %p161 = scmp.le.s32.totalorder 1, %s10
    %p162 = scmp.lt.s32.totalorder %s10, 3
    %p163 = pnand %p161, %p162
    %p164 = pneg %p163
    // Predicated region
    $region33: #{mnist_cnn_forward.4} parent=5 // pred_check
      _
    $region34: #{mnist_cnn_forward.4} parent=5 // pred_check_branch
      %166 = sbr.rel (%p163) target = $region36
    $region35: #{mnist_cnn_forward.4} parent=5 // pred_region
      %s167 = ssub.s32 %s10, 1
      %p168 = scmp.lt.s32.totalorder %s15, 1
      %s169 = scalar_select %p168, %s15, 1
      %s170 = smul.addr %s169, 4
      %s171 = smul.addr %s170, 8
      %s172 = scalar_lea.vmem %s0, %s171
      %p173 = pneg %p36
      %p174 = pneg %p33
      %p175 = pneg %p57
      %p176 = pneg %p54
      %p177 = pneg %p78
      %p178 = pneg %p75
      %p179 = pneg %p99
      %p180 = pneg %p96
      %p181 = pneg %p125
      %p182 = pneg %p122
      %p183 = scmp.lt.s32.totalorder %s15, 1
      %s184 = scalar_select %p183, %s15, 1
      %s185 = smul.addr %s184, 4
      %s186 = smul.addr %s185, 8
      %s187 = scalar_lea.vmem %s4, %s186
      %p188 = scmp.lt.s32.totalorder %s15, 1
      %s189 = scalar_select %p188, %s15, 1
      %s190 = smul.addr %s189, 4
      %s191 = smul.addr %s190, 8
      %s192 = scalar_lea.vmem %s0, %s191
      %p193 = scmp.lt.s32.totalorder %s15, 1
      %s194 = scalar_select %p193, %s15, 1
      %s195 = smul.addr %s194, 4
      %s196 = smul.addr %s195, 8
      %s197 = scalar_lea.vmem %s4, %s196
      %v199 = vld [vmem:[%s192] sm:$0xff]
      %v200 = vld [vmem:[%s192 + $0x8] sm:$0xff]
      %v201 = vld [vmem:[%s192 + $0x10] sm:$0xff]
      %v202 = vld [vmem:[%s192 + $0x18] sm:$0xff]
      %v203 = vld [vmem:[%s1] sm:$0xf]
      %v204 = vld [vmem:[%s1 + $0x8] sm:$0xf]
      %v205 = vld [vmem:[%s1 + $0x10] sm:$0xf]
      %v206 = vld [vmem:[%s1 + $0x18] sm:$0xf]
      %v207 = vpack.c.bf16 %v201, %v199
      %v208 = vpack.c.bf16 %v202, %v200
      %v213 = vunpack.c.l.b16 %v203
      %v214 = vunpack.c.l.b16 %v204
      %v215 = vunpack.c.l.b16 %v205
      %v216 = vunpack.c.l.b16 %v206
      %v217 = vpack.c.b16 %v214, %v213
      %v218 = vpack.c.b16 %v216, %v215
      %219 = vrot.lane.b32.xlu0 %v217, 112
      %v220 = vpop.permute.xlu0 %219
      %221 = vrot.lane.b32.xlu0 %v218, 112
      %v222 = vpop.permute.xlu0 %221
      %225 = vrot.lane.b32.xlu0 %v207, 127
      %v226 = vpop.permute.xlu0 %225
      %227 = vrot.lane.b32.xlu0 %v208, 127
      %v228 = vpop.permute.xlu0 %227
      %vm229 = vcmask 1039360
      %v230 = vsel %vm229, %v226, %v228
      %vm233 = vcmask 130048
      %v235 = vsel %vm233, %v220, 0
      %v238 = vsel %vm233, %v222, 0
      %240 = vmatprep.subr.bf16.mxu0 0
      %241 = vmatpush1.bf16.msra.mxu0 0
      %242 = vmatprep.subr.bf16.mxu0 0
      %243 = vmatpush1.bf16.msra.mxu0 0
      %244 = vmatprep.subr.bf16.mxu0 0
      %245 = vmatpush1.bf16.msra.mxu0 0
      %246 = vmatprep.subr.bf16.mxu0 0
      %247 = vmatpush1.bf16.msra.mxu0 0
      %248 = vmatprep.subr.bf16.mxu0 0
      %249 = vmatpush1.bf16.msra.mxu0 0
      %250 = vmatprep.subr.bf16.mxu0 0
      %251 = vmatpush1.bf16.msra.mxu0 0
      %252 = vmatprep.subr.bf16.mxu0 0
      %253 = vmatpush1.bf16.msra.mxu0 0
      %254 = vmatprep.subr.bf16.mxu0 %v228
      %255 = vmatpush1.bf16.msra.mxu0 %v230
      %256 = vmatprep.subr.bf16.mxu0 0
      %257 = vmatpush2.bf16.msra.mxu0 0
      %258 = vmatprep.subr.bf16.mxu0 0
      %259 = vmatpush2.bf16.msra.mxu0 0
      %260 = vmatprep.subr.bf16.mxu0 0
      %261 = vmatpush2.bf16.msra.mxu0 0
      %262 = vmatprep.subr.bf16.mxu0 0
      %263 = vmatpush2.bf16.msra.mxu0 0
      %264 = vmatprep.subr.bf16.mxu0 0
      %265 = vmatpush2.bf16.msra.mxu0 0
      %266 = vmatprep.subr.bf16.mxu0 0
      %267 = vmatpush2.bf16.msra.mxu0 0
      %268 = vmatprep.subr.bf16.mxu0 0
      %269 = vmatpush2.bf16.msra.mxu0 0
      %270 = vmatprep.subr.bf16.mxu0 0
      %271 = vmatpush2.bf16.msra.mxu0 0
      %272 = vmatprep.mubr.bf16.mxu0 0
      %273 = vmatmul.mubr.bf16.gmra.mxu0 %v235
      %v274 = vpop.f32.mrf.mxu0
      %v275 = vadd.f32 0.0, %v274
      %v276 = vpop.f32.mrf.mxu0
      %v277 = vadd.f32 0.0, %v276
      %v278 = vpop.f32.mrf.mxu0
      %v279 = vadd.f32 0.0, %v278
      %v280 = vpop.f32.mrf.mxu0
      %v281 = vadd.f32 0.0, %v280
      %282 = vmatprep.mubr.bf16.mxu0 0
      %283 = vmatmul.mubr.bf16.gmra.mxu0 %v238
      %v284 = vpop.f32.mrf.mxu0
      %v285 = vadd.f32 0.0, %v284
      %v286 = vpop.f32.mrf.mxu0
      %v287 = vadd.f32 0.0, %v286
      %v288 = vpop.f32.mrf.mxu0
      %v289 = vadd.f32 0.0, %v288
      %v290 = vpop.f32.mrf.mxu0
      %v291 = vadd.f32 0.0, %v290
      %292 = vdwg.mxu0
      %v294 = vsel %vm233, %v217, 0
      %v297 = vsel %vm233, %v218, 0
      %299 = vmatprep.subr.bf16.mxu0 0
      %300 = vmatpush1.bf16.msra.mxu0 0
      %301 = vmatprep.subr.bf16.mxu0 0
      %302 = vmatpush1.bf16.msra.mxu0 0
      %303 = vmatprep.subr.bf16.mxu0 0
      %304 = vmatpush1.bf16.msra.mxu0 0
      %305 = vmatprep.subr.bf16.mxu0 0
      %306 = vmatpush1.bf16.msra.mxu0 0
      %307 = vmatprep.subr.bf16.mxu0 0
      %308 = vmatpush1.bf16.msra.mxu0 0
      %309 = vmatprep.subr.bf16.mxu0 0
      %310 = vmatpush1.bf16.msra.mxu0 0
      %311 = vmatprep.subr.bf16.mxu0 0
      %312 = vmatpush1.bf16.msra.mxu0 0
      %313 = vmatprep.subr.bf16.mxu0 %v208
      %314 = vmatpush1.bf16.msra.mxu0 %v207
      %315 = vmatprep.subr.bf16.mxu0 0
      %316 = vmatpush2.bf16.msra.mxu0 0
      %317 = vmatprep.subr.bf16.mxu0 0
      %318 = vmatpush2.bf16.msra.mxu0 0
      %319 = vmatprep.subr.bf16.mxu0 0
      %320 = vmatpush2.bf16.msra.mxu0 0
      %321 = vmatprep.subr.bf16.mxu0 0
      %322 = vmatpush2.bf16.msra.mxu0 0
      %323 = vmatprep.subr.bf16.mxu0 0
      %324 = vmatpush2.bf16.msra.mxu0 0
      %325 = vmatprep.subr.bf16.mxu0 0
      %326 = vmatpush2.bf16.msra.mxu0 0
      %327 = vmatprep.subr.bf16.mxu0 0
      %328 = vmatpush2.bf16.msra.mxu0 0
      %329 = vmatprep.subr.bf16.mxu0 0
      %330 = vmatpush2.bf16.msra.mxu0 0
      %331 = vmatprep.mubr.bf16.mxu0 0
      %332 = vmatmul.mubr.bf16.gmra.mxu0 %v294
      %v333 = vpop.f32.mrf.mxu0
      %v334 = vadd.f32 %v275, %v333
      %v335 = vpop.f32.mrf.mxu0
      %v336 = vadd.f32 %v277, %v335
      %v337 = vpop.f32.mrf.mxu0
      %v338 = vadd.f32 %v279, %v337
      %v339 = vpop.f32.mrf.mxu0
      %v340 = vadd.f32 %v281, %v339
      %341 = vmatprep.mubr.bf16.mxu0 0
      %342 = vmatmul.mubr.bf16.gmra.mxu0 %v297
      %v343 = vpop.f32.mrf.mxu0
      %v344 = vadd.f32 %v285, %v343
      %v345 = vpop.f32.mrf.mxu0
      %v346 = vadd.f32 %v287, %v345
      %v347 = vpop.f32.mrf.mxu0
      %v348 = vadd.f32 %v289, %v347
      %v349 = vpop.f32.mrf.mxu0
      %v350 = vadd.f32 %v291, %v349
      %351 = vdwg.mxu0
      %352 = vrot.lane.b32.xlu0 %v217, 96
      %v353 = vpop.permute.xlu0 %352
      %354 = vrot.lane.b32.xlu0 %v218, 96
      %v355 = vpop.permute.xlu0 %354
      %356 = vrot.lane.b32.xlu0 %v207, 126
      %v357 = vpop.permute.xlu0 %356
      %358 = vrot.lane.b32.xlu0 %v208, 126
      %v359 = vpop.permute.xlu0 %358
      %vm360 = vcmask 1031168
      %v361 = vsel %vm360, %v357, %v359
      %v365 = vsel %vm233, %v353, 0
      %v368 = vsel %vm233, %v355, 0
      %370 = vmatprep.subr.bf16.mxu0 0
      %371 = vmatpush1.bf16.msra.mxu0 0
      %372 = vmatprep.subr.bf16.mxu0 0
      %373 = vmatpush1.bf16.msra.mxu0 0
      %374 = vmatprep.subr.bf16.mxu0 0
      %375 = vmatpush1.bf16.msra.mxu0 0
      %376 = vmatprep.subr.bf16.mxu0 0
      %377 = vmatpush1.bf16.msra.mxu0 0
      %378 = vmatprep.subr.bf16.mxu0 0
      %379 = vmatpush1.bf16.msra.mxu0 0
      %380 = vmatprep.subr.bf16.mxu0 0
      %381 = vmatpush1.bf16.msra.mxu0 0
      %382 = vmatprep.subr.bf16.mxu0 0
      %383 = vmatpush1.bf16.msra.mxu0 0
      %384 = vmatprep.subr.bf16.mxu0 %v359
      %385 = vmatpush1.bf16.msra.mxu0 %v361
      %386 = vmatprep.subr.bf16.mxu0 0
      %387 = vmatpush2.bf16.msra.mxu0 0
      %388 = vmatprep.subr.bf16.mxu0 0
      %389 = vmatpush2.bf16.msra.mxu0 0
      %390 = vmatprep.subr.bf16.mxu0 0
      %391 = vmatpush2.bf16.msra.mxu0 0
      %392 = vmatprep.subr.bf16.mxu0 0
      %393 = vmatpush2.bf16.msra.mxu0 0
      %394 = vmatprep.subr.bf16.mxu0 0
      %395 = vmatpush2.bf16.msra.mxu0 0
      %396 = vmatprep.subr.bf16.mxu0 0
      %397 = vmatpush2.bf16.msra.mxu0 0
      %398 = vmatprep.subr.bf16.mxu0 0
      %399 = vmatpush2.bf16.msra.mxu0 0
      %400 = vmatprep.subr.bf16.mxu0 0
      %401 = vmatpush2.bf16.msra.mxu0 0
      %402 = vmatprep.mubr.bf16.mxu0 0
      %403 = vmatmul.mubr.bf16.gmra.mxu0 %v365
      %v404 = vpop.f32.mrf.mxu0
      %v405 = vadd.f32 0.0, %v404
      %v406 = vpop.f32.mrf.mxu0
      %v407 = vadd.f32 0.0, %v406
      %v408 = vpop.f32.mrf.mxu0
      %v409 = vadd.f32 0.0, %v408
      %v410 = vpop.f32.mrf.mxu0
      %v411 = vadd.f32 0.0, %v410
      %412 = vmatprep.mubr.bf16.mxu0 0
      %413 = vmatmul.mubr.bf16.gmra.mxu0 %v368
      %v414 = vpop.f32.mrf.mxu0
      %v415 = vadd.f32 0.0, %v414
      %v416 = vpop.f32.mrf.mxu0
      %v417 = vadd.f32 0.0, %v416
      %v418 = vpop.f32.mrf.mxu0
      %v419 = vadd.f32 0.0, %v418
      %v420 = vpop.f32.mrf.mxu0
      %v421 = vadd.f32 0.0, %v420
      %422 = vdwg.mxu0
      %v423 = vadd.f32 %v334, %v405
      %v424 = vadd.f32 %v336, %v407
      %v425 = vadd.f32 %v338, %v409
      %v426 = vadd.f32 %v340, %v411
      %v427 = vadd.f32 %v344, %v415
      %v428 = vadd.f32 %v346, %v417
      %v429 = vadd.f32 %v348, %v419
      %v430 = vadd.f32 %v350, %v421
      %431 = vrot.lane.b32.xlu0 %v217, 80
      %v432 = vpop.permute.xlu0 %431
      %433 = vrot.lane.b32.xlu0 %v218, 80
      %v434 = vpop.permute.xlu0 %433
      %435 = vrot.lane.b32.xlu0 %v207, 115
      %v436 = vpop.permute.xlu0 %435
      %437 = vrot.lane.b32.xlu0 %v208, 115
      %v438 = vpop.permute.xlu0 %437
      %vm439 = vcmask 941056
      %v440 = vsel %vm439, %v436, %v438
      %v444 = vsel %vm233, %v432, 0
      %v447 = vsel %vm233, %v434, 0
      %449 = vmatprep.subr.bf16.mxu0 0
      %450 = vmatpush1.bf16.msra.mxu0 0
      %451 = vmatprep.subr.bf16.mxu0 0
      %452 = vmatpush1.bf16.msra.mxu0 0
      %453 = vmatprep.subr.bf16.mxu0 0
      %454 = vmatpush1.bf16.msra.mxu0 0
      %455 = vmatprep.subr.bf16.mxu0 0
      %456 = vmatpush1.bf16.msra.mxu0 0
      %457 = vmatprep.subr.bf16.mxu0 0
      %458 = vmatpush1.bf16.msra.mxu0 0
      %459 = vmatprep.subr.bf16.mxu0 0
      %460 = vmatpush1.bf16.msra.mxu0 0
      %461 = vmatprep.subr.bf16.mxu0 0
      %462 = vmatpush1.bf16.msra.mxu0 0
      %463 = vmatprep.subr.bf16.mxu0 %v438
      %464 = vmatpush1.bf16.msra.mxu0 %v440
      %465 = vmatprep.subr.bf16.mxu0 0
      %466 = vmatpush2.bf16.msra.mxu0 0
      %467 = vmatprep.subr.bf16.mxu0 0
      %468 = vmatpush2.bf16.msra.mxu0 0
      %469 = vmatprep.subr.bf16.mxu0 0
      %470 = vmatpush2.bf16.msra.mxu0 0
      %471 = vmatprep.subr.bf16.mxu0 0
      %472 = vmatpush2.bf16.msra.mxu0 0
      %473 = vmatprep.subr.bf16.mxu0 0
      %474 = vmatpush2.bf16.msra.mxu0 0
      %475 = vmatprep.subr.bf16.mxu0 0
      %476 = vmatpush2.bf16.msra.mxu0 0
      %477 = vmatprep.subr.bf16.mxu0 0
      %478 = vmatpush2.bf16.msra.mxu0 0
      %479 = vmatprep.subr.bf16.mxu0 0
      %480 = vmatpush2.bf16.msra.mxu0 0
      %481 = vmatprep.mubr.bf16.mxu0 0
      %482 = vmatmul.mubr.bf16.gmra.mxu0 %v444
      %v483 = vpop.f32.mrf.mxu0
      %v484 = vadd.f32 0.0, %v483
      %v485 = vpop.f32.mrf.mxu0
      %v486 = vadd.f32 0.0, %v485
      %v487 = vpop.f32.mrf.mxu0
      %v488 = vadd.f32 0.0, %v487
      %v489 = vpop.f32.mrf.mxu0
      %v490 = vadd.f32 0.0, %v489
      %491 = vmatprep.mubr.bf16.mxu0 0
      %492 = vmatmul.mubr.bf16.gmra.mxu0 %v447
      %v493 = vpop.f32.mrf.mxu0
      %v494 = vadd.f32 0.0, %v493
      %v495 = vpop.f32.mrf.mxu0
      %v496 = vadd.f32 0.0, %v495
      %v497 = vpop.f32.mrf.mxu0
      %v498 = vadd.f32 0.0, %v497
      %v499 = vpop.f32.mrf.mxu0
      %v500 = vadd.f32 0.0, %v499
      %501 = vdwg.mxu0
      %v502 = vadd.f32 %v423, %v484
      %v503 = vadd.f32 %v424, %v486
      %v504 = vadd.f32 %v425, %v488
      %v505 = vadd.f32 %v426, %v490
      %v506 = vadd.f32 %v427, %v494
      %v507 = vadd.f32 %v428, %v496
      %v508 = vadd.f32 %v429, %v498
      %v509 = vadd.f32 %v430, %v500
      %510 = vrot.lane.b32.xlu0 %v217, 64
      %v511 = vpop.permute.xlu0 %510
      %512 = vrot.lane.b32.xlu0 %v218, 64
      %v513 = vpop.permute.xlu0 %512
      %514 = vrot.lane.b32.xlu0 %v207, 114
      %v515 = vpop.permute.xlu0 %514
      %516 = vrot.lane.b32.xlu0 %v208, 114
      %v517 = vpop.permute.xlu0 %516
      %vm518 = vcmask 932864
      %v519 = vsel %vm518, %v515, %v517
      %v523 = vsel %vm233, %v511, 0
      %v526 = vsel %vm233, %v513, 0
      %528 = vmatprep.subr.bf16.mxu0 0
      %529 = vmatpush1.bf16.msra.mxu0 0
      %530 = vmatprep.subr.bf16.mxu0 0
      %531 = vmatpush1.bf16.msra.mxu0 0
      %532 = vmatprep.subr.bf16.mxu0 0
      %533 = vmatpush1.bf16.msra.mxu0 0
      %534 = vmatprep.subr.bf16.mxu0 0
      %535 = vmatpush1.bf16.msra.mxu0 0
      %536 = vmatprep.subr.bf16.mxu0 0
      %537 = vmatpush1.bf16.msra.mxu0 0
      %538 = vmatprep.subr.bf16.mxu0 0
      %539 = vmatpush1.bf16.msra.mxu0 0
      %540 = vmatprep.subr.bf16.mxu0 0
      %541 = vmatpush1.bf16.msra.mxu0 0
      %542 = vmatprep.subr.bf16.mxu0 %v517
      %543 = vmatpush1.bf16.msra.mxu0 %v519
      %544 = vmatprep.subr.bf16.mxu0 0
      %545 = vmatpush2.bf16.msra.mxu0 0
      %546 = vmatprep.subr.bf16.mxu0 0
      %547 = vmatpush2.bf16.msra.mxu0 0
      %548 = vmatprep.subr.bf16.mxu0 0
      %549 = vmatpush2.bf16.msra.mxu0 0
      %550 = vmatprep.subr.bf16.mxu0 0
      %551 = vmatpush2.bf16.msra.mxu0 0
      %552 = vmatprep.subr.bf16.mxu0 0
      %553 = vmatpush2.bf16.msra.mxu0 0
      %554 = vmatprep.subr.bf16.mxu0 0
      %555 = vmatpush2.bf16.msra.mxu0 0
      %556 = vmatprep.subr.bf16.mxu0 0
      %557 = vmatpush2.bf16.msra.mxu0 0
      %558 = vmatprep.subr.bf16.mxu0 0
      %559 = vmatpush2.bf16.msra.mxu0 0
      %560 = vmatprep.mubr.bf16.mxu0 0
      %561 = vmatmul.mubr.bf16.gmra.mxu0 %v523
      %v562 = vpop.f32.mrf.mxu0
      %v563 = vadd.f32 0.0, %v562
      %v564 = vpop.f32.mrf.mxu0
      %v565 = vadd.f32 0.0, %v564
      %v566 = vpop.f32.mrf.mxu0
      %v567 = vadd.f32 0.0, %v566
      %v568 = vpop.f32.mrf.mxu0
      %v569 = vadd.f32 0.0, %v568
      %570 = vmatprep.mubr.bf16.mxu0 0
      %571 = vmatmul.mubr.bf16.gmra.mxu0 %v526
      %v572 = vpop.f32.mrf.mxu0
      %v573 = vadd.f32 0.0, %v572
      %v574 = vpop.f32.mrf.mxu0
      %v575 = vadd.f32 0.0, %v574
      %v576 = vpop.f32.mrf.mxu0
      %v577 = vadd.f32 0.0, %v576
      %v578 = vpop.f32.mrf.mxu0
      %v579 = vadd.f32 0.0, %v578
      %580 = vdwg.mxu0
      %v581 = vadd.f32 %v502, %v563
      %v582 = vadd.f32 %v503, %v565
      %v583 = vadd.f32 %v504, %v567
      %v584 = vadd.f32 %v505, %v569
      %v585 = vadd.f32 %v506, %v573
      %v586 = vadd.f32 %v507, %v575
      %v587 = vadd.f32 %v508, %v577
      %v588 = vadd.f32 %v509, %v579
      %589 = vrot.lane.b32.xlu0 %v217, 48
      %v590 = vpop.permute.xlu0 %589
      %591 = vrot.lane.b32.xlu0 %v218, 48
      %v592 = vpop.permute.xlu0 %591
      %593 = vrot.lane.b32.xlu0 %v207, 113
      %v594 = vpop.permute.xlu0 %593
      %595 = vrot.lane.b32.xlu0 %v208, 113
      %v596 = vpop.permute.xlu0 %595
      %vm597 = vcmask 924672
      %v598 = vsel %vm597, %v594, %v596
      %v602 = vsel %vm233, %v590, 0
      %v605 = vsel %vm233, %v592, 0
      %607 = vmatprep.subr.bf16.mxu0 0
      %608 = vmatpush1.bf16.msra.mxu0 0
      %609 = vmatprep.subr.bf16.mxu0 0
      %610 = vmatpush1.bf16.msra.mxu0 0
      %611 = vmatprep.subr.bf16.mxu0 0
      %612 = vmatpush1.bf16.msra.mxu0 0
      %613 = vmatprep.subr.bf16.mxu0 0
      %614 = vmatpush1.bf16.msra.mxu0 0
      %615 = vmatprep.subr.bf16.mxu0 0
      %616 = vmatpush1.bf16.msra.mxu0 0
      %617 = vmatprep.subr.bf16.mxu0 0
      %618 = vmatpush1.bf16.msra.mxu0 0
      %619 = vmatprep.subr.bf16.mxu0 0
      %620 = vmatpush1.bf16.msra.mxu0 0
      %621 = vmatprep.subr.bf16.mxu0 %v596
      %622 = vmatpush1.bf16.msra.mxu0 %v598
      %623 = vmatprep.subr.bf16.mxu0 0
      %624 = vmatpush2.bf16.msra.mxu0 0
      %625 = vmatprep.subr.bf16.mxu0 0
      %626 = vmatpush2.bf16.msra.mxu0 0
      %627 = vmatprep.subr.bf16.mxu0 0
      %628 = vmatpush2.bf16.msra.mxu0 0
      %629 = vmatprep.subr.bf16.mxu0 0
      %630 = vmatpush2.bf16.msra.mxu0 0
      %631 = vmatprep.subr.bf16.mxu0 0
      %632 = vmatpush2.bf16.msra.mxu0 0
      %633 = vmatprep.subr.bf16.mxu0 0
      %634 = vmatpush2.bf16.msra.mxu0 0
      %635 = vmatprep.subr.bf16.mxu0 0
      %636 = vmatpush2.bf16.msra.mxu0 0
      %637 = vmatprep.subr.bf16.mxu0 0
      %638 = vmatpush2.bf16.msra.mxu0 0
      %639 = vmatprep.mubr.bf16.mxu0 0
      %640 = vmatmul.mubr.bf16.gmra.mxu0 %v602
      %v641 = vpop.f32.mrf.mxu0
      %v642 = vadd.f32 0.0, %v641
      %v643 = vpop.f32.mrf.mxu0
      %v644 = vadd.f32 0.0, %v643
      %v645 = vpop.f32.mrf.mxu0
      %v646 = vadd.f32 0.0, %v645
      %v647 = vpop.f32.mrf.mxu0
      %v648 = vadd.f32 0.0, %v647
      %649 = vmatprep.mubr.bf16.mxu0 0
      %650 = vmatmul.mubr.bf16.gmra.mxu0 %v605
      %v651 = vpop.f32.mrf.mxu0
      %v652 = vadd.f32 0.0, %v651
      %v653 = vpop.f32.mrf.mxu0
      %v654 = vadd.f32 0.0, %v653
      %v655 = vpop.f32.mrf.mxu0
      %v656 = vadd.f32 0.0, %v655
      %v657 = vpop.f32.mrf.mxu0
      %v658 = vadd.f32 0.0, %v657
      %659 = vdwg.mxu0
      %v660 = vadd.f32 %v581, %v642
      %v661 = vadd.f32 %v582, %v644
      %v662 = vadd.f32 %v583, %v646
      %v663 = vadd.f32 %v584, %v648
      %v664 = vadd.f32 %v585, %v652
      %v665 = vadd.f32 %v586, %v654
      %v666 = vadd.f32 %v587, %v656
      %v667 = vadd.f32 %v588, %v658
      %668 = vrot.lane.b32.xlu0 %v217, 32
      %v669 = vpop.permute.xlu0 %668
      %670 = vrot.lane.b32.xlu0 %v218, 32
      %v671 = vpop.permute.xlu0 %670
      %672 = vrot.lane.b32.xlu0 %v207, 102
      %v673 = vpop.permute.xlu0 %672
      %674 = vrot.lane.b32.xlu0 %v208, 102
      %v675 = vpop.permute.xlu0 %674
      %vm676 = vcmask 834560
      %v677 = vsel %vm676, %v673, %v675
      %v681 = vsel %vm233, %v669, 0
      %v684 = vsel %vm233, %v671, 0
      %686 = vmatprep.subr.bf16.mxu0 0
      %687 = vmatpush1.bf16.msra.mxu0 0
      %688 = vmatprep.subr.bf16.mxu0 0
      %689 = vmatpush1.bf16.msra.mxu0 0
      %690 = vmatprep.subr.bf16.mxu0 0
      %691 = vmatpush1.bf16.msra.mxu0 0
      %692 = vmatprep.subr.bf16.mxu0 0
      %693 = vmatpush1.bf16.msra.mxu0 0
      %694 = vmatprep.subr.bf16.mxu0 0
      %695 = vmatpush1.bf16.msra.mxu0 0
      %696 = vmatprep.subr.bf16.mxu0 0
      %697 = vmatpush1.bf16.msra.mxu0 0
      %698 = vmatprep.subr.bf16.mxu0 0
      %699 = vmatpush1.bf16.msra.mxu0 0
      %700 = vmatprep.subr.bf16.mxu0 %v675
      %701 = vmatpush1.bf16.msra.mxu0 %v677
      %702 = vmatprep.subr.bf16.mxu0 0
      %703 = vmatpush2.bf16.msra.mxu0 0
      %704 = vmatprep.subr.bf16.mxu0 0
      %705 = vmatpush2.bf16.msra.mxu0 0
      %706 = vmatprep.subr.bf16.mxu0 0
      %707 = vmatpush2.bf16.msra.mxu0 0
      %708 = vmatprep.subr.bf16.mxu0 0
      %709 = vmatpush2.bf16.msra.mxu0 0
      %710 = vmatprep.subr.bf16.mxu0 0
      %711 = vmatpush2.bf16.msra.mxu0 0
      %712 = vmatprep.subr.bf16.mxu0 0
      %713 = vmatpush2.bf16.msra.mxu0 0
      %714 = vmatprep.subr.bf16.mxu0 0
      %715 = vmatpush2.bf16.msra.mxu0 0
      %716 = vmatprep.subr.bf16.mxu0 0
      %717 = vmatpush2.bf16.msra.mxu0 0
      %718 = vmatprep.mubr.bf16.mxu0 0
      %719 = vmatmul.mubr.bf16.gmra.mxu0 %v681
      %v720 = vpop.f32.mrf.mxu0
      %v721 = vadd.f32 0.0, %v720
      %v722 = vpop.f32.mrf.mxu0
      %v723 = vadd.f32 0.0, %v722
      %v724 = vpop.f32.mrf.mxu0
      %v725 = vadd.f32 0.0, %v724
      %v726 = vpop.f32.mrf.mxu0
      %v727 = vadd.f32 0.0, %v726
      %728 = vmatprep.mubr.bf16.mxu0 0
      %729 = vmatmul.mubr.bf16.gmra.mxu0 %v684
      %v730 = vpop.f32.mrf.mxu0
      %v731 = vadd.f32 0.0, %v730
      %v732 = vpop.f32.mrf.mxu0
      %v733 = vadd.f32 0.0, %v732
      %v734 = vpop.f32.mrf.mxu0
      %v735 = vadd.f32 0.0, %v734
      %v736 = vpop.f32.mrf.mxu0
      %v737 = vadd.f32 0.0, %v736
      %738 = vdwg.mxu0
      %v739 = vadd.f32 %v660, %v721
      %v740 = vadd.f32 %v661, %v723
      %v741 = vadd.f32 %v662, %v725
      %v742 = vadd.f32 %v663, %v727
      %v743 = vadd.f32 %v664, %v731
      %v744 = vadd.f32 %v665, %v733
      %v745 = vadd.f32 %v666, %v735
      %v746 = vadd.f32 %v667, %v737
      %747 = vrot.lane.b32.xlu0 %v217, 16
      %v748 = vpop.permute.xlu0 %747
      %749 = vrot.lane.b32.xlu0 %v218, 16
      %v750 = vpop.permute.xlu0 %749
      %751 = vrot.lane.b32.xlu0 %v207, 101
      %v752 = vpop.permute.xlu0 %751
      %753 = vrot.lane.b32.xlu0 %v208, 101
      %v754 = vpop.permute.xlu0 %753
      %vm755 = vcmask 826368
      %v756 = vsel %vm755, %v752, %v754
      %v760 = vsel %vm233, %v748, 0
      %v763 = vsel %vm233, %v750, 0
      %765 = vmatprep.subr.bf16.mxu0 0
      %766 = vmatpush1.bf16.msra.mxu0 0
      %767 = vmatprep.subr.bf16.mxu0 0
      %768 = vmatpush1.bf16.msra.mxu0 0
      %769 = vmatprep.subr.bf16.mxu0 0
      %770 = vmatpush1.bf16.msra.mxu0 0
      %771 = vmatprep.subr.bf16.mxu0 0
      %772 = vmatpush1.bf16.msra.mxu0 0
      %773 = vmatprep.subr.bf16.mxu0 0
      %774 = vmatpush1.bf16.msra.mxu0 0
      %775 = vmatprep.subr.bf16.mxu0 0
      %776 = vmatpush1.bf16.msra.mxu0 0
      %777 = vmatprep.subr.bf16.mxu0 0
      %778 = vmatpush1.bf16.msra.mxu0 0
      %779 = vmatprep.subr.bf16.mxu0 %v754
      %780 = vmatpush1.bf16.msra.mxu0 %v756
      %781 = vmatprep.subr.bf16.mxu0 0
      %782 = vmatpush2.bf16.msra.mxu0 0
      %783 = vmatprep.subr.bf16.mxu0 0
      %784 = vmatpush2.bf16.msra.mxu0 0
      %785 = vmatprep.subr.bf16.mxu0 0
      %786 = vmatpush2.bf16.msra.mxu0 0
      %787 = vmatprep.subr.bf16.mxu0 0
      %788 = vmatpush2.bf16.msra.mxu0 0
      %789 = vmatprep.subr.bf16.mxu0 0
      %790 = vmatpush2.bf16.msra.mxu0 0
      %791 = vmatprep.subr.bf16.mxu0 0
      %792 = vmatpush2.bf16.msra.mxu0 0
      %793 = vmatprep.subr.bf16.mxu0 0
      %794 = vmatpush2.bf16.msra.mxu0 0
      %795 = vmatprep.subr.bf16.mxu0 0
      %796 = vmatpush2.bf16.msra.mxu0 0
      %797 = vmatprep.mubr.bf16.mxu0 0
      %798 = vmatmul.mubr.bf16.gmra.mxu0 %v760
      %v799 = vpop.f32.mrf.mxu0
      %v800 = vadd.f32 0.0, %v799
      %v801 = vpop.f32.mrf.mxu0
      %v802 = vadd.f32 0.0, %v801
      %v803 = vpop.f32.mrf.mxu0
      %v804 = vadd.f32 0.0, %v803
      %v805 = vpop.f32.mrf.mxu0
      %v806 = vadd.f32 0.0, %v805
      %807 = vmatprep.mubr.bf16.mxu0 0
      %808 = vmatmul.mubr.bf16.gmra.mxu0 %v763
      %v809 = vpop.f32.mrf.mxu0
      %v810 = vadd.f32 0.0, %v809
      %v811 = vpop.f32.mrf.mxu0
      %v812 = vadd.f32 0.0, %v811
      %v813 = vpop.f32.mrf.mxu0
      %v814 = vadd.f32 0.0, %v813
      %v815 = vpop.f32.mrf.mxu0
      %v816 = vadd.f32 0.0, %v815
      %817 = vdwg.mxu0
      %v818 = vadd.f32 %v739, %v800
      %v819 = vadd.f32 %v740, %v802
      %v820 = vadd.f32 %v741, %v804
      %v821 = vadd.f32 %v742, %v806
      %v822 = vadd.f32 %v743, %v810
      %v823 = vadd.f32 %v744, %v812
      %v824 = vadd.f32 %v745, %v814
      %v825 = vadd.f32 %v746, %v816
      %v826 = vld [vmem:[%s1 + $0x4] sm:$0xf]
      %v827 = vld [vmem:[%s1 + $0xc] sm:$0xf]
      %v828 = vld [vmem:[%s1 + $0x14] sm:$0xf]
      %v829 = vld [vmem:[%s1 + $0x1c] sm:$0xf]
      %v834 = vunpack.c.l.b16 %v826
      %v835 = vunpack.c.l.b16 %v827
      %v836 = vunpack.c.l.b16 %v828
      %v837 = vunpack.c.l.b16 %v829
      %v838 = vpack.c.b16 %v835, %v834
      %v839 = vpack.c.b16 %v837, %v836
      %840 = vrot.lane.b32.xlu0 %v207, 100
      %v841 = vpop.permute.xlu0 %840
      %842 = vrot.lane.b32.xlu0 %v208, 100
      %v843 = vpop.permute.xlu0 %842
      %vm844 = vcmask 818176
      %v845 = vsel %vm844, %v841, %v843
      %v849 = vsel %vm233, %v838, 0
      %v852 = vsel %vm233, %v839, 0
      %854 = vmatprep.subr.bf16.mxu0 0
      %855 = vmatpush1.bf16.msra.mxu0 0
      %856 = vmatprep.subr.bf16.mxu0 0
      %857 = vmatpush1.bf16.msra.mxu0 0
      %858 = vmatprep.subr.bf16.mxu0 0
      %859 = vmatpush1.bf16.msra.mxu0 0
      %860 = vmatprep.subr.bf16.mxu0 0
      %861 = vmatpush1.bf16.msra.mxu0 0
      %862 = vmatprep.subr.bf16.mxu0 0
      %863 = vmatpush1.bf16.msra.mxu0 0
      %864 = vmatprep.subr.bf16.mxu0 0
      %865 = vmatpush1.bf16.msra.mxu0 0
      %866 = vmatprep.subr.bf16.mxu0 0
      %867 = vmatpush1.bf16.msra.mxu0 0
      %868 = vmatprep.subr.bf16.mxu0 %v843
      %869 = vmatpush1.bf16.msra.mxu0 %v845
      %870 = vmatprep.subr.bf16.mxu0 0
      %871 = vmatpush2.bf16.msra.mxu0 0
      %872 = vmatprep.subr.bf16.mxu0 0
      %873 = vmatpush2.bf16.msra.mxu0 0
      %874 = vmatprep.subr.bf16.mxu0 0
      %875 = vmatpush2.bf16.msra.mxu0 0
      %876 = vmatprep.subr.bf16.mxu0 0
      %877 = vmatpush2.bf16.msra.mxu0 0
      %878 = vmatprep.subr.bf16.mxu0 0
      %879 = vmatpush2.bf16.msra.mxu0 0
      %880 = vmatprep.subr.bf16.mxu0 0
      %881 = vmatpush2.bf16.msra.mxu0 0
      %882 = vmatprep.subr.bf16.mxu0 0
      %883 = vmatpush2.bf16.msra.mxu0 0
      %884 = vmatprep.subr.bf16.mxu0 0
      %885 = vmatpush2.bf16.msra.mxu0 0
      %886 = vmatprep.mubr.bf16.mxu0 0
      %887 = vmatmul.mubr.bf16.gmra.mxu0 %v849
      %v888 = vpop.f32.mrf.mxu0
      %v889 = vadd.f32 0.0, %v888
      %v890 = vpop.f32.mrf.mxu0
      %v891 = vadd.f32 0.0, %v890
      %v892 = vpop.f32.mrf.mxu0
      %v893 = vadd.f32 0.0, %v892
      %v894 = vpop.f32.mrf.mxu0
      %v895 = vadd.f32 0.0, %v894
      %896 = vmatprep.mubr.bf16.mxu0 0
      %897 = vmatmul.mubr.bf16.gmra.mxu0 %v852
      %v898 = vpop.f32.mrf.mxu0
      %v899 = vadd.f32 0.0, %v898
      %v900 = vpop.f32.mrf.mxu0
      %v901 = vadd.f32 0.0, %v900
      %v902 = vpop.f32.mrf.mxu0
      %v903 = vadd.f32 0.0, %v902
      %v904 = vpop.f32.mrf.mxu0
      %v905 = vadd.f32 0.0, %v904
      %906 = vdwg.mxu0
      %v907 = vadd.f32 %v818, %v889
      %v908 = vadd.f32 %v819, %v891
      %v909 = vadd.f32 %v820, %v893
      %v910 = vadd.f32 %v821, %v895
      %v911 = vadd.f32 %v822, %v899
      %v912 = vadd.f32 %v823, %v901
      %v913 = vadd.f32 %v824, %v903
      %v914 = vadd.f32 %v825, %v905
      %v915 = vld [vmem:[%s2] sm:$0xff]
      %v916 = vld [vmem:[%s2 + $0x8] sm:$0xff]
      %v917 = vld [vmem:[%s2 + $0x10] sm:$0xff]
      %v918 = vld [vmem:[%s2 + $0x18] sm:$0xff]
      %920 = vset.pattern.permute.xlu0 0
      %921 = vperm.xlu0 %920, %v915
      %v922 = vpop.permute.xlu0 %921
      %925 = vset.pattern.permute.xlu0 0
      %926 = vperm.xlu0 %925, %v916
      %v927 = vpop.permute.xlu0 %926
      %930 = vset.pattern.permute.xlu0 0
      %931 = vperm.xlu0 %930, %v917
      %v932 = vpop.permute.xlu0 %931
      %935 = vset.pattern.permute.xlu0 0
      %936 = vperm.xlu0 %935, %v918
      %v937 = vpop.permute.xlu0 %936
      %v939 = vadd.f32 %v907, %v922
      %v940 = vadd.f32 %v908, %v922
      %v941 = vadd.f32 %v909, %v927
      %v942 = vadd.f32 %v910, %v927
      %v943 = vadd.f32 %v911, %v932
      %v944 = vadd.f32 %v912, %v932
      %v945 = vadd.f32 %v913, %v937
      %v946 = vadd.f32 %v914, %v937
      %v947 = vmax.f32 %v939, 0.0
      %v948 = vmax.f32 %v940, 0.0
      %v949 = vmax.f32 %v941, 0.0
      %v950 = vmax.f32 %v942, 0.0
      %v951 = vmax.f32 %v943, 0.0
      %v952 = vmax.f32 %v944, 0.0
      %v953 = vmax.f32 %v945, 0.0
      %v954 = vmax.f32 %v946, 0.0
      %963 = vrot.lane.b32.xlu0 %v947, 127
      %v964 = vpop.permute.xlu0 %963
      %965 = vrot.lane.b32.xlu0 %v948, 127
      %v966 = vpop.permute.xlu0 %965
      %967 = vrot.lane.b32.xlu0 %v949, 127
      %v968 = vpop.permute.xlu0 %967
      %969 = vrot.lane.b32.xlu0 %v950, 127
      %v970 = vpop.permute.xlu0 %969
      %971 = vrot.lane.b32.xlu0 %v951, 127
      %v972 = vpop.permute.xlu0 %971
      %973 = vrot.lane.b32.xlu0 %v952, 127
      %v974 = vpop.permute.xlu0 %973
      %975 = vrot.lane.b32.xlu0 %v953, 127
      %v976 = vpop.permute.xlu0 %975
      %977 = vrot.lane.b32.xlu0 %v954, 127
      %v978 = vpop.permute.xlu0 %977
      %vm979 = vcmask 1039360
      %v980 = vsel %vm979, %v964, %v966
      %v981 = vsel %vm979, %v968, %v970
      %v982 = vsel %vm979, %v972, %v974
      %v983 = vsel %vm979, %v976, %v978
      %v992 = vmax.f32 %v947, %v980
      %v993 = vmax.f32 %v948, %v966
      %v994 = vmax.f32 %v949, %v981
      %v995 = vmax.f32 %v950, %v970
      %v996 = vmax.f32 %v951, %v982
      %v997 = vmax.f32 %v952, %v974
      %v998 = vmax.f32 %v953, %v983
      %v999 = vmax.f32 %v954, %v978
      %1008 = vrot.lane.b32.xlu0 %v992, 115
      %v1009 = vpop.permute.xlu0 %1008
      %1010 = vrot.lane.b32.xlu0 %v993, 115
      %v1011 = vpop.permute.xlu0 %1010
      %1012 = vrot.lane.b32.xlu0 %v994, 115
      %v1013 = vpop.permute.xlu0 %1012
      %1014 = vrot.lane.b32.xlu0 %v995, 115
      %v1015 = vpop.permute.xlu0 %1014
      %1016 = vrot.lane.b32.xlu0 %v996, 115
      %v1017 = vpop.permute.xlu0 %1016
      %1018 = vrot.lane.b32.xlu0 %v997, 115
      %v1019 = vpop.permute.xlu0 %1018
      %1020 = vrot.lane.b32.xlu0 %v998, 115
      %v1021 = vpop.permute.xlu0 %1020
      %1022 = vrot.lane.b32.xlu0 %v999, 115
      %v1023 = vpop.permute.xlu0 %1022
      %vm1024 = vcmask 941056
      %v1025 = vsel %vm1024, %v1009, %v1011
      %v1026 = vsel %vm1024, %v1013, %v1015
      %v1027 = vsel %vm1024, %v1017, %v1019
      %v1028 = vsel %vm1024, %v1021, %v1023
      %v1037 = vmax.f32 %v992, %v1025
      %v1038 = vmax.f32 %v993, %v1011
      %v1039 = vmax.f32 %v994, %v1026
      %v1040 = vmax.f32 %v995, %v1015
      %v1041 = vmax.f32 %v996, %v1027
      %v1042 = vmax.f32 %v997, %v1019
      %v1043 = vmax.f32 %v998, %v1028
      %v1044 = vmax.f32 %v999, %v1023
      %v1045 = vld [vmem:[%s3] sm:$0xff]
      %v1046 = vld [vmem:[%s3 + $0x8] sm:$0xff]
      %v1047 = vld [vmem:[%s3 + $0x10] sm:$0xff]
      %v1048 = vld [vmem:[%s3 + $0x18] sm:$0xff]
      %v1049 = vld [vmem:[%s3 + $0x20] sm:$0xff]
      %v1050 = vld [vmem:[%s3 + $0x28] sm:$0xff]
      %v1051 = vld [vmem:[%s3 + $0x30] sm:$0xff]
      %v1052 = vld [vmem:[%s3 + $0x38] sm:$0xff]
      %v1053 = vld [vmem:[%s3 + $0x40] sm:$0xff]
      %v1054 = vld [vmem:[%s3 + $0x48] sm:$0xff]
      %v1055 = vld [vmem:[%s3 + $0x50] sm:$0xff]
      %v1056 = vld [vmem:[%s3 + $0x58] sm:$0xff]
      %v1057 = vld [vmem:[%s3 + $0x60] sm:$0xff]
      %v1058 = vld [vmem:[%s3 + $0x68] sm:$0xff]
      %v1059 = vld [vmem:[%s3 + $0x70] sm:$0xff]
      %v1060 = vld [vmem:[%s3 + $0x78] sm:$0xff]
      %v1061 = vld [vmem:[%s3 + $0x80] sm:$0x1]
      %vm1062 = vcmask 7168
      %v1064 = vsel %vm1062, %v1038, 0
      %v1067 = vsel %vm1062, %v1040, 0
      %v1070 = vsel %vm1062, %v1042, 0
      %v1073 = vsel %vm1062, %v1044, 0
      %vm1075 = vcmask 1040384
      %v1077 = vsel %vm1075, %v1061, 0
      %1079 = vmatprep.subr.mxu0 0.0
      %1080 = vmatpush1.msra.mxu0 %v1060
      %1081 = vmatprep.subr.mxu0 0.0
      %1082 = vmatpush1.msra.mxu0 %v1059
      %1083 = vmatprep.subr.mxu0 0.0
      %1084 = vmatpush1.msra.mxu0 %v1058
      %1085 = vmatprep.subr.mxu0 0.0
      %1086 = vmatpush1.msra.mxu0 %v1057
      %1087 = vmatprep.subr.mxu0 0.0
      %1088 = vmatpush1.msra.mxu0 %v1056
      %1089 = vmatprep.subr.mxu0 0.0
      %1090 = vmatpush1.msra.mxu0 %v1055
      %1091 = vmatprep.subr.mxu0 0.0
      %1092 = vmatpush1.msra.mxu0 %v1054
      %1093 = vmatprep.subr.mxu0 0.0
      %1094 = vmatpush1.msra.mxu0 %v1053
      %1095 = vmatprep.subr.mxu0 0.0
      %1096 = vmatpush1.msra.mxu0 %v1052
      %1097 = vmatprep.subr.mxu0 0.0
      %1098 = vmatpush1.msra.mxu0 %v1051
      %1099 = vmatprep.subr.mxu0 0.0
      %1100 = vmatpush1.msra.mxu0 %v1050
      %1101 = vmatprep.subr.mxu0 0.0
      %1102 = vmatpush1.msra.mxu0 %v1049
      %1103 = vmatprep.subr.mxu0 0.0
      %1104 = vmatpush1.msra.mxu0 %v1048
      %1105 = vmatprep.subr.mxu0 0.0
      %1106 = vmatpush1.msra.mxu0 %v1047
      %1107 = vmatprep.subr.mxu0 0.0
      %1108 = vmatpush1.msra.mxu0 %v1046
      %1109 = vmatprep.subr.mxu0 0.0
      %1110 = vmatpush1.msra.mxu0 %v1045
      %1111 = vmatprep.subr.mxu0 0.0
      %1112 = vmatpush2.msra.mxu0 0.0
      %1113 = vmatprep.subr.mxu0 0.0
      %1114 = vmatpush2.msra.mxu0 0.0
      %1115 = vmatprep.subr.mxu0 0.0
      %1116 = vmatpush2.msra.mxu0 0.0
      %1117 = vmatprep.subr.mxu0 0.0
      %1118 = vmatpush2.msra.mxu0 0.0
      %1119 = vmatprep.subr.mxu0 0.0
      %1120 = vmatpush2.msra.mxu0 0.0
      %1121 = vmatprep.subr.mxu0 0.0
      %1122 = vmatpush2.msra.mxu0 0.0
      %1123 = vmatprep.subr.mxu0 0.0
      %1124 = vmatpush2.msra.mxu0 0.0
      %1125 = vmatprep.subr.mxu0 0.0
      %1126 = vmatpush2.msra.mxu0 0.0
      %1127 = vmatprep.subr.mxu0 0.0
      %1128 = vmatpush2.msra.mxu0 0.0
      %1129 = vmatprep.subr.mxu0 0.0
      %1130 = vmatpush2.msra.mxu0 0.0
      %1131 = vmatprep.subr.mxu0 0.0
      %1132 = vmatpush2.msra.mxu0 0.0
      %1133 = vmatprep.subr.mxu0 0.0
      %1134 = vmatpush2.msra.mxu0 0.0
      %1135 = vmatprep.subr.mxu0 0.0
      %1136 = vmatpush2.msra.mxu0 0.0
      %1137 = vmatprep.subr.mxu0 0.0
      %1138 = vmatpush2.msra.mxu0 0.0
      %1139 = vmatprep.subr.mxu0 0.0
      %1140 = vmatpush2.msra.mxu0 0.0
      %1141 = vmatprep.subr.mxu0 0.0
      %1142 = vmatpush2.msra.mxu0 %v1077
      %1143 = vmatprep.mubr.f32.mxu0 %v1064
      %1144 = vmatmul.mubr.f32.gmra.mxu0 %v1037
      %v1145 = vpop.f32.mrf.mxu0
      %v1146 = vadd.f32 0.0, %v1145
      %v1147 = vpop.f32.mrf.mxu0
      %1148 = vmatprep.mubr.f32.mxu0 %v1067
      %1149 = vmatmul.mubr.f32.gmra.mxu0 %v1039
      %v1150 = vpop.f32.mrf.mxu0
      %v1151 = vadd.f32 0.0, %v1150
      %v1152 = vpop.f32.mrf.mxu0
      %1153 = vmatprep.mubr.f32.mxu0 %v1070
      %1154 = vmatmul.mubr.f32.gmra.mxu0 %v1041
      %v1155 = vpop.f32.mrf.mxu0
      %v1156 = vadd.f32 0.0, %v1155
      %v1157 = vpop.f32.mrf.mxu0
      %1158 = vmatprep.mubr.f32.mxu0 %v1073
      %1159 = vmatmul.mubr.f32.gmra.mxu0 %v1043
      %v1160 = vpop.f32.mrf.mxu0
      %v1161 = vadd.f32 0.0, %v1160
      %v1162 = vpop.f32.mrf.mxu0
      %1163 = vdwg.mxu0
      %vm1164 = vcmask 203776
      %1165 = vst.msk [vmem:[%s197] sm:$0xff] %vm1164, %v1146
      %1166 = vst.msk [vmem:[%s197 + $0x8] sm:$0xff] %vm1164, %v1151
      %1167 = vst.msk [vmem:[%s197 + $0x10] sm:$0xff] %vm1164, %v1156
      %1168 = vst.msk [vmem:[%s197 + $0x18] sm:$0xff] %vm1164, %v1161
      %p1169 = scmp.lt.s32.totalorder %s15, 1
      %s1170 = scalar_select %p1169, %s15, 1
      %s1171 = smul.addr %s1170, 4
      %s1172 = smul.addr %s1171, 8
      %s1173 = scalar_lea.vmem %s4, %s1172
      // Predicated region
      $region37: #{mnist_cnn_forward.4} parent=35 // pred_check
        %p1174 = pneg %p122
      $region38: #{mnist_cnn_forward.4} parent=35 // pred_check_branch
        %1176 = sbr.rel (%p1174) target = $region40
      $region39: #{mnist_cnn_forward.4} parent=35 // pred_region
        _
      $region40: #{mnist_cnn_forward.4} parent=35 // pred_fallthru
        _
    $region36: #{mnist_cnn_forward.4} parent=5 // pred_fallthru
      _
    %p1177 = scmp.le.s32.totalorder 2, %s10
    // Predicated region
    $region41: #{mnist_cnn_forward.4} parent=5 // pred_check
      %p1178 = pneg %p1177
    $region42: #{mnist_cnn_forward.4} parent=5 // pred_check_branch
      %1180 = sbr.rel (%p1178) target = $region44
    $region43: #{mnist_cnn_forward.4} parent=5 // pred_region
      %s1181 = ssub.s32 %s10, 2
      // Predicated region
      $region45: #{mnist_cnn_forward.4} parent=43 // pred_check
        %p1182 = pneg %p128
      $region46: #{mnist_cnn_forward.4} parent=43 // pred_check_branch
        %1184 = sbr.rel (%p1182) target = $region48
      $region47: #{mnist_cnn_forward.4} parent=43 // pred_region
        %p1185 = scmp.lt.s32.totalorder %s16, 1
        %s1186 = scalar_select %p1185, %s16, 1
        %s1187 = smul.addr %s1186, 4
        %s1188 = smul.addr %s1187, 8
        %s1189 = scalar_lea.vmem %s4, %s1188
      $region48: #{mnist_cnn_forward.4} parent=43 // pred_fallthru
        _
    $region44: #{mnist_cnn_forward.4} parent=5 // pred_fallthru
      _
  $region6: #{mnist_cnn_forward.4} parent=0 // loop_footer
    %s14 = sadd.s32 1, %s10
  $region7: #{mnist_cnn_forward.4} parent=0 // loop_footer_branch
    %9 = sbr.rel target = $region3
  $region8: #{mnist_cnn_forward.4} parent=0 // loop_exit
    _

</llo_original>
